<compile_context>
chip_gen: v6e
topology: v6e:2x2x1
jax: 0.10.0
libtpu: 0.0.40
codegen_flags: <defaults>
</compile_context>

<pallas_src>
import jax
import jax.numpy as jnp
from jax.experimental import pallas as pl
from jax.experimental.pallas import tpu as pltpu

BN_EPS = 1e-5
NEG_PAD = -1e30          # bias for padded logit lanes -> exp(pad - max) == 0
VMEM_LIMIT = 40 << 20    # generous ceiling; footprint is a few MiB for B<=2048,
                         # stays under v7x's 64 MiB physical VMEM


# --------------------------------------------------------------- kernel -----

def _make_net_kernel(n_real, n_pad):
    """Fused whole-batch forward. n_real/n_pad are trace-time constants."""
    inv_n = 1.0 / float(n_real)
    need_mask = n_pad != n_real

    def kernel(x_ref, w1_ref, b1_ref, g1_ref, be1_ref,
               w2_ref, b2_ref, w3_ref, b3_ref, w4_ref, b4_ref,
               g2_ref, be2_ref, w5_ref, b5_ref, wf_ref, bf_ref,
               out_ref):
        if need_mask:
            row = jax.lax.broadcasted_iota(jnp.int32, (n_pad, 1), 0)
            mask = (row < n_real).astype(jnp.float32)
        else:
            mask = None

        def bn_scale_shift(h, gamma, beta):
            # training-mode BatchNorm1d: mean / biased variance over real rows.
            hm = h * mask if need_mask else h
            mu = jnp.sum(hm, axis=0, keepdims=True) * inv_n
            d = h - mu
            dm = d * mask if need_mask else d
            var = jnp.sum(d * dm, axis=0, keepdims=True) * inv_n
            scale = gamma * jax.lax.rsqrt(var + BN_EPS)
            shift = beta - mu * scale
            return scale, shift

        bf16 = jnp.bfloat16

        # layer1 (x is already bf16; K = 784 full-dim block)
        h1 = jnp.dot(x_ref[...], w1_ref[...],
                     preferred_element_type=jnp.float32) + b1_ref[...]
        # BN1 -> relu
        s1, t1 = bn_scale_shift(h1, g1_ref[...], be1_ref[...])
        h = jnp.maximum(h1 * s1 + t1, 0.0)
        # layer2 -> relu
        h = jnp.maximum(
            jnp.dot(h.astype(bf16), w2_ref[...],
                    preferred_element_type=jnp.float32) + b2_ref[...], 0.0)
        # layer3 -> relu
        h = jnp.maximum(
            jnp.dot(h.astype(bf16), w3_ref[...],
                    preferred_element_type=jnp.float32) + b3_ref[...], 0.0)
        # layer4
        h4 = jnp.dot(h.astype(bf16), w4_ref[...],
                     preferred_element_type=jnp.float32) + b4_ref[...]
        # BN2 -> relu
        s2, t2 = bn_scale_shift(h4, g2_ref[...], be2_ref[...])
        h = jnp.maximum(h4 * s2 + t2, 0.0)
        # layer5 -> relu
        h = jnp.maximum(
            jnp.dot(h.astype(bf16), w5_ref[...],
                    preferred_element_type=jnp.float32) + b5_ref[...], 0.0)
        # final -> log_softmax.  wf is zero-padded to 128 output lanes and bf's
        # pad lanes hold NEG_PAD, so the 128-wide softmax equals the 10-wide
        # one on the real columns and the output store stays lane-dense.
        logits = jnp.dot(h.astype(bf16), wf_ref[...],
                         preferred_element_type=jnp.float32) + bf_ref[...]
        m = jnp.max(logits, axis=1, keepdims=True)
        z = logits - m
        lse = jnp.log(jnp.sum(jnp.exp(z), axis=1, keepdims=True))
        out_ref[...] = z - lse

    return kernel


# --------------------------------------------------------------- wrapper ----

def pack_params(params):
    """One-time (outside jit) parameter packing: bf16 weights, padded head."""
    bf16 = jnp.bfloat16
    return {
        "w1": params["w1"].astype(bf16), "b1": params["b1"],
        "g1": params["g1"], "be1": params["be1"],
        "w2": params["w2"].astype(bf16), "b2": params["b2"],
        "w3": params["w3"].astype(bf16), "b3": params["b3"],
        "w4": params["w4"].astype(bf16), "b4": params["b4"],
        "g2": params["g2"], "be2": params["be2"],
        "w5": params["w5"].astype(bf16), "b5": params["b5"],
        "wf": jnp.zeros((64, 128), bf16).at[:, :10].set(params["wf"].astype(bf16)),
        "bf": jnp.full((1, 128), NEG_PAD, jnp.float32).at[:, :10].set(params["bf"]),
    }


def net_forward(x, packed):
    """x: [B, 784] float, packed: pack_params output -> [B, 10] f32 log-probs."""
    B = x.shape[0]
    B_pad = max(8, ((B + 7) // 8) * 8)
    # Fused whole-batch-in-VMEM path; for very large batches a batch-tiled
    # multi-stage pipeline would be needed instead.
    assert B_pad <= 2048, "fused path assumes the whole batch fits in VMEM"

    xb = x.astype(jnp.bfloat16)
    if B_pad != B:
        xb = jnp.zeros((B_pad, x.shape[1]), jnp.bfloat16).at[:B].set(xb)

    out_pad = pl.pallas_call(
        _make_net_kernel(B, B_pad),
        out_shape=jax.ShapeDtypeStruct((B_pad, 128), jnp.float32),
        compiler_params=pltpu.CompilerParams(vmem_limit_bytes=VMEM_LIMIT),
    )(xb,
      packed["w1"], packed["b1"], packed["g1"], packed["be1"],
      packed["w2"], packed["b2"], packed["w3"], packed["b3"],
      packed["w4"], packed["b4"], packed["g2"], packed["be2"],
      packed["w5"], packed["b5"], packed["wf"], packed["bf"])

    return out_pad[:B, :10]


# ------------------------------------------------------------- reference ----

def ref_forward(x, params):
    """Pure-JAX reference with matching precision (bf16 dots, f32 accumulation)."""
    bf16 = jnp.bfloat16

    def dot(a, w):
        return jnp.dot(a.astype(bf16), w.astype(bf16),
                       preferred_element_type=jnp.float32)

    def bn(h, g, b):
        mu = jnp.mean(h, axis=0, keepdims=True)
        var = jnp.mean(jnp.square(h - mu), axis=0, keepdims=True)
        return g * (h - mu) * jax.lax.rsqrt(var + BN_EPS) + b

    h = dot(x, params["w1"]) + params["b1"]
    h = jnp.maximum(bn(h, params["g1"], params["be1"]), 0.0)
    h = jnp.maximum(dot(h, params["w2"]) + params["b2"], 0.0)
    h = jnp.maximum(dot(h, params["w3"]) + params["b3"], 0.0)
    h = dot(h, params["w4"]) + params["b4"]
    h = jnp.maximum(bn(h, params["g2"], params["be2"]), 0.0)
    h = jnp.maximum(dot(h, params["w5"]) + params["b5"], 0.0)
    logits = dot(h, params["wf"]) + params["bf"]
    return jax.nn.log_softmax(logits, axis=1)


# ----------------------------------------------------------------- params ----

def init_params(key):
    """Deterministic init (PyTorch nn.Linear-style). Weights stored [in, out], f32."""
    sizes = [(784, 512), (512, 512), (512, 256), (256, 64), (64, 64), (64, 10)]
    names = ["1", "2", "3", "4", "5", "f"]
    params = {}
    keys = jax.random.split(key, 2 * len(sizes))
    for i, ((fan_in, fan_out), n) in enumerate(zip(sizes, names)):
        bound = 1.0 / (fan_in ** 0.5)
        params[f"w{n}"] = jax.random.uniform(
            keys[2 * i], (fan_in, fan_out), jnp.float32, -bound, bound)
        params[f"b{n}"] = jax.random.uniform(
            keys[2 * i + 1], (1, fan_out), jnp.float32, -bound, bound)
    # BatchNorm affine params (PyTorch default: weight=1, bias=0)
    params["g1"] = jnp.ones((1, 512), jnp.float32)
    params["be1"] = jnp.zeros((1, 512), jnp.float32)
    params["g2"] = jnp.ones((1, 64), jnp.float32)
    params["be2"] = jnp.zeros((1, 64), jnp.float32)
    return params


if __name__ == "__main__":
    key = jax.random.PRNGKey(0)
    pkey, xkey, xkey2 = jax.random.split(key, 3)
    params = init_params(pkey)
    packed = pack_params(params)          # one-time packing, outside jit

    fwd = jax.jit(net_forward)

    # main check: aligned batch (no padding / masking)
    B = 128
    x = jax.random.normal(xkey, (B, 28 * 28), jnp.float32)
    out = jax.block_until_ready(fwd(x, packed))
    assert out.shape == (B, 10)
    assert bool(jnp.all(jnp.isfinite(out)))
    assert jnp.allclose(jnp.sum(jnp.exp(out), axis=1), 1.0, atol=1e-3)
    err = float(jnp.max(jnp.abs(out - ref_forward(x, params))))
    assert err < 2e-2, f"max abs error vs reference: {err}"

    # secondary check: ragged batch exercises the padded-row BN masking path
    B2 = 20
    x2 = jax.random.normal(xkey2, (B2, 28 * 28), jnp.float32)
    out2 = jax.block_until_ready(fwd(x2, packed))
    assert out2.shape == (B2, 10)
    err2 = float(jnp.max(jnp.abs(out2 - ref_forward(x2, params))))
    assert err2 < 2e-2, f"max abs error (masked path) vs reference: {err2}"

    print("KERNEL_OK")
</pallas_src>

<mosaic_0001>
module attributes {stable_mosaic.version = 11 : i64} {
  func.func @kernel(%arg0: memref<128x784xbf16, #tpu.memory_space<vmem>>, %arg1: memref<784x512xbf16, #tpu.memory_space<vmem>>, %arg2: memref<1x512xf32, #tpu.memory_space<vmem>>, %arg3: memref<1x512xf32, #tpu.memory_space<vmem>>, %arg4: memref<1x512xf32, #tpu.memory_space<vmem>>, %arg5: memref<512x512xbf16, #tpu.memory_space<vmem>>, %arg6: memref<1x512xf32, #tpu.memory_space<vmem>>, %arg7: memref<512x256xbf16, #tpu.memory_space<vmem>>, %arg8: memref<1x256xf32, #tpu.memory_space<vmem>>, %arg9: memref<256x64xbf16, #tpu.memory_space<vmem>>, %arg10: memref<1x64xf32, #tpu.memory_space<vmem>>, %arg11: memref<1x64xf32, #tpu.memory_space<vmem>>, %arg12: memref<1x64xf32, #tpu.memory_space<vmem>>, %arg13: memref<64x64xbf16, #tpu.memory_space<vmem>>, %arg14: memref<1x64xf32, #tpu.memory_space<vmem>>, %arg15: memref<64x128xbf16, #tpu.memory_space<vmem>>, %arg16: memref<1x128xf32, #tpu.memory_space<vmem>>, %arg17: memref<128x128xf32, #tpu.memory_space<vmem>>) attributes {dimension_semantics = [], scalar_prefetch = 0 : i64, scratch_operands = 0 : i64, tpu.core_type = #tpu.core_type<tc>} {
    %c0 = arith.constant 0 : index
    %c0_0 = arith.constant 0 : index
    %0 = vector.load %arg0[%c0, %c0_0] : memref<128x784xbf16, #tpu.memory_space<vmem>>, vector<128x784xbf16>
    %c0_1 = arith.constant 0 : index
    %c0_2 = arith.constant 0 : index
    %1 = vector.load %arg1[%c0_1, %c0_2] : memref<784x512xbf16, #tpu.memory_space<vmem>>, vector<784x512xbf16>
    %cst = arith.constant dense<0.000000e+00> : vector<128x512xf32>
    %2 = tpu.matmul %0, %1, %cst {dimension_numbers = #tpu.dot_dimension_numbers<[1], [0], [0], [1], [0, 0, 1, 1], [], []>} : vector<128x784xbf16>, vector<784x512xbf16>, vector<128x512xf32> -> vector<128x512xf32>
    %c0_3 = arith.constant 0 : index
    %c0_4 = arith.constant 0 : index
    %3 = vector.load %arg2[%c0_3, %c0_4] : memref<1x512xf32, #tpu.memory_space<vmem>>, vector<1x512xf32>
    %4 = vector.broadcast %3 : vector<1x512xf32> to vector<128x512xf32>
    %5 = arith.addf %2, %4 : vector<128x512xf32>
    %c0_5 = arith.constant 0 : index
    %c0_6 = arith.constant 0 : index
    %6 = vector.load %arg3[%c0_5, %c0_6] : memref<1x512xf32, #tpu.memory_space<vmem>>, vector<1x512xf32>
    %c0_7 = arith.constant 0 : index
    %c0_8 = arith.constant 0 : index
    %7 = vector.load %arg4[%c0_7, %c0_8] : memref<1x512xf32, #tpu.memory_space<vmem>>, vector<1x512xf32>
    %cst_9 = arith.constant dense<0.000000e+00> : vector<512xf32>
    %8 = vector.multi_reduction <add>, %5, %cst_9 [0] : vector<128x512xf32> to vector<512xf32>
    %9 = vector.shape_cast %8 : vector<512xf32> to vector<1x512xf32>
    %cst_10 = arith.constant 7.812500e-03 : f32
    %10 = vector.broadcast %cst_10 : f32 to vector<1x512xf32>
    %11 = arith.mulf %9, %10 : vector<1x512xf32>
    %12 = vector.broadcast %11 : vector<1x512xf32> to vector<128x512xf32>
    %13 = arith.subf %5, %12 : vector<128x512xf32>
    %14 = arith.mulf %13, %13 : vector<128x512xf32>
    %cst_11 = arith.constant dense<0.000000e+00> : vector<512xf32>
    %15 = vector.multi_reduction <add>, %14, %cst_11 [0] : vector<128x512xf32> to vector<512xf32>
    %16 = vector.shape_cast %15 : vector<512xf32> to vector<1x512xf32>
    %cst_12 = arith.constant 7.812500e-03 : f32
    %17 = vector.broadcast %cst_12 : f32 to vector<1x512xf32>
    %18 = arith.mulf %16, %17 : vector<1x512xf32>
    %cst_13 = arith.constant 9.99999974E-6 : f32
    %19 = vector.broadcast %cst_13 : f32 to vector<1x512xf32>
    %20 = arith.addf %18, %19 : vector<1x512xf32>
    %21 = math.rsqrt %20 : vector<1x512xf32>
    %22 = arith.mulf %6, %21 : vector<1x512xf32>
    %23 = arith.mulf %11, %22 : vector<1x512xf32>
    %24 = arith.subf %7, %23 : vector<1x512xf32>
    %25 = vector.broadcast %22 : vector<1x512xf32> to vector<128x512xf32>
    %26 = arith.mulf %5, %25 : vector<128x512xf32>
    %27 = vector.broadcast %24 : vector<1x512xf32> to vector<128x512xf32>
    %28 = arith.addf %26, %27 : vector<128x512xf32>
    %cst_14 = arith.constant 0.000000e+00 : f32
    %29 = vector.broadcast %cst_14 : f32 to vector<128x512xf32>
    %30 = arith.maximumf %28, %29 : vector<128x512xf32>
    %31 = arith.truncf %30 : vector<128x512xf32> to vector<128x512xbf16>
    %c0_15 = arith.constant 0 : index
    %c0_16 = arith.constant 0 : index
    %32 = vector.load %arg5[%c0_15, %c0_16] : memref<512x512xbf16, #tpu.memory_space<vmem>>, vector<512x512xbf16>
    %cst_17 = arith.constant dense<0.000000e+00> : vector<128x512xf32>
    %33 = tpu.matmul %31, %32, %cst_17 {dimension_numbers = #tpu.dot_dimension_numbers<[1], [0], [0], [1], [0, 0, 1, 1], [], []>} : vector<128x512xbf16>, vector<512x512xbf16>, vector<128x512xf32> -> vector<128x512xf32>
    %c0_18 = arith.constant 0 : index
    %c0_19 = arith.constant 0 : index
    %34 = vector.load %arg6[%c0_18, %c0_19] : memref<1x512xf32, #tpu.memory_space<vmem>>, vector<1x512xf32>
    %35 = vector.broadcast %34 : vector<1x512xf32> to vector<128x512xf32>
    %36 = arith.addf %33, %35 : vector<128x512xf32>
    %cst_20 = arith.constant 0.000000e+00 : f32
    %37 = vector.broadcast %cst_20 : f32 to vector<128x512xf32>
    %38 = arith.maximumf %36, %37 : vector<128x512xf32>
    %39 = arith.truncf %38 : vector<128x512xf32> to vector<128x512xbf16>
    %c0_21 = arith.constant 0 : index
    %c0_22 = arith.constant 0 : index
    %40 = vector.load %arg7[%c0_21, %c0_22] : memref<512x256xbf16, #tpu.memory_space<vmem>>, vector<512x256xbf16>
    %cst_23 = arith.constant dense<0.000000e+00> : vector<128x256xf32>
    %41 = tpu.matmul %39, %40, %cst_23 {dimension_numbers = #tpu.dot_dimension_numbers<[1], [0], [0], [1], [0, 0, 1, 1], [], []>} : vector<128x512xbf16>, vector<512x256xbf16>, vector<128x256xf32> -> vector<128x256xf32>
    %c0_24 = arith.constant 0 : index
    %c0_25 = arith.constant 0 : index
    %42 = vector.load %arg8[%c0_24, %c0_25] : memref<1x256xf32, #tpu.memory_space<vmem>>, vector<1x256xf32>
    %43 = vector.broadcast %42 : vector<1x256xf32> to vector<128x256xf32>
    %44 = arith.addf %41, %43 : vector<128x256xf32>
    %cst_26 = arith.constant 0.000000e+00 : f32
    %45 = vector.broadcast %cst_26 : f32 to vector<128x256xf32>
    %46 = arith.maximumf %44, %45 : vector<128x256xf32>
    %47 = arith.truncf %46 : vector<128x256xf32> to vector<128x256xbf16>
    %c0_27 = arith.constant 0 : index
    %c0_28 = arith.constant 0 : index
    %48 = vector.load %arg9[%c0_27, %c0_28] : memref<256x64xbf16, #tpu.memory_space<vmem>>, vector<256x64xbf16>
    %cst_29 = arith.constant dense<0.000000e+00> : vector<128x64xf32>
    %49 = tpu.matmul %47, %48, %cst_29 {dimension_numbers = #tpu.dot_dimension_numbers<[1], [0], [0], [1], [0, 0, 1, 1], [], []>} : vector<128x256xbf16>, vector<256x64xbf16>, vector<128x64xf32> -> vector<128x64xf32>
    %c0_30 = arith.constant 0 : index
    %c0_31 = arith.constant 0 : index
    %50 = vector.load %arg10[%c0_30, %c0_31] : memref<1x64xf32, #tpu.memory_space<vmem>>, vector<1x64xf32>
    %51 = vector.broadcast %50 : vector<1x64xf32> to vector<128x64xf32>
    %52 = arith.addf %49, %51 : vector<128x64xf32>
    %c0_32 = arith.constant 0 : index
    %c0_33 = arith.constant 0 : index
    %53 = vector.load %arg11[%c0_32, %c0_33] : memref<1x64xf32, #tpu.memory_space<vmem>>, vector<1x64xf32>
    %c0_34 = arith.constant 0 : index
    %c0_35 = arith.constant 0 : index
    %54 = vector.load %arg12[%c0_34, %c0_35] : memref<1x64xf32, #tpu.memory_space<vmem>>, vector<1x64xf32>
    %cst_36 = arith.constant dense<0.000000e+00> : vector<64xf32>
    %55 = vector.multi_reduction <add>, %52, %cst_36 [0] : vector<128x64xf32> to vector<64xf32>
    %56 = vector.shape_cast %55 : vector<64xf32> to vector<1x64xf32>
    %cst_37 = arith.constant 7.812500e-03 : f32
    %57 = vector.broadcast %cst_37 : f32 to vector<1x64xf32>
    %58 = arith.mulf %56, %57 : vector<1x64xf32>
    %59 = vector.broadcast %58 : vector<1x64xf32> to vector<128x64xf32>
    %60 = arith.subf %52, %59 : vector<128x64xf32>
    %61 = arith.mulf %60, %60 : vector<128x64xf32>
    %cst_38 = arith.constant dense<0.000000e+00> : vector<64xf32>
    %62 = vector.multi_reduction <add>, %61, %cst_38 [0] : vector<128x64xf32> to vector<64xf32>
    %63 = vector.shape_cast %62 : vector<64xf32> to vector<1x64xf32>
    %cst_39 = arith.constant 7.812500e-03 : f32
    %64 = vector.broadcast %cst_39 : f32 to vector<1x64xf32>
    %65 = arith.mulf %63, %64 : vector<1x64xf32>
    %cst_40 = arith.constant 9.99999974E-6 : f32
    %66 = vector.broadcast %cst_40 : f32 to vector<1x64xf32>
    %67 = arith.addf %65, %66 : vector<1x64xf32>
    %68 = math.rsqrt %67 : vector<1x64xf32>
    %69 = arith.mulf %53, %68 : vector<1x64xf32>
    %70 = arith.mulf %58, %69 : vector<1x64xf32>
    %71 = arith.subf %54, %70 : vector<1x64xf32>
    %72 = vector.broadcast %69 : vector<1x64xf32> to vector<128x64xf32>
    %73 = arith.mulf %52, %72 : vector<128x64xf32>
    %74 = vector.broadcast %71 : vector<1x64xf32> to vector<128x64xf32>
    %75 = arith.addf %73, %74 : vector<128x64xf32>
    %cst_41 = arith.constant 0.000000e+00 : f32
    %76 = vector.broadcast %cst_41 : f32 to vector<128x64xf32>
    %77 = arith.maximumf %75, %76 : vector<128x64xf32>
    %78 = arith.truncf %77 : vector<128x64xf32> to vector<128x64xbf16>
    %c0_42 = arith.constant 0 : index
    %c0_43 = arith.constant 0 : index
    %79 = vector.load %arg13[%c0_42, %c0_43] : memref<64x64xbf16, #tpu.memory_space<vmem>>, vector<64x64xbf16>
    %cst_44 = arith.constant dense<0.000000e+00> : vector<128x64xf32>
    %80 = tpu.matmul %78, %79, %cst_44 {dimension_numbers = #tpu.dot_dimension_numbers<[1], [0], [0], [1], [0, 0, 1, 1], [], []>} : vector<128x64xbf16>, vector<64x64xbf16>, vector<128x64xf32> -> vector<128x64xf32>
    %c0_45 = arith.constant 0 : index
    %c0_46 = arith.constant 0 : index
    %81 = vector.load %arg14[%c0_45, %c0_46] : memref<1x64xf32, #tpu.memory_space<vmem>>, vector<1x64xf32>
    %82 = vector.broadcast %81 : vector<1x64xf32> to vector<128x64xf32>
    %83 = arith.addf %80, %82 : vector<128x64xf32>
    %cst_47 = arith.constant 0.000000e+00 : f32
    %84 = vector.broadcast %cst_47 : f32 to vector<128x64xf32>
    %85 = arith.maximumf %83, %84 : vector<128x64xf32>
    %86 = arith.truncf %85 : vector<128x64xf32> to vector<128x64xbf16>
    %c0_48 = arith.constant 0 : index
    %c0_49 = arith.constant 0 : index
    %87 = vector.load %arg15[%c0_48, %c0_49] : memref<64x128xbf16, #tpu.memory_space<vmem>>, vector<64x128xbf16>
    %cst_50 = arith.constant dense<0.000000e+00> : vector<128x128xf32>
    %88 = tpu.matmul %86, %87, %cst_50 {dimension_numbers = #tpu.dot_dimension_numbers<[1], [0], [0], [1], [0, 0, 1, 1], [], []>} : vector<128x64xbf16>, vector<64x128xbf16>, vector<128x128xf32> -> vector<128x128xf32>
    %c0_51 = arith.constant 0 : index
    %c0_52 = arith.constant 0 : index
    %89 = vector.load %arg16[%c0_51, %c0_52] : memref<1x128xf32, #tpu.memory_space<vmem>>, vector<1x128xf32>
    %90 = vector.broadcast %89 : vector<1x128xf32> to vector<128x128xf32>
    %91 = arith.addf %88, %90 : vector<128x128xf32>
    %cst_53 = arith.constant dense<0xFF800000> : vector<128xf32>
    %92 = vector.multi_reduction <maximumf>, %91, %cst_53 [1] : vector<128x128xf32> to vector<128xf32>
    %93 = vector.shape_cast %92 : vector<128xf32> to vector<128x1xf32>
    %94 = vector.broadcast %93 : vector<128x1xf32> to vector<128x128xf32>
    %95 = arith.subf %91, %94 : vector<128x128xf32>
    %96 = math.exp %95 : vector<128x128xf32>
    %cst_54 = arith.constant dense<0.000000e+00> : vector<128xf32>
    %97 = vector.multi_reduction <add>, %96, %cst_54 [1] : vector<128x128xf32> to vector<128xf32>
    %98 = vector.shape_cast %97 : vector<128xf32> to vector<128x1xf32>
    %99 = math.log %98 : vector<128x1xf32>
    %100 = vector.broadcast %99 : vector<128x1xf32> to vector<128x128xf32>
    %101 = arith.subf %95, %100 : vector<128x128xf32>
    %c0_55 = arith.constant 0 : index
    %c0_56 = arith.constant 0 : index
    %102 = vector.load %arg17[%c0_55, %c0_56] : memref<128x128xf32, #tpu.memory_space<vmem>>, vector<128x128xf32>
    tpu.vector_store %arg17[%c0_55, %c0_56], %101 {strides = array<i32>} : memref<128x128xf32, #tpu.memory_space<vmem>>, vector<128x128xf32>,
    return
  }
}

</mosaic_0001>

<llo_original>
// kernel: net_forward.1
$region0: #{net_forward.1}
  #allocation0 [shape = 'u32[]', space=smem, size = 0x4, offset = 0x4, fixed_abs, tag = 'smem constant byte address 0x4 - core index']
  #allocation1 [shape = 'u32[144,128]{1,0:T(1,128)}', space=vmem, size = 0x12000, scoped, tag = 'internal scratch']
  %s0 = inlined_call_operand.vmem [shape: bf16[128,784], index: 0, kind: input, shape index: {}]
  %s1 = inlined_call_operand.vmem [shape: bf16[784,512], index: 1, kind: input, shape index: {}]
  %s2 = inlined_call_operand.vmem [shape: f32[1,512], index: 2, kind: input, shape index: {}]
  %s3 = inlined_call_operand.hbm [shape: f32[1,512], index: 3, kind: input, shape index: {}]
  %s4 = inlined_call_operand.hbm [shape: f32[1,512], index: 4, kind: input, shape index: {}]
  %s5 = inlined_call_operand.hbm [shape: bf16[512,512], index: 5, kind: input, shape index: {}]
  %s6 = inlined_call_operand.vmem [shape: f32[1,512], index: 6, kind: input, shape index: {}]
  %s7 = inlined_call_operand.vmem [shape: bf16[512,256], index: 7, kind: input, shape index: {}]
  %s8 = inlined_call_operand.vmem [shape: f32[1,256], index: 8, kind: input, shape index: {}]
  %s9 = inlined_call_operand.vmem [shape: bf16[256,64], index: 9, kind: input, shape index: {}]
  %s10 = inlined_call_operand.vmem [shape: f32[1,64], index: 10, kind: input, shape index: {}]
  %s11 = inlined_call_operand.hbm [shape: f32[1,64], index: 11, kind: input, shape index: {}]
  %s12 = inlined_call_operand.hbm [shape: f32[1,64], index: 12, kind: input, shape index: {}]
  %s13 = inlined_call_operand.vmem [shape: bf16[64,64], index: 13, kind: input, shape index: {}]
  %s14 = inlined_call_operand.hbm [shape: f32[1,64], index: 14, kind: input, shape index: {}]
  %s15 = inlined_call_operand.vmem [shape: bf16[64,128], index: 15, kind: input, shape index: {}]
  %s16 = inlined_call_operand.hbm [shape: f32[1,128], index: 16, kind: input, shape index: {}]
  %s17 = inlined_call_operand.vmem [shape: f32[128,128], index: 17, kind: output, shape index: {}]
  %s18 = sld [smem:[#allocation0]]
  $region106: #{net_forward.1} parent=0
    _
  %s20 = ssub.s32 1, %s18
  %s21 = scalar_select 0, %s20, %s18
  $region1: #{net_forward.1} parent=0
    #allocation2 [shape = 'u8[2048]{0}', space=vmem, size = 0x800, scoped, tag = 'input window, operand 3, single buffered']
    #allocation3 [shape = 's32[1]{0}', space=sflag, size = 0x4, scoped, tag = 'scoped memory for net_forward.1']
    #allocation4 [shape = 'u8[2048]{0}', space=vmem, size = 0x800, scoped, tag = 'input window, operand 4, single buffered']
    #allocation5 [shape = 's32[1]{0}', space=sflag, size = 0x4, scoped, tag = 'scoped memory for net_forward.1']
    #allocation6 [shape = 'u8[524288]{0}', space=vmem, size = 0x80000, scoped, tag = 'input window, operand 5, single buffered']
    #allocation7 [shape = 'u8[512]{0}', space=vmem, size = 0x400, scoped, tag = 'input window, operand 11, single buffered']
    #allocation8 [shape = 's32[1]{0}', space=sflag, size = 0x4, scoped, tag = 'scoped memory for net_forward.1']
    #allocation9 [shape = 'u8[512]{0}', space=vmem, size = 0x400, scoped, tag = 'input window, operand 12, single buffered']
    #allocation10 [shape = 'u8[512]{0}', space=vmem, size = 0x400, scoped, tag = 'input window, operand 14, single buffered']
    #allocation11 [shape = 's32[1]{0}', space=sflag, size = 0x4, scoped, tag = 'scoped memory for net_forward.1']
    #allocation12 [shape = 'u8[512]{0}', space=vmem, size = 0x400, scoped, tag = 'input window, operand 16, single buffered']
    %22 = vsyncpa [#allocation3], 0
    %23 = vsyncpa [#allocation5], 0
    %24 = vsyncpa [#allocation8], 0
    %25 = vsyncpa [#allocation11], 0
    // Predicated region
    $region2: #{net_forward.1} parent=1 // pred_check
      _
    $region3: #{net_forward.1} parent=1 // pred_check_branch
      %27 = sbr.rel (0) target = $region5
    $region4: #{net_forward.1} parent=1 // pred_region
      _
    $region5: #{net_forward.1} parent=1 // pred_fallthru
      _
    // Predicated region
    $region6: #{net_forward.1} parent=1 // pred_check
      _
    $region7: #{net_forward.1} parent=1 // pred_check_branch
      %29 = sbr.rel (0) target = $region9
    $region8: #{net_forward.1} parent=1 // pred_region
      _
    $region9: #{net_forward.1} parent=1 // pred_fallthru
      _
    // Predicated region
    $region10: #{net_forward.1} parent=1 // pred_check
      _
    $region11: #{net_forward.1} parent=1 // pred_check_branch
      %31 = sbr.rel (0) target = $region13
    $region12: #{net_forward.1} parent=1 // pred_region
      _
    $region13: #{net_forward.1} parent=1 // pred_fallthru
      _
    // Predicated region
    $region14: #{net_forward.1} parent=1 // pred_check
      _
    $region15: #{net_forward.1} parent=1 // pred_check_branch
      %33 = sbr.rel (0) target = $region17
    $region16: #{net_forward.1} parent=1 // pred_region
      %s35 = ssub.s32 64, 64
      %36 = vsyncadd [#allocation3], %s35
      %s38 = sshll.u32 [#allocation2], 4
      %s39 = int_to_ptr.vmem [resolvable:$true] %s38
      %41 = dma.hbm_to_vmem [thread:$0]  %s3, 64, %s39, [#allocation3]
    $region17: #{net_forward.1} parent=1 // pred_fallthru
      _
    // Predicated region
    $region18: #{net_forward.1} parent=1 // pred_check
      _
    $region19: #{net_forward.1} parent=1 // pred_check_branch
      %43 = sbr.rel (0) target = $region21
    $region20: #{net_forward.1} parent=1 // pred_region
      %s45 = ssub.s32 64, 64
      %46 = vsyncadd [#allocation5], %s45
      %s48 = sshll.u32 [#allocation4], 4
      %s49 = int_to_ptr.vmem [resolvable:$true] %s48
      %51 = dma.hbm_to_vmem [thread:$0]  %s4, 64, %s49, [#allocation5]
    $region21: #{net_forward.1} parent=1 // pred_fallthru
      _
    // Predicated region
    $region22: #{net_forward.1} parent=1 // pred_check
      _
    $region23: #{net_forward.1} parent=1 // pred_check_branch
      %53 = sbr.rel (0) target = $region25
    $region24: #{net_forward.1} parent=1 // pred_region
      %s55 = ssub.s32 16384, 16384
      %56 = vsyncadd [#allocation5], %s55
      %s57 = sshll.u32 [#allocation6], 4
      %s58 = int_to_ptr.vmem [resolvable:$true] %s57
      %63 = dma.hbm_to_vmem [thread:$0]  %s5, 16384, %s58, [#allocation5], 256, 256, 16
    $region25: #{net_forward.1} parent=1 // pred_fallthru
      _
    // Predicated region
    $region26: #{net_forward.1} parent=1 // pred_check
      _
    $region27: #{net_forward.1} parent=1 // pred_check_branch
      %65 = sbr.rel (0) target = $region29
    $region28: #{net_forward.1} parent=1 // pred_region
      _
    $region29: #{net_forward.1} parent=1 // pred_fallthru
      _
    // Predicated region
    $region30: #{net_forward.1} parent=1 // pred_check
      _
    $region31: #{net_forward.1} parent=1 // pred_check_branch
      %67 = sbr.rel (0) target = $region33
    $region32: #{net_forward.1} parent=1 // pred_region
      _
    $region33: #{net_forward.1} parent=1 // pred_fallthru
      _
    // Predicated region
    $region34: #{net_forward.1} parent=1 // pred_check
      _
    $region35: #{net_forward.1} parent=1 // pred_check_branch
      %69 = sbr.rel (0) target = $region37
    $region36: #{net_forward.1} parent=1 // pred_region
      _
    $region37: #{net_forward.1} parent=1 // pred_fallthru
      _
    // Predicated region
    $region38: #{net_forward.1} parent=1 // pred_check
      _
    $region39: #{net_forward.1} parent=1 // pred_check_branch
      %71 = sbr.rel (0) target = $region41
    $region40: #{net_forward.1} parent=1 // pred_region
      _
    $region41: #{net_forward.1} parent=1 // pred_fallthru
      _
    // Predicated region
    $region42: #{net_forward.1} parent=1 // pred_check
      _
    $region43: #{net_forward.1} parent=1 // pred_check_branch
      %73 = sbr.rel (0) target = $region45
    $region44: #{net_forward.1} parent=1 // pred_region
      _
    $region45: #{net_forward.1} parent=1 // pred_fallthru
      _
    // Predicated region
    $region46: #{net_forward.1} parent=1 // pred_check
      _
    $region47: #{net_forward.1} parent=1 // pred_check_branch
      %75 = sbr.rel (0) target = $region49
    $region48: #{net_forward.1} parent=1 // pred_region
      %s77 = ssub.s32 16, 16
      %78 = vsyncadd [#allocation8], %s77
      %s80 = sshll.u32 [#allocation7], 4
      %s81 = int_to_ptr.vmem [resolvable:$true] %s80
      %83 = dma.hbm_to_vmem [thread:$0]  %s11, 16, %s81, [#allocation8]
    $region49: #{net_forward.1} parent=1 // pred_fallthru
      _
    // Predicated region
    $region50: #{net_forward.1} parent=1 // pred_check
      _
    $region51: #{net_forward.1} parent=1 // pred_check_branch
      %85 = sbr.rel (0) target = $region53
    $region52: #{net_forward.1} parent=1 // pred_region
      %s87 = ssub.s32 16, 16
      %88 = vsyncadd [#allocation8], %s87
      %s90 = sshll.u32 [#allocation9], 4
      %s91 = int_to_ptr.vmem [resolvable:$true] %s90
      %93 = dma.hbm_to_vmem [thread:$0]  %s12, 16, %s91, [#allocation8]
    $region53: #{net_forward.1} parent=1 // pred_fallthru
      _
    // Predicated region
    $region54: #{net_forward.1} parent=1 // pred_check
      _
    $region55: #{net_forward.1} parent=1 // pred_check_branch
      %95 = sbr.rel (0) target = $region57
    $region56: #{net_forward.1} parent=1 // pred_region
      _
    $region57: #{net_forward.1} parent=1 // pred_fallthru
      _
    // Predicated region
    $region58: #{net_forward.1} parent=1 // pred_check
      _
    $region59: #{net_forward.1} parent=1 // pred_check_branch
      %97 = sbr.rel (0) target = $region61
    $region60: #{net_forward.1} parent=1 // pred_region
      %s99 = ssub.s32 16, 16
      %100 = vsyncadd [#allocation11], %s99
      %s102 = sshll.u32 [#allocation10], 4
      %s103 = int_to_ptr.vmem [resolvable:$true] %s102
      %105 = dma.hbm_to_vmem [thread:$0]  %s14, 16, %s103, [#allocation11]
    $region61: #{net_forward.1} parent=1 // pred_fallthru
      _
    // Predicated region
    $region62: #{net_forward.1} parent=1 // pred_check
      _
    $region63: #{net_forward.1} parent=1 // pred_check_branch
      %107 = sbr.rel (0) target = $region65
    $region64: #{net_forward.1} parent=1 // pred_region
      _
    $region65: #{net_forward.1} parent=1 // pred_fallthru
      _
    // Predicated region
    $region66: #{net_forward.1} parent=1 // pred_check
      _
    $region67: #{net_forward.1} parent=1 // pred_check_branch
      %109 = sbr.rel (0) target = $region69
    $region68: #{net_forward.1} parent=1 // pred_region
      %s111 = ssub.s32 16, 16
      %112 = vsyncadd [#allocation11], %s111
      %s114 = sshll.u32 [#allocation12], 4
      %s115 = int_to_ptr.vmem [resolvable:$true] %s114
      %117 = dma.hbm_to_vmem [thread:$0]  %s16, 16, %s115, [#allocation11]
    $region69: #{net_forward.1} parent=1 // pred_fallthru
      _
    // Predicated region
    $region70: #{net_forward.1} parent=1 // pred_check
      _
    $region71: #{net_forward.1} parent=1 // pred_check_branch
      %119 = sbr.rel (0) target = $region73
    $region72: #{net_forward.1} parent=1 // pred_region
      %120 = dma.done [#allocation3], 64
    $region73: #{net_forward.1} parent=1 // pred_fallthru
      _
    // Predicated region
    $region74: #{net_forward.1} parent=1 // pred_check
      _
    $region75: #{net_forward.1} parent=1 // pred_check_branch
      %122 = sbr.rel (0) target = $region77
    $region76: #{net_forward.1} parent=1 // pred_region
      %123 = dma.done [#allocation5], 64
    $region77: #{net_forward.1} parent=1 // pred_fallthru
      _
    // Predicated region
    $region78: #{net_forward.1} parent=1 // pred_check
      _
    $region79: #{net_forward.1} parent=1 // pred_check_branch
      %125 = sbr.rel (0) target = $region81
    $region80: #{net_forward.1} parent=1 // pred_region
      %126 = dma.done [#allocation5], 16384
    $region81: #{net_forward.1} parent=1 // pred_fallthru
      _
    // Predicated region
    $region82: #{net_forward.1} parent=1 // pred_check
      _
    $region83: #{net_forward.1} parent=1 // pred_check_branch
      %128 = sbr.rel (0) target = $region85
    $region84: #{net_forward.1} parent=1 // pred_region
      %129 = dma.done [#allocation8], 16
    $region85: #{net_forward.1} parent=1 // pred_fallthru
      _
    // Predicated region
    $region86: #{net_forward.1} parent=1 // pred_check
      _
    $region87: #{net_forward.1} parent=1 // pred_check_branch
      %131 = sbr.rel (0) target = $region89
    $region88: #{net_forward.1} parent=1 // pred_region
      %132 = dma.done [#allocation8], 16
    $region89: #{net_forward.1} parent=1 // pred_fallthru
      _
    // Predicated region
    $region90: #{net_forward.1} parent=1 // pred_check
      _
    $region91: #{net_forward.1} parent=1 // pred_check_branch
      %134 = sbr.rel (0) target = $region93
    $region92: #{net_forward.1} parent=1 // pred_region
      %135 = dma.done [#allocation11], 16
    $region93: #{net_forward.1} parent=1 // pred_fallthru
      _
    // Predicated region
    $region94: #{net_forward.1} parent=1 // pred_check
      _
    $region95: #{net_forward.1} parent=1 // pred_check_branch
      %137 = sbr.rel (0) target = $region97
    $region96: #{net_forward.1} parent=1 // pred_region
      %138 = dma.done [#allocation11], 16
    $region97: #{net_forward.1} parent=1 // pred_fallthru
      _
    %v140 = vld [vmem:[%s0] sm:$0xff]
    %v141 = vld [vmem:[%s0 + $0x8] sm:$0xff]
    %v142 = vld [vmem:[%s0 + $0x10] sm:$0xff]
    %v143 = vld [vmem:[%s0 + $0x18] sm:$0xf]
    %v144 = vld [vmem:[%s0 + $0x1c] sm:$0xff]
    %v145 = vld [vmem:[%s0 + $0x24] sm:$0xff]
    %v146 = vld [vmem:[%s0 + $0x2c] sm:$0xff]
    %v147 = vld [vmem:[%s0 + $0x34] sm:$0xf]
    %v148 = vld [vmem:[%s0 + $0x38] sm:$0xff]
    %v149 = vld [vmem:[%s0 + $0x40] sm:$0xff]
    %v150 = vld [vmem:[%s0 + $0x48] sm:$0xff]
    %v151 = vld [vmem:[%s0 + $0x50] sm:$0xf]
    %v152 = vld [vmem:[%s0 + $0x54] sm:$0xff]
    %v153 = vld [vmem:[%s0 + $0x5c] sm:$0xff]
    %v154 = vld [vmem:[%s0 + $0x64] sm:$0xff]
    %v155 = vld [vmem:[%s0 + $0x6c] sm:$0xf]
    %v156 = vld [vmem:[%s0 + $0x70] sm:$0xff]
    %v157 = vld [vmem:[%s0 + $0x78] sm:$0xff]
    %v158 = vld [vmem:[%s0 + $0x80] sm:$0xff]
    %v159 = vld [vmem:[%s0 + $0x88] sm:$0xf]
    %v160 = vld [vmem:[%s0 + $0x8c] sm:$0xff]
    %v161 = vld [vmem:[%s0 + $0x94] sm:$0xff]
    %v162 = vld [vmem:[%s0 + $0x9c] sm:$0xff]
    %v163 = vld [vmem:[%s0 + $0xa4] sm:$0xf]
    %v164 = vld [vmem:[%s0 + $0xa8] sm:$0xff]
    %v165 = vld [vmem:[%s0 + $0xb0] sm:$0xff]
    %v166 = vld [vmem:[%s0 + $0xb8] sm:$0xff]
    %v167 = vld [vmem:[%s0 + $0xc0] sm:$0xf]
    %v168 = vld [vmem:[%s0 + $0xc4] sm:$0xff]
    %v169 = vld [vmem:[%s0 + $0xcc] sm:$0xff]
    %v170 = vld [vmem:[%s0 + $0xd4] sm:$0xff]
    %v171 = vld [vmem:[%s0 + $0xdc] sm:$0xf]
    %v172 = vld [vmem:[%s0 + $0xe0] sm:$0xff]
    %v173 = vld [vmem:[%s0 + $0xe8] sm:$0xff]
    %v174 = vld [vmem:[%s0 + $0xf0] sm:$0xff]
    %v175 = vld [vmem:[%s0 + $0xf8] sm:$0xf]
    %v176 = vld [vmem:[%s0 + $0xfc] sm:$0xff]
    %v177 = vld [vmem:[%s0 + $0x104] sm:$0xff]
    %v178 = vld [vmem:[%s0 + $0x10c] sm:$0xff]
    %v179 = vld [vmem:[%s0 + $0x114] sm:$0xf]
    %v180 = vld [vmem:[%s0 + $0x118] sm:$0xff]
    %v181 = vld [vmem:[%s0 + $0x120] sm:$0xff]
    %v182 = vld [vmem:[%s0 + $0x128] sm:$0xff]
    %v183 = vld [vmem:[%s0 + $0x130] sm:$0xf]
    %v184 = vld [vmem:[%s0 + $0x134] sm:$0xff]
    %v185 = vld [vmem:[%s0 + $0x13c] sm:$0xff]
    %v186 = vld [vmem:[%s0 + $0x144] sm:$0xff]
    %v187 = vld [vmem:[%s0 + $0x14c] sm:$0xf]
    %v188 = vld [vmem:[%s0 + $0x150] sm:$0xff]
    %v189 = vld [vmem:[%s0 + $0x158] sm:$0xff]
    %v190 = vld [vmem:[%s0 + $0x160] sm:$0xff]
    %v191 = vld [vmem:[%s0 + $0x168] sm:$0xf]
    %v192 = vld [vmem:[%s0 + $0x16c] sm:$0xff]
    %v193 = vld [vmem:[%s0 + $0x174] sm:$0xff]
    %v194 = vld [vmem:[%s0 + $0x17c] sm:$0xff]
    %v195 = vld [vmem:[%s0 + $0x184] sm:$0xf]
    %v196 = vld [vmem:[%s0 + $0x188] sm:$0xff]
    %v197 = vld [vmem:[%s0 + $0x190] sm:$0xff]
    %v198 = vld [vmem:[%s0 + $0x198] sm:$0xff]
    %v199 = vld [vmem:[%s0 + $0x1a0] sm:$0xf]
    %v200 = vld [vmem:[%s0 + $0x1a4] sm:$0xff]
    %v201 = vld [vmem:[%s0 + $0x1ac] sm:$0xff]
    %v202 = vld [vmem:[%s0 + $0x1b4] sm:$0xff]
    %v203 = vld [vmem:[%s0 + $0x1bc] sm:$0xf]
    %v204 = vld [vmem:[%s1] sm:$0xff]
    %v205 = vld [vmem:[%s1 + $0x8] sm:$0xff]
    %v206 = vld [vmem:[%s1 + $0x10] sm:$0xff]
    %v207 = vld [vmem:[%s1 + $0x18] sm:$0xff]
    %v208 = vld [vmem:[%s1 + $0x20] sm:$0xff]
    %v209 = vld [vmem:[%s1 + $0x28] sm:$0xff]
    %v210 = vld [vmem:[%s1 + $0x30] sm:$0xff]
    %v211 = vld [vmem:[%s1 + $0x38] sm:$0xff]
    %v212 = vld [vmem:[%s1 + $0x40] sm:$0xff]
    %v213 = vld [vmem:[%s1 + $0x48] sm:$0xff]
    %v214 = vld [vmem:[%s1 + $0x50] sm:$0xff]
    %v215 = vld [vmem:[%s1 + $0x58] sm:$0xff]
    %v216 = vld [vmem:[%s1 + $0x60] sm:$0xff]
    %v217 = vld [vmem:[%s1 + $0x68] sm:$0xff]
    %v218 = vld [vmem:[%s1 + $0x70] sm:$0xff]
    %v219 = vld [vmem:[%s1 + $0x78] sm:$0xff]
    %v220 = vld [vmem:[%s1 + $0x80] sm:$0xff]
    %v221 = vld [vmem:[%s1 + $0x88] sm:$0xff]
    %v222 = vld [vmem:[%s1 + $0x90] sm:$0xff]
    %v223 = vld [vmem:[%s1 + $0x98] sm:$0xff]
    %v224 = vld [vmem:[%s1 + $0xa0] sm:$0xff]
    %v225 = vld [vmem:[%s1 + $0xa8] sm:$0xff]
    %v226 = vld [vmem:[%s1 + $0xb0] sm:$0xff]
    %v227 = vld [vmem:[%s1 + $0xb8] sm:$0xff]
    %v228 = vld [vmem:[%s1 + $0xc0] sm:$0xff]
    %v229 = vld [vmem:[%s1 + $0xc8] sm:$0xff]
    %v230 = vld [vmem:[%s1 + $0xd0] sm:$0xff]
    %v231 = vld [vmem:[%s1 + $0xd8] sm:$0xff]
    %v232 = vld [vmem:[%s1 + $0xe0] sm:$0xff]
    %v233 = vld [vmem:[%s1 + $0xe8] sm:$0xff]
    %v234 = vld [vmem:[%s1 + $0xf0] sm:$0xff]
    %v235 = vld [vmem:[%s1 + $0xf8] sm:$0xff]
    %v236 = vld [vmem:[%s1 + $0x100] sm:$0xff]
    %v237 = vld [vmem:[%s1 + $0x108] sm:$0xff]
    %v238 = vld [vmem:[%s1 + $0x110] sm:$0xff]
    %v239 = vld [vmem:[%s1 + $0x118] sm:$0xff]
    %v240 = vld [vmem:[%s1 + $0x120] sm:$0xff]
    %v241 = vld [vmem:[%s1 + $0x128] sm:$0xff]
    %v242 = vld [vmem:[%s1 + $0x130] sm:$0xff]
    %v243 = vld [vmem:[%s1 + $0x138] sm:$0xff]
    %v244 = vld [vmem:[%s1 + $0x140] sm:$0xff]
    %v245 = vld [vmem:[%s1 + $0x148] sm:$0xff]
    %v246 = vld [vmem:[%s1 + $0x150] sm:$0xff]
    %v247 = vld [vmem:[%s1 + $0x158] sm:$0xff]
    %v248 = vld [vmem:[%s1 + $0x160] sm:$0xff]
    %v249 = vld [vmem:[%s1 + $0x168] sm:$0xff]
    %v250 = vld [vmem:[%s1 + $0x170] sm:$0xff]
    %v251 = vld [vmem:[%s1 + $0x178] sm:$0xff]
    %v252 = vld [vmem:[%s1 + $0x180] sm:$0xff]
    %v253 = vld [vmem:[%s1 + $0x188] sm:$0xff]
    %v254 = vld [vmem:[%s1 + $0x190] sm:$0xff]
    %v255 = vld [vmem:[%s1 + $0x198] sm:$0xff]
    %v256 = vld [vmem:[%s1 + $0x1a0] sm:$0xff]
    %v257 = vld [vmem:[%s1 + $0x1a8] sm:$0xff]
    %v258 = vld [vmem:[%s1 + $0x1b0] sm:$0xff]
    %v259 = vld [vmem:[%s1 + $0x1b8] sm:$0xff]
    %v260 = vld [vmem:[%s1 + $0x1c0] sm:$0xff]
    %v261 = vld [vmem:[%s1 + $0x1c8] sm:$0xff]
    %v262 = vld [vmem:[%s1 + $0x1d0] sm:$0xff]
    %v263 = vld [vmem:[%s1 + $0x1d8] sm:$0xff]
    %v264 = vld [vmem:[%s1 + $0x1e0] sm:$0xff]
    %v265 = vld [vmem:[%s1 + $0x1e8] sm:$0xff]
    %v266 = vld [vmem:[%s1 + $0x1f0] sm:$0xff]
    %v267 = vld [vmem:[%s1 + $0x1f8] sm:$0xff]
    %v268 = vld [vmem:[%s1 + $0x200] sm:$0xff]
    %v269 = vld [vmem:[%s1 + $0x208] sm:$0xff]
    %v270 = vld [vmem:[%s1 + $0x210] sm:$0xff]
    %v271 = vld [vmem:[%s1 + $0x218] sm:$0xff]
    %v272 = vld [vmem:[%s1 + $0x220] sm:$0xff]
    %v273 = vld [vmem:[%s1 + $0x228] sm:$0xff]
    %v274 = vld [vmem:[%s1 + $0x230] sm:$0xff]
    %v275 = vld [vmem:[%s1 + $0x238] sm:$0xff]
    %v276 = vld [vmem:[%s1 + $0x240] sm:$0xff]
    %v277 = vld [vmem:[%s1 + $0x248] sm:$0xff]
    %v278 = vld [vmem:[%s1 + $0x250] sm:$0xff]
    %v279 = vld [vmem:[%s1 + $0x258] sm:$0xff]
    %v280 = vld [vmem:[%s1 + $0x260] sm:$0xff]
    %v281 = vld [vmem:[%s1 + $0x268] sm:$0xff]
    %v282 = vld [vmem:[%s1 + $0x270] sm:$0xff]
    %v283 = vld [vmem:[%s1 + $0x278] sm:$0xff]
    %v284 = vld [vmem:[%s1 + $0x280] sm:$0xff]
    %v285 = vld [vmem:[%s1 + $0x288] sm:$0xff]
    %v286 = vld [vmem:[%s1 + $0x290] sm:$0xff]
    %v287 = vld [vmem:[%s1 + $0x298] sm:$0xff]
    %v288 = vld [vmem:[%s1 + $0x2a0] sm:$0xff]
    %v289 = vld [vmem:[%s1 + $0x2a8] sm:$0xff]
    %v290 = vld [vmem:[%s1 + $0x2b0] sm:$0xff]
    %v291 = vld [vmem:[%s1 + $0x2b8] sm:$0xff]
    %v292 = vld [vmem:[%s1 + $0x2c0] sm:$0xff]
    %v293 = vld [vmem:[%s1 + $0x2c8] sm:$0xff]
    %v294 = vld [vmem:[%s1 + $0x2d0] sm:$0xff]
    %v295 = vld [vmem:[%s1 + $0x2d8] sm:$0xff]
    %v296 = vld [vmem:[%s1 + $0x2e0] sm:$0xff]
    %v297 = vld [vmem:[%s1 + $0x2e8] sm:$0xff]
    %v298 = vld [vmem:[%s1 + $0x2f0] sm:$0xff]
    %v299 = vld [vmem:[%s1 + $0x2f8] sm:$0xff]
    %v300 = vld [vmem:[%s1 + $0x300] sm:$0xff]
    %v301 = vld [vmem:[%s1 + $0x308] sm:$0xff]
    %v302 = vld [vmem:[%s1 + $0x310] sm:$0xff]
    %v303 = vld [vmem:[%s1 + $0x318] sm:$0xff]
    %v304 = vld [vmem:[%s1 + $0x320] sm:$0xff]
    %v305 = vld [vmem:[%s1 + $0x328] sm:$0xff]
    %v306 = vld [vmem:[%s1 + $0x330] sm:$0xff]
    %v307 = vld [vmem:[%s1 + $0x338] sm:$0xff]
    %v308 = vld [vmem:[%s1 + $0x340] sm:$0xff]
    %v309 = vld [vmem:[%s1 + $0x348] sm:$0xff]
    %v310 = vld [vmem:[%s1 + $0x350] sm:$0xff]
    %v311 = vld [vmem:[%s1 + $0x358] sm:$0xff]
    %v312 = vld [vmem:[%s1 + $0x360] sm:$0xff]
    %v313 = vld [vmem:[%s1 + $0x368] sm:$0xff]
    %v314 = vld [vmem:[%s1 + $0x370] sm:$0xff]
    %v315 = vld [vmem:[%s1 + $0x378] sm:$0xff]
    %v316 = vld [vmem:[%s1 + $0x380] sm:$0xff]
    %v317 = vld [vmem:[%s1 + $0x388] sm:$0xff]
    %v318 = vld [vmem:[%s1 + $0x390] sm:$0xff]
    %v319 = vld [vmem:[%s1 + $0x398] sm:$0xff]
    %v320 = vld [vmem:[%s1 + $0x3a0] sm:$0xff]
    %v321 = vld [vmem:[%s1 + $0x3a8] sm:$0xff]
    %v322 = vld [vmem:[%s1 + $0x3b0] sm:$0xff]
    %v323 = vld [vmem:[%s1 + $0x3b8] sm:$0xff]
    %v324 = vld [vmem:[%s1 + $0x3c0] sm:$0xff]
    %v325 = vld [vmem:[%s1 + $0x3c8] sm:$0xff]
    %v326 = vld [vmem:[%s1 + $0x3d0] sm:$0xff]
    %v327 = vld [vmem:[%s1 + $0x3d8] sm:$0xff]
    %v328 = vld [vmem:[%s1 + $0x3e0] sm:$0xff]
    %v329 = vld [vmem:[%s1 + $0x3e8] sm:$0xff]
    %v330 = vld [vmem:[%s1 + $0x3f0] sm:$0xff]
    %v331 = vld [vmem:[%s1 + $0x3f8] sm:$0xff]
    %v332 = vld [vmem:[%s1 + $0x400] sm:$0xff]
    %v333 = vld [vmem:[%s1 + $0x408] sm:$0xff]
    %v334 = vld [vmem:[%s1 + $0x410] sm:$0xff]
    %v335 = vld [vmem:[%s1 + $0x418] sm:$0xff]
    %v336 = vld [vmem:[%s1 + $0x420] sm:$0xff]
    %v337 = vld [vmem:[%s1 + $0x428] sm:$0xff]
    %v338 = vld [vmem:[%s1 + $0x430] sm:$0xff]
    %v339 = vld [vmem:[%s1 + $0x438] sm:$0xff]
    %v340 = vld [vmem:[%s1 + $0x440] sm:$0xff]
    %v341 = vld [vmem:[%s1 + $0x448] sm:$0xff]
    %v342 = vld [vmem:[%s1 + $0x450] sm:$0xff]
    %v343 = vld [vmem:[%s1 + $0x458] sm:$0xff]
    %v344 = vld [vmem:[%s1 + $0x460] sm:$0xff]
    %v345 = vld [vmem:[%s1 + $0x468] sm:$0xff]
    %v346 = vld [vmem:[%s1 + $0x470] sm:$0xff]
    %v347 = vld [vmem:[%s1 + $0x478] sm:$0xff]
    %v348 = vld [vmem:[%s1 + $0x480] sm:$0xff]
    %v349 = vld [vmem:[%s1 + $0x488] sm:$0xff]
    %v350 = vld [vmem:[%s1 + $0x490] sm:$0xff]
    %v351 = vld [vmem:[%s1 + $0x498] sm:$0xff]
    %v352 = vld [vmem:[%s1 + $0x4a0] sm:$0xff]
    %v353 = vld [vmem:[%s1 + $0x4a8] sm:$0xff]
    %v354 = vld [vmem:[%s1 + $0x4b0] sm:$0xff]
    %v355 = vld [vmem:[%s1 + $0x4b8] sm:$0xff]
    %v356 = vld [vmem:[%s1 + $0x4c0] sm:$0xff]
    %v357 = vld [vmem:[%s1 + $0x4c8] sm:$0xff]
    %v358 = vld [vmem:[%s1 + $0x4d0] sm:$0xff]
    %v359 = vld [vmem:[%s1 + $0x4d8] sm:$0xff]
    %v360 = vld [vmem:[%s1 + $0x4e0] sm:$0xff]
    %v361 = vld [vmem:[%s1 + $0x4e8] sm:$0xff]
    %v362 = vld [vmem:[%s1 + $0x4f0] sm:$0xff]
    %v363 = vld [vmem:[%s1 + $0x4f8] sm:$0xff]
    %v364 = vld [vmem:[%s1 + $0x500] sm:$0xff]
    %v365 = vld [vmem:[%s1 + $0x508] sm:$0xff]
    %v366 = vld [vmem:[%s1 + $0x510] sm:$0xff]
    %v367 = vld [vmem:[%s1 + $0x518] sm:$0xff]
    %v368 = vld [vmem:[%s1 + $0x520] sm:$0xff]
    %v369 = vld [vmem:[%s1 + $0x528] sm:$0xff]
    %v370 = vld [vmem:[%s1 + $0x530] sm:$0xff]
    %v371 = vld [vmem:[%s1 + $0x538] sm:$0xff]
    %v372 = vld [vmem:[%s1 + $0x540] sm:$0xff]
    %v373 = vld [vmem:[%s1 + $0x548] sm:$0xff]
    %v374 = vld [vmem:[%s1 + $0x550] sm:$0xff]
    %v375 = vld [vmem:[%s1 + $0x558] sm:$0xff]
    %v376 = vld [vmem:[%s1 + $0x560] sm:$0xff]
    %v377 = vld [vmem:[%s1 + $0x568] sm:$0xff]
    %v378 = vld [vmem:[%s1 + $0x570] sm:$0xff]
    %v379 = vld [vmem:[%s1 + $0x578] sm:$0xff]
    %v380 = vld [vmem:[%s1 + $0x580] sm:$0xff]
    %v381 = vld [vmem:[%s1 + $0x588] sm:$0xff]
    %v382 = vld [vmem:[%s1 + $0x590] sm:$0xff]
    %v383 = vld [vmem:[%s1 + $0x598] sm:$0xff]
    %v384 = vld [vmem:[%s1 + $0x5a0] sm:$0xff]
    %v385 = vld [vmem:[%s1 + $0x5a8] sm:$0xff]
    %v386 = vld [vmem:[%s1 + $0x5b0] sm:$0xff]
    %v387 = vld [vmem:[%s1 + $0x5b8] sm:$0xff]
    %v388 = vld [vmem:[%s1 + $0x5c0] sm:$0xff]
    %v389 = vld [vmem:[%s1 + $0x5c8] sm:$0xff]
    %v390 = vld [vmem:[%s1 + $0x5d0] sm:$0xff]
    %v391 = vld [vmem:[%s1 + $0x5d8] sm:$0xff]
    %v392 = vld [vmem:[%s1 + $0x5e0] sm:$0xff]
    %v393 = vld [vmem:[%s1 + $0x5e8] sm:$0xff]
    %v394 = vld [vmem:[%s1 + $0x5f0] sm:$0xff]
    %v395 = vld [vmem:[%s1 + $0x5f8] sm:$0xff]
    %v396 = vld [vmem:[%s1 + $0x600] sm:$0xff]
    %v397 = vld [vmem:[%s1 + $0x608] sm:$0xff]
    %v398 = vld [vmem:[%s1 + $0x610] sm:$0xff]
    %v399 = vld [vmem:[%s1 + $0x618] sm:$0xff]
    %v400 = vld [vmem:[%s2] sm:$0xf]
    %v402 = vlaneseq
    %v403 = vshrl.u32 %v402, 7
    %v404 = vsub.s32 0, %v403
    %v405 = vrot.slane %v400, %v404
    %v406 = vlaneseq
    %v407 = vshrl.u32 %v406, 7
    %v408 = vsub.s32 1, %v407
    %v409 = vrot.slane %v400, %v408
    %v410 = vlaneseq
    %v411 = vshrl.u32 %v410, 7
    %v412 = vsub.s32 2, %v411
    %v413 = vrot.slane %v400, %v412
    %v414 = vlaneseq
    %v415 = vshrl.u32 %v414, 7
    %v416 = vsub.s32 3, %v415
    %v417 = vrot.slane %v400, %v416
    %v486 = vunpack.c.l.b16 %v140
    %v487 = vunpack.c.h.b16 %v140
    %v488 = vunpack.c.l.b16 %v141
    %v489 = vunpack.c.h.b16 %v141
    %v490 = vunpack.c.l.b16 %v142
    %v491 = vunpack.c.h.b16 %v142
    %v492 = vunpack.c.l.b16 %v143
    %v493 = vunpack.c.l.b16 %v144
    %v494 = vunpack.c.h.b16 %v144
    %v495 = vunpack.c.l.b16 %v145
    %v496 = vunpack.c.h.b16 %v145
    %v497 = vunpack.c.l.b16 %v146
    %v498 = vunpack.c.h.b16 %v146
    %v499 = vunpack.c.l.b16 %v147
    %v500 = vunpack.c.l.b16 %v148
    %v501 = vunpack.c.h.b16 %v148
    %v502 = vunpack.c.l.b16 %v149
    %v503 = vunpack.c.h.b16 %v149
    %v504 = vunpack.c.l.b16 %v150
    %v505 = vunpack.c.h.b16 %v150
    %v506 = vunpack.c.l.b16 %v151
    %v507 = vunpack.c.l.b16 %v152
    %v508 = vunpack.c.h.b16 %v152
    %v509 = vunpack.c.l.b16 %v153
    %v510 = vunpack.c.h.b16 %v153
    %v511 = vunpack.c.l.b16 %v154
    %v512 = vunpack.c.h.b16 %v154
    %v513 = vunpack.c.l.b16 %v155
    %v514 = vunpack.c.l.b16 %v156
    %v515 = vunpack.c.h.b16 %v156
    %v516 = vunpack.c.l.b16 %v157
    %v517 = vunpack.c.h.b16 %v157
    %v518 = vunpack.c.l.b16 %v158
    %v519 = vunpack.c.h.b16 %v158
    %v520 = vunpack.c.l.b16 %v159
    %v521 = vunpack.c.l.b16 %v160
    %v522 = vunpack.c.h.b16 %v160
    %v523 = vunpack.c.l.b16 %v161
    %v524 = vunpack.c.h.b16 %v161
    %v525 = vunpack.c.l.b16 %v162
    %v526 = vunpack.c.h.b16 %v162
    %v527 = vunpack.c.l.b16 %v163
    %v528 = vunpack.c.l.b16 %v164
    %v529 = vunpack.c.h.b16 %v164
    %v530 = vunpack.c.l.b16 %v165
    %v531 = vunpack.c.h.b16 %v165
    %v532 = vunpack.c.l.b16 %v166
    %v533 = vunpack.c.h.b16 %v166
    %v534 = vunpack.c.l.b16 %v167
    %v535 = vunpack.c.l.b16 %v168
    %v536 = vunpack.c.h.b16 %v168
    %v537 = vunpack.c.l.b16 %v169
    %v538 = vunpack.c.h.b16 %v169
    %v539 = vunpack.c.l.b16 %v170
    %v540 = vunpack.c.h.b16 %v170
    %v541 = vunpack.c.l.b16 %v171
    %v542 = vunpack.c.l.b16 %v172
    %v543 = vunpack.c.h.b16 %v172
    %v544 = vunpack.c.l.b16 %v173
    %v545 = vunpack.c.h.b16 %v173
    %v546 = vunpack.c.l.b16 %v174
    %v547 = vunpack.c.h.b16 %v174
    %v548 = vunpack.c.l.b16 %v175
    %v549 = vunpack.c.l.b16 %v176
    %v550 = vunpack.c.h.b16 %v176
    %v551 = vunpack.c.l.b16 %v177
    %v552 = vunpack.c.h.b16 %v177
    %v553 = vunpack.c.l.b16 %v178
    %v554 = vunpack.c.h.b16 %v178
    %v555 = vunpack.c.l.b16 %v179
    %v556 = vunpack.c.l.b16 %v180
    %v557 = vunpack.c.h.b16 %v180
    %v558 = vunpack.c.l.b16 %v181
    %v559 = vunpack.c.h.b16 %v181
    %v560 = vunpack.c.l.b16 %v182
    %v561 = vunpack.c.h.b16 %v182
    %v562 = vunpack.c.l.b16 %v183
    %v563 = vunpack.c.l.b16 %v184
    %v564 = vunpack.c.h.b16 %v184
    %v565 = vunpack.c.l.b16 %v185
    %v566 = vunpack.c.h.b16 %v185
    %v567 = vunpack.c.l.b16 %v186
    %v568 = vunpack.c.h.b16 %v186
    %v569 = vunpack.c.l.b16 %v187
    %v570 = vunpack.c.l.b16 %v188
    %v571 = vunpack.c.h.b16 %v188
    %v572 = vunpack.c.l.b16 %v189
    %v573 = vunpack.c.h.b16 %v189
    %v574 = vunpack.c.l.b16 %v190
    %v575 = vunpack.c.h.b16 %v190
    %v576 = vunpack.c.l.b16 %v191
    %v577 = vunpack.c.l.b16 %v192
    %v578 = vunpack.c.h.b16 %v192
    %v579 = vunpack.c.l.b16 %v193
    %v580 = vunpack.c.h.b16 %v193
    %v581 = vunpack.c.l.b16 %v194
    %v582 = vunpack.c.h.b16 %v194
    %v583 = vunpack.c.l.b16 %v195
    %v584 = vunpack.c.l.b16 %v196
    %v585 = vunpack.c.h.b16 %v196
    %v586 = vunpack.c.l.b16 %v197
    %v587 = vunpack.c.h.b16 %v197
    %v588 = vunpack.c.l.b16 %v198
    %v589 = vunpack.c.h.b16 %v198
    %v590 = vunpack.c.l.b16 %v199
    %v591 = vunpack.c.l.b16 %v200
    %v592 = vunpack.c.h.b16 %v200
    %v593 = vunpack.c.l.b16 %v201
    %v594 = vunpack.c.h.b16 %v201
    %v595 = vunpack.c.l.b16 %v202
    %v596 = vunpack.c.h.b16 %v202
    %v597 = vunpack.c.l.b16 %v203
    %v598 = vpack.c.b16 %v493, %v486
    %v599 = vpack.c.b16 %v494, %v487
    %v600 = vpack.c.b16 %v495, %v488
    %v601 = vpack.c.b16 %v496, %v489
    %v602 = vpack.c.b16 %v497, %v490
    %v603 = vpack.c.b16 %v498, %v491
    %v604 = vpack.c.b16 %v499, %v492
    %v605 = vpack.c.b16 %v507, %v500
    %v606 = vpack.c.b16 %v508, %v501
    %v607 = vpack.c.b16 %v509, %v502
    %v608 = vpack.c.b16 %v510, %v503
    %v609 = vpack.c.b16 %v511, %v504
    %v610 = vpack.c.b16 %v512, %v505
    %v611 = vpack.c.b16 %v513, %v506
    %v612 = vpack.c.b16 %v521, %v514
    %v613 = vpack.c.b16 %v522, %v515
    %v614 = vpack.c.b16 %v523, %v516
    %v615 = vpack.c.b16 %v524, %v517
    %v616 = vpack.c.b16 %v525, %v518
    %v617 = vpack.c.b16 %v526, %v519
    %v618 = vpack.c.b16 %v527, %v520
    %v619 = vpack.c.b16 %v535, %v528
    %v620 = vpack.c.b16 %v536, %v529
    %v621 = vpack.c.b16 %v537, %v530
    %v622 = vpack.c.b16 %v538, %v531
    %v623 = vpack.c.b16 %v539, %v532
    %v624 = vpack.c.b16 %v540, %v533
    %v625 = vpack.c.b16 %v541, %v534
    %v626 = vpack.c.b16 %v549, %v542
    %v627 = vpack.c.b16 %v550, %v543
    %v628 = vpack.c.b16 %v551, %v544
    %v629 = vpack.c.b16 %v552, %v545
    %v630 = vpack.c.b16 %v553, %v546
    %v631 = vpack.c.b16 %v554, %v547
    %v632 = vpack.c.b16 %v555, %v548
    %v633 = vpack.c.b16 %v563, %v556
    %v634 = vpack.c.b16 %v564, %v557
    %v635 = vpack.c.b16 %v565, %v558
    %v636 = vpack.c.b16 %v566, %v559
    %v637 = vpack.c.b16 %v567, %v560
    %v638 = vpack.c.b16 %v568, %v561
    %v639 = vpack.c.b16 %v569, %v562
    %v640 = vpack.c.b16 %v577, %v570
    %v641 = vpack.c.b16 %v578, %v571
    %v642 = vpack.c.b16 %v579, %v572
    %v643 = vpack.c.b16 %v580, %v573
    %v644 = vpack.c.b16 %v581, %v574
    %v645 = vpack.c.b16 %v582, %v575
    %v646 = vpack.c.b16 %v583, %v576
    %v647 = vpack.c.b16 %v591, %v584
    %v648 = vpack.c.b16 %v592, %v585
    %v649 = vpack.c.b16 %v593, %v586
    %v650 = vpack.c.b16 %v594, %v587
    %v651 = vpack.c.b16 %v595, %v588
    %v652 = vpack.c.b16 %v596, %v589
    %v653 = vpack.c.b16 %v597, %v590
    %v898 = vunpack.c.l.b16 %v204
    %v899 = vunpack.c.h.b16 %v204
    %v900 = vunpack.c.l.b16 %v205
    %v901 = vunpack.c.h.b16 %v205
    %v902 = vunpack.c.l.b16 %v206
    %v903 = vunpack.c.h.b16 %v206
    %v904 = vunpack.c.l.b16 %v207
    %v905 = vunpack.c.h.b16 %v207
    %v906 = vunpack.c.l.b16 %v208
    %v907 = vunpack.c.h.b16 %v208
    %v908 = vunpack.c.l.b16 %v209
    %v909 = vunpack.c.h.b16 %v209
    %v910 = vunpack.c.l.b16 %v210
    %v911 = vunpack.c.h.b16 %v210
    %v912 = vunpack.c.l.b16 %v211
    %v913 = vunpack.c.h.b16 %v211
    %v914 = vunpack.c.l.b16 %v212
    %v915 = vunpack.c.h.b16 %v212
    %v916 = vunpack.c.l.b16 %v213
    %v917 = vunpack.c.h.b16 %v213
    %v918 = vunpack.c.l.b16 %v214
    %v919 = vunpack.c.h.b16 %v214
    %v920 = vunpack.c.l.b16 %v215
    %v921 = vunpack.c.h.b16 %v215
    %v922 = vunpack.c.l.b16 %v216
    %v923 = vunpack.c.h.b16 %v216
    %v924 = vunpack.c.l.b16 %v217
    %v925 = vunpack.c.h.b16 %v217
    %v926 = vunpack.c.l.b16 %v218
    %v927 = vunpack.c.h.b16 %v218
    %v928 = vunpack.c.l.b16 %v219
    %v929 = vunpack.c.h.b16 %v219
    %v930 = vunpack.c.l.b16 %v220
    %v931 = vunpack.c.h.b16 %v220
    %v932 = vunpack.c.l.b16 %v221
    %v933 = vunpack.c.h.b16 %v221
    %v934 = vunpack.c.l.b16 %v222
    %v935 = vunpack.c.h.b16 %v222
    %v936 = vunpack.c.l.b16 %v223
    %v937 = vunpack.c.h.b16 %v223
    %v938 = vunpack.c.l.b16 %v224
    %v939 = vunpack.c.h.b16 %v224
    %v940 = vunpack.c.l.b16 %v225
    %v941 = vunpack.c.h.b16 %v225
    %v942 = vunpack.c.l.b16 %v226
    %v943 = vunpack.c.h.b16 %v226
    %v944 = vunpack.c.l.b16 %v227
    %v945 = vunpack.c.h.b16 %v227
    %v946 = vunpack.c.l.b16 %v228
    %v947 = vunpack.c.h.b16 %v228
    %v948 = vunpack.c.l.b16 %v229
    %v949 = vunpack.c.h.b16 %v229
    %v950 = vunpack.c.l.b16 %v230
    %v951 = vunpack.c.h.b16 %v230
    %v952 = vunpack.c.l.b16 %v231
    %v953 = vunpack.c.h.b16 %v231
    %v954 = vunpack.c.l.b16 %v232
    %v955 = vunpack.c.h.b16 %v232
    %v956 = vunpack.c.l.b16 %v233
    %v957 = vunpack.c.h.b16 %v233
    %v958 = vunpack.c.l.b16 %v234
    %v959 = vunpack.c.h.b16 %v234
    %v960 = vunpack.c.l.b16 %v235
    %v961 = vunpack.c.h.b16 %v235
    %v962 = vunpack.c.l.b16 %v236
    %v963 = vunpack.c.h.b16 %v236
    %v964 = vunpack.c.l.b16 %v237
    %v965 = vunpack.c.h.b16 %v237
    %v966 = vunpack.c.l.b16 %v238
    %v967 = vunpack.c.h.b16 %v238
    %v968 = vunpack.c.l.b16 %v239
    %v969 = vunpack.c.h.b16 %v239
    %v970 = vunpack.c.l.b16 %v240
    %v971 = vunpack.c.h.b16 %v240
    %v972 = vunpack.c.l.b16 %v241
    %v973 = vunpack.c.h.b16 %v241
    %v974 = vunpack.c.l.b16 %v242
    %v975 = vunpack.c.h.b16 %v242
    %v976 = vunpack.c.l.b16 %v243
    %v977 = vunpack.c.h.b16 %v243
    %v978 = vunpack.c.l.b16 %v244
    %v979 = vunpack.c.h.b16 %v244
    %v980 = vunpack.c.l.b16 %v245
    %v981 = vunpack.c.h.b16 %v245
    %v982 = vunpack.c.l.b16 %v246
    %v983 = vunpack.c.h.b16 %v246
    %v984 = vunpack.c.l.b16 %v247
    %v985 = vunpack.c.h.b16 %v247
    %v986 = vunpack.c.l.b16 %v248
    %v987 = vunpack.c.h.b16 %v248
    %v988 = vunpack.c.l.b16 %v249
    %v989 = vunpack.c.h.b16 %v249
    %v990 = vunpack.c.l.b16 %v250
    %v991 = vunpack.c.h.b16 %v250
    %v992 = vunpack.c.l.b16 %v251
    %v993 = vunpack.c.h.b16 %v251
    %v994 = vunpack.c.l.b16 %v252
    %v995 = vunpack.c.h.b16 %v252
    %v996 = vunpack.c.l.b16 %v253
    %v997 = vunpack.c.h.b16 %v253
    %v998 = vunpack.c.l.b16 %v254
    %v999 = vunpack.c.h.b16 %v254
    %v1000 = vunpack.c.l.b16 %v255
    %v1001 = vunpack.c.h.b16 %v255
    %v1002 = vunpack.c.l.b16 %v256
    %v1003 = vunpack.c.h.b16 %v256
    %v1004 = vunpack.c.l.b16 %v257
    %v1005 = vunpack.c.h.b16 %v257
    %v1006 = vunpack.c.l.b16 %v258
    %v1007 = vunpack.c.h.b16 %v258
    %v1008 = vunpack.c.l.b16 %v259
    %v1009 = vunpack.c.h.b16 %v259
    %v1010 = vunpack.c.l.b16 %v260
    %v1011 = vunpack.c.h.b16 %v260
    %v1012 = vunpack.c.l.b16 %v261
    %v1013 = vunpack.c.h.b16 %v261
    %v1014 = vunpack.c.l.b16 %v262
    %v1015 = vunpack.c.h.b16 %v262
    %v1016 = vunpack.c.l.b16 %v263
    %v1017 = vunpack.c.h.b16 %v263
    %v1018 = vunpack.c.l.b16 %v264
    %v1019 = vunpack.c.h.b16 %v264
    %v1020 = vunpack.c.l.b16 %v265
    %v1021 = vunpack.c.h.b16 %v265
    %v1022 = vunpack.c.l.b16 %v266
    %v1023 = vunpack.c.h.b16 %v266
    %v1024 = vunpack.c.l.b16 %v267
    %v1025 = vunpack.c.h.b16 %v267
    %v1026 = vunpack.c.l.b16 %v268
    %v1027 = vunpack.c.h.b16 %v268
    %v1028 = vunpack.c.l.b16 %v269
    %v1029 = vunpack.c.h.b16 %v269
    %v1030 = vunpack.c.l.b16 %v270
    %v1031 = vunpack.c.h.b16 %v270
    %v1032 = vunpack.c.l.b16 %v271
    %v1033 = vunpack.c.h.b16 %v271
    %v1034 = vunpack.c.l.b16 %v272
    %v1035 = vunpack.c.h.b16 %v272
    %v1036 = vunpack.c.l.b16 %v273
    %v1037 = vunpack.c.h.b16 %v273
    %v1038 = vunpack.c.l.b16 %v274
    %v1039 = vunpack.c.h.b16 %v274
    %v1040 = vunpack.c.l.b16 %v275
    %v1041 = vunpack.c.h.b16 %v275
    %v1042 = vunpack.c.l.b16 %v276
    %v1043 = vunpack.c.h.b16 %v276
    %v1044 = vunpack.c.l.b16 %v277
    %v1045 = vunpack.c.h.b16 %v277
    %v1046 = vunpack.c.l.b16 %v278
    %v1047 = vunpack.c.h.b16 %v278
    %v1048 = vunpack.c.l.b16 %v279
    %v1049 = vunpack.c.h.b16 %v279
    %v1050 = vunpack.c.l.b16 %v280
    %v1051 = vunpack.c.h.b16 %v280
    %v1052 = vunpack.c.l.b16 %v281
    %v1053 = vunpack.c.h.b16 %v281
    %v1054 = vunpack.c.l.b16 %v282
    %v1055 = vunpack.c.h.b16 %v282
    %v1056 = vunpack.c.l.b16 %v283
    %v1057 = vunpack.c.h.b16 %v283
    %v1058 = vunpack.c.l.b16 %v284
    %v1059 = vunpack.c.h.b16 %v284
    %v1060 = vunpack.c.l.b16 %v285
    %v1061 = vunpack.c.h.b16 %v285
    %v1062 = vunpack.c.l.b16 %v286
    %v1063 = vunpack.c.h.b16 %v286
    %v1064 = vunpack.c.l.b16 %v287
    %v1065 = vunpack.c.h.b16 %v287
    %v1066 = vunpack.c.l.b16 %v288
    %v1067 = vunpack.c.h.b16 %v288
    %v1068 = vunpack.c.l.b16 %v289
    %v1069 = vunpack.c.h.b16 %v289
    %v1070 = vunpack.c.l.b16 %v290
    %v1071 = vunpack.c.h.b16 %v290
    %v1072 = vunpack.c.l.b16 %v291
    %v1073 = vunpack.c.h.b16 %v291
    %v1074 = vunpack.c.l.b16 %v292
    %v1075 = vunpack.c.h.b16 %v292
    %v1076 = vunpack.c.l.b16 %v293
    %v1077 = vunpack.c.h.b16 %v293
    %v1078 = vunpack.c.l.b16 %v294
    %v1079 = vunpack.c.h.b16 %v294
    %v1080 = vunpack.c.l.b16 %v295
    %v1081 = vunpack.c.h.b16 %v295
    %v1082 = vunpack.c.l.b16 %v296
    %v1083 = vunpack.c.h.b16 %v296
    %v1084 = vunpack.c.l.b16 %v297
    %v1085 = vunpack.c.h.b16 %v297
    %v1086 = vunpack.c.l.b16 %v298
    %v1087 = vunpack.c.h.b16 %v298
    %v1088 = vunpack.c.l.b16 %v299
    %v1089 = vunpack.c.h.b16 %v299
    %v1090 = vunpack.c.l.b16 %v300
    %v1091 = vunpack.c.h.b16 %v300
    %v1092 = vunpack.c.l.b16 %v301
    %v1093 = vunpack.c.h.b16 %v301
    %v1094 = vunpack.c.l.b16 %v302
    %v1095 = vunpack.c.h.b16 %v302
    %v1096 = vunpack.c.l.b16 %v303
    %v1097 = vunpack.c.h.b16 %v303
    %v1098 = vunpack.c.l.b16 %v304
    %v1099 = vunpack.c.h.b16 %v304
    %v1100 = vunpack.c.l.b16 %v305
    %v1101 = vunpack.c.h.b16 %v305
    %v1102 = vunpack.c.l.b16 %v306
    %v1103 = vunpack.c.h.b16 %v306
    %v1104 = vunpack.c.l.b16 %v307
    %v1105 = vunpack.c.h.b16 %v307
    %v1106 = vunpack.c.l.b16 %v308
    %v1107 = vunpack.c.h.b16 %v308
    %v1108 = vunpack.c.l.b16 %v309
    %v1109 = vunpack.c.h.b16 %v309
    %v1110 = vunpack.c.l.b16 %v310
    %v1111 = vunpack.c.h.b16 %v310
    %v1112 = vunpack.c.l.b16 %v311
    %v1113 = vunpack.c.h.b16 %v311
    %v1114 = vunpack.c.l.b16 %v312
    %v1115 = vunpack.c.h.b16 %v312
    %v1116 = vunpack.c.l.b16 %v313
    %v1117 = vunpack.c.h.b16 %v313
    %v1118 = vunpack.c.l.b16 %v314
    %v1119 = vunpack.c.h.b16 %v314
    %v1120 = vunpack.c.l.b16 %v315
    %v1121 = vunpack.c.h.b16 %v315
    %v1122 = vunpack.c.l.b16 %v316
    %v1123 = vunpack.c.h.b16 %v316
    %v1124 = vunpack.c.l.b16 %v317
    %v1125 = vunpack.c.h.b16 %v317
    %v1126 = vunpack.c.l.b16 %v318
    %v1127 = vunpack.c.h.b16 %v318
    %v1128 = vunpack.c.l.b16 %v319
    %v1129 = vunpack.c.h.b16 %v319
    %v1130 = vunpack.c.l.b16 %v320
    %v1131 = vunpack.c.h.b16 %v320
    %v1132 = vunpack.c.l.b16 %v321
    %v1133 = vunpack.c.h.b16 %v321
    %v1134 = vunpack.c.l.b16 %v322
    %v1135 = vunpack.c.h.b16 %v322
    %v1136 = vunpack.c.l.b16 %v323
    %v1137 = vunpack.c.h.b16 %v323
    %v1138 = vunpack.c.l.b16 %v324
    %v1139 = vunpack.c.h.b16 %v324
    %v1140 = vunpack.c.l.b16 %v325
    %v1141 = vunpack.c.h.b16 %v325
    %v1142 = vunpack.c.l.b16 %v326
    %v1143 = vunpack.c.h.b16 %v326
    %v1144 = vunpack.c.l.b16 %v327
    %v1145 = vunpack.c.h.b16 %v327
    %v1146 = vunpack.c.l.b16 %v328
    %v1147 = vunpack.c.h.b16 %v328
    %v1148 = vunpack.c.l.b16 %v329
    %v1149 = vunpack.c.h.b16 %v329
    %v1150 = vunpack.c.l.b16 %v330
    %v1151 = vunpack.c.h.b16 %v330
    %v1152 = vunpack.c.l.b16 %v331
    %v1153 = vunpack.c.h.b16 %v331
    %v1154 = vunpack.c.l.b16 %v332
    %v1155 = vunpack.c.h.b16 %v332
    %v1156 = vunpack.c.l.b16 %v333
    %v1157 = vunpack.c.h.b16 %v333
    %v1158 = vunpack.c.l.b16 %v334
    %v1159 = vunpack.c.h.b16 %v334
    %v1160 = vunpack.c.l.b16 %v335
    %v1161 = vunpack.c.h.b16 %v335
    %v1162 = vunpack.c.l.b16 %v336
    %v1163 = vunpack.c.h.b16 %v336
    %v1164 = vunpack.c.l.b16 %v337
    %v1165 = vunpack.c.h.b16 %v337
    %v1166 = vunpack.c.l.b16 %v338
    %v1167 = vunpack.c.h.b16 %v338
    %v1168 = vunpack.c.l.b16 %v339
    %v1169 = vunpack.c.h.b16 %v339
    %v1170 = vunpack.c.l.b16 %v340
    %v1171 = vunpack.c.h.b16 %v340
    %v1172 = vunpack.c.l.b16 %v341
    %v1173 = vunpack.c.h.b16 %v341
    %v1174 = vunpack.c.l.b16 %v342
    %v1175 = vunpack.c.h.b16 %v342
    %v1176 = vunpack.c.l.b16 %v343
    %v1177 = vunpack.c.h.b16 %v343
    %v1178 = vunpack.c.l.b16 %v344
    %v1179 = vunpack.c.h.b16 %v344
    %v1180 = vunpack.c.l.b16 %v345
    %v1181 = vunpack.c.h.b16 %v345
    %v1182 = vunpack.c.l.b16 %v346
    %v1183 = vunpack.c.h.b16 %v346
    %v1184 = vunpack.c.l.b16 %v347
    %v1185 = vunpack.c.h.b16 %v347
    %v1186 = vunpack.c.l.b16 %v348
    %v1187 = vunpack.c.h.b16 %v348
    %v1188 = vunpack.c.l.b16 %v349
    %v1189 = vunpack.c.h.b16 %v349
    %v1190 = vunpack.c.l.b16 %v350
    %v1191 = vunpack.c.h.b16 %v350
    %v1192 = vunpack.c.l.b16 %v351
    %v1193 = vunpack.c.h.b16 %v351
    %v1194 = vunpack.c.l.b16 %v352
    %v1195 = vunpack.c.h.b16 %v352
    %v1196 = vunpack.c.l.b16 %v353
    %v1197 = vunpack.c.h.b16 %v353
    %v1198 = vunpack.c.l.b16 %v354
    %v1199 = vunpack.c.h.b16 %v354
    %v1200 = vunpack.c.l.b16 %v355
    %v1201 = vunpack.c.h.b16 %v355
    %v1202 = vunpack.c.l.b16 %v356
    %v1203 = vunpack.c.h.b16 %v356
    %v1204 = vunpack.c.l.b16 %v357
    %v1205 = vunpack.c.h.b16 %v357
    %v1206 = vunpack.c.l.b16 %v358
    %v1207 = vunpack.c.h.b16 %v358
    %v1208 = vunpack.c.l.b16 %v359
    %v1209 = vunpack.c.h.b16 %v359
    %v1210 = vunpack.c.l.b16 %v360
    %v1211 = vunpack.c.h.b16 %v360
    %v1212 = vunpack.c.l.b16 %v361
    %v1213 = vunpack.c.h.b16 %v361
    %v1214 = vunpack.c.l.b16 %v362
    %v1215 = vunpack.c.h.b16 %v362
    %v1216 = vunpack.c.l.b16 %v363
    %v1217 = vunpack.c.h.b16 %v363
    %v1218 = vunpack.c.l.b16 %v364
    %v1219 = vunpack.c.h.b16 %v364
    %v1220 = vunpack.c.l.b16 %v365
    %v1221 = vunpack.c.h.b16 %v365
    %v1222 = vunpack.c.l.b16 %v366
    %v1223 = vunpack.c.h.b16 %v366
    %v1224 = vunpack.c.l.b16 %v367
    %v1225 = vunpack.c.h.b16 %v367
    %v1226 = vunpack.c.l.b16 %v368
    %v1227 = vunpack.c.h.b16 %v368
    %v1228 = vunpack.c.l.b16 %v369
    %v1229 = vunpack.c.h.b16 %v369
    %v1230 = vunpack.c.l.b16 %v370
    %v1231 = vunpack.c.h.b16 %v370
    %v1232 = vunpack.c.l.b16 %v371
    %v1233 = vunpack.c.h.b16 %v371
    %v1234 = vunpack.c.l.b16 %v372
    %v1235 = vunpack.c.h.b16 %v372
    %v1236 = vunpack.c.l.b16 %v373
    %v1237 = vunpack.c.h.b16 %v373
    %v1238 = vunpack.c.l.b16 %v374
    %v1239 = vunpack.c.h.b16 %v374
    %v1240 = vunpack.c.l.b16 %v375
    %v1241 = vunpack.c.h.b16 %v375
    %v1242 = vunpack.c.l.b16 %v376
    %v1243 = vunpack.c.h.b16 %v376
    %v1244 = vunpack.c.l.b16 %v377
    %v1245 = vunpack.c.h.b16 %v377
    %v1246 = vunpack.c.l.b16 %v378
    %v1247 = vunpack.c.h.b16 %v378
    %v1248 = vunpack.c.l.b16 %v379
    %v1249 = vunpack.c.h.b16 %v379
    %v1250 = vunpack.c.l.b16 %v380
    %v1251 = vunpack.c.h.b16 %v380
    %v1252 = vunpack.c.l.b16 %v381
    %v1253 = vunpack.c.h.b16 %v381
    %v1254 = vunpack.c.l.b16 %v382
    %v1255 = vunpack.c.h.b16 %v382
    %v1256 = vunpack.c.l.b16 %v383
    %v1257 = vunpack.c.h.b16 %v383
    %v1258 = vunpack.c.l.b16 %v384
    %v1259 = vunpack.c.h.b16 %v384
    %v1260 = vunpack.c.l.b16 %v385
    %v1261 = vunpack.c.h.b16 %v385
    %v1262 = vunpack.c.l.b16 %v386
    %v1263 = vunpack.c.h.b16 %v386
    %v1264 = vunpack.c.l.b16 %v387
    %v1265 = vunpack.c.h.b16 %v387
    %v1266 = vunpack.c.l.b16 %v388
    %v1267 = vunpack.c.h.b16 %v388
    %v1268 = vunpack.c.l.b16 %v389
    %v1269 = vunpack.c.h.b16 %v389
    %v1270 = vunpack.c.l.b16 %v390
    %v1271 = vunpack.c.h.b16 %v390
    %v1272 = vunpack.c.l.b16 %v391
    %v1273 = vunpack.c.h.b16 %v391
    %v1274 = vunpack.c.l.b16 %v392
    %v1275 = vunpack.c.h.b16 %v392
    %v1276 = vunpack.c.l.b16 %v393
    %v1277 = vunpack.c.h.b16 %v393
    %v1278 = vunpack.c.l.b16 %v394
    %v1279 = vunpack.c.h.b16 %v394
    %v1280 = vunpack.c.l.b16 %v395
    %v1281 = vunpack.c.h.b16 %v395
    %v1282 = vunpack.c.l.b16 %v396
    %v1283 = vunpack.c.h.b16 %v396
    %v1284 = vunpack.c.l.b16 %v397
    %v1285 = vunpack.c.h.b16 %v397
    %v1286 = vunpack.c.l.b16 %v398
    %v1287 = vunpack.c.h.b16 %v398
    %v1288 = vunpack.c.l.b16 %v399
    %v1289 = vunpack.c.h.b16 %v399
    %v1290 = vpack.c.b16 %v902, %v898
    %v1291 = vpack.c.b16 %v903, %v899
    %v1292 = vpack.c.b16 %v904, %v900
    %v1293 = vpack.c.b16 %v905, %v901
    %v1294 = vpack.c.b16 %v910, %v906
    %v1295 = vpack.c.b16 %v911, %v907
    %v1296 = vpack.c.b16 %v912, %v908
    %v1297 = vpack.c.b16 %v913, %v909
    %v1298 = vpack.c.b16 %v918, %v914
    %v1299 = vpack.c.b16 %v919, %v915
    %v1300 = vpack.c.b16 %v920, %v916
    %v1301 = vpack.c.b16 %v921, %v917
    %v1302 = vpack.c.b16 %v926, %v922
    %v1303 = vpack.c.b16 %v927, %v923
    %v1304 = vpack.c.b16 %v928, %v924
    %v1305 = vpack.c.b16 %v929, %v925
    %v1306 = vpack.c.b16 %v934, %v930
    %v1307 = vpack.c.b16 %v935, %v931
    %v1308 = vpack.c.b16 %v936, %v932
    %v1309 = vpack.c.b16 %v937, %v933
    %v1310 = vpack.c.b16 %v942, %v938
    %v1311 = vpack.c.b16 %v943, %v939
    %v1312 = vpack.c.b16 %v944, %v940
    %v1313 = vpack.c.b16 %v945, %v941
    %v1314 = vpack.c.b16 %v950, %v946
    %v1315 = vpack.c.b16 %v951, %v947
    %v1316 = vpack.c.b16 %v952, %v948
    %v1317 = vpack.c.b16 %v953, %v949
    %v1318 = vpack.c.b16 %v958, %v954
    %v1319 = vpack.c.b16 %v959, %v955
    %v1320 = vpack.c.b16 %v960, %v956
    %v1321 = vpack.c.b16 %v961, %v957
    %v1322 = vpack.c.b16 %v966, %v962
    %v1323 = vpack.c.b16 %v967, %v963
    %v1324 = vpack.c.b16 %v968, %v964
    %v1325 = vpack.c.b16 %v969, %v965
    %v1326 = vpack.c.b16 %v974, %v970
    %v1327 = vpack.c.b16 %v975, %v971
    %v1328 = vpack.c.b16 %v976, %v972
    %v1329 = vpack.c.b16 %v977, %v973
    %v1330 = vpack.c.b16 %v982, %v978
    %v1331 = vpack.c.b16 %v983, %v979
    %v1332 = vpack.c.b16 %v984, %v980
    %v1333 = vpack.c.b16 %v985, %v981
    %v1334 = vpack.c.b16 %v990, %v986
    %v1335 = vpack.c.b16 %v991, %v987
    %v1336 = vpack.c.b16 %v992, %v988
    %v1337 = vpack.c.b16 %v993, %v989
    %v1338 = vpack.c.b16 %v998, %v994
    %v1339 = vpack.c.b16 %v999, %v995
    %v1340 = vpack.c.b16 %v1000, %v996
    %v1341 = vpack.c.b16 %v1001, %v997
    %v1342 = vpack.c.b16 %v1006, %v1002
    %v1343 = vpack.c.b16 %v1007, %v1003
    %v1344 = vpack.c.b16 %v1008, %v1004
    %v1345 = vpack.c.b16 %v1009, %v1005
    %v1346 = vpack.c.b16 %v1014, %v1010
    %v1347 = vpack.c.b16 %v1015, %v1011
    %v1348 = vpack.c.b16 %v1016, %v1012
    %v1349 = vpack.c.b16 %v1017, %v1013
    %v1350 = vpack.c.b16 %v1022, %v1018
    %v1351 = vpack.c.b16 %v1023, %v1019
    %v1352 = vpack.c.b16 %v1024, %v1020
    %v1353 = vpack.c.b16 %v1025, %v1021
    %v1354 = vpack.c.b16 %v1030, %v1026
    %v1355 = vpack.c.b16 %v1031, %v1027
    %v1356 = vpack.c.b16 %v1032, %v1028
    %v1357 = vpack.c.b16 %v1033, %v1029
    %v1358 = vpack.c.b16 %v1038, %v1034
    %v1359 = vpack.c.b16 %v1039, %v1035
    %v1360 = vpack.c.b16 %v1040, %v1036
    %v1361 = vpack.c.b16 %v1041, %v1037
    %v1362 = vpack.c.b16 %v1046, %v1042
    %v1363 = vpack.c.b16 %v1047, %v1043
    %v1364 = vpack.c.b16 %v1048, %v1044
    %v1365 = vpack.c.b16 %v1049, %v1045
    %v1366 = vpack.c.b16 %v1054, %v1050
    %v1367 = vpack.c.b16 %v1055, %v1051
    %v1368 = vpack.c.b16 %v1056, %v1052
    %v1369 = vpack.c.b16 %v1057, %v1053
    %v1370 = vpack.c.b16 %v1062, %v1058
    %v1371 = vpack.c.b16 %v1063, %v1059
    %v1372 = vpack.c.b16 %v1064, %v1060
    %v1373 = vpack.c.b16 %v1065, %v1061
    %v1374 = vpack.c.b16 %v1070, %v1066
    %v1375 = vpack.c.b16 %v1071, %v1067
    %v1376 = vpack.c.b16 %v1072, %v1068
    %v1377 = vpack.c.b16 %v1073, %v1069
    %v1378 = vpack.c.b16 %v1078, %v1074
    %v1379 = vpack.c.b16 %v1079, %v1075
    %v1380 = vpack.c.b16 %v1080, %v1076
    %v1381 = vpack.c.b16 %v1081, %v1077
    %v1382 = vpack.c.b16 %v1086, %v1082
    %v1383 = vpack.c.b16 %v1087, %v1083
    %v1384 = vpack.c.b16 %v1088, %v1084
    %v1385 = vpack.c.b16 %v1089, %v1085
    %v1386 = vpack.c.b16 %v1094, %v1090
    %v1387 = vpack.c.b16 %v1095, %v1091
    %v1388 = vpack.c.b16 %v1096, %v1092
    %v1389 = vpack.c.b16 %v1097, %v1093
    %v1390 = vpack.c.b16 %v1102, %v1098
    %v1391 = vpack.c.b16 %v1103, %v1099
    %v1392 = vpack.c.b16 %v1104, %v1100
    %v1393 = vpack.c.b16 %v1105, %v1101
    %v1394 = vpack.c.b16 %v1110, %v1106
    %v1395 = vpack.c.b16 %v1111, %v1107
    %v1396 = vpack.c.b16 %v1112, %v1108
    %v1397 = vpack.c.b16 %v1113, %v1109
    %v1398 = vpack.c.b16 %v1118, %v1114
    %v1399 = vpack.c.b16 %v1119, %v1115
    %v1400 = vpack.c.b16 %v1120, %v1116
    %v1401 = vpack.c.b16 %v1121, %v1117
    %v1402 = vpack.c.b16 %v1126, %v1122
    %v1403 = vpack.c.b16 %v1127, %v1123
    %v1404 = vpack.c.b16 %v1128, %v1124
    %v1405 = vpack.c.b16 %v1129, %v1125
    %v1406 = vpack.c.b16 %v1134, %v1130
    %v1407 = vpack.c.b16 %v1135, %v1131
    %v1408 = vpack.c.b16 %v1136, %v1132
    %v1409 = vpack.c.b16 %v1137, %v1133
    %v1410 = vpack.c.b16 %v1142, %v1138
    %v1411 = vpack.c.b16 %v1143, %v1139
    %v1412 = vpack.c.b16 %v1144, %v1140
    %v1413 = vpack.c.b16 %v1145, %v1141
    %v1414 = vpack.c.b16 %v1150, %v1146
    %v1415 = vpack.c.b16 %v1151, %v1147
    %v1416 = vpack.c.b16 %v1152, %v1148
    %v1417 = vpack.c.b16 %v1153, %v1149
    %v1418 = vpack.c.b16 %v1158, %v1154
    %v1419 = vpack.c.b16 %v1159, %v1155
    %v1420 = vpack.c.b16 %v1160, %v1156
    %v1421 = vpack.c.b16 %v1161, %v1157
    %v1422 = vpack.c.b16 %v1166, %v1162
    %v1423 = vpack.c.b16 %v1167, %v1163
    %v1424 = vpack.c.b16 %v1168, %v1164
    %v1425 = vpack.c.b16 %v1169, %v1165
    %v1426 = vpack.c.b16 %v1174, %v1170
    %v1427 = vpack.c.b16 %v1175, %v1171
    %v1428 = vpack.c.b16 %v1176, %v1172
    %v1429 = vpack.c.b16 %v1177, %v1173
    %v1430 = vpack.c.b16 %v1182, %v1178
    %v1431 = vpack.c.b16 %v1183, %v1179
    %v1432 = vpack.c.b16 %v1184, %v1180
    %v1433 = vpack.c.b16 %v1185, %v1181
    %v1434 = vpack.c.b16 %v1190, %v1186
    %v1435 = vpack.c.b16 %v1191, %v1187
    %v1436 = vpack.c.b16 %v1192, %v1188
    %v1437 = vpack.c.b16 %v1193, %v1189
    %v1438 = vpack.c.b16 %v1198, %v1194
    %v1439 = vpack.c.b16 %v1199, %v1195
    %v1440 = vpack.c.b16 %v1200, %v1196
    %v1441 = vpack.c.b16 %v1201, %v1197
    %v1442 = vpack.c.b16 %v1206, %v1202
    %v1443 = vpack.c.b16 %v1207, %v1203
    %v1444 = vpack.c.b16 %v1208, %v1204
    %v1445 = vpack.c.b16 %v1209, %v1205
    %v1446 = vpack.c.b16 %v1214, %v1210
    %v1447 = vpack.c.b16 %v1215, %v1211
    %v1448 = vpack.c.b16 %v1216, %v1212
    %v1449 = vpack.c.b16 %v1217, %v1213
    %v1450 = vpack.c.b16 %v1222, %v1218
    %v1451 = vpack.c.b16 %v1223, %v1219
    %v1452 = vpack.c.b16 %v1224, %v1220
    %v1453 = vpack.c.b16 %v1225, %v1221
    %v1454 = vpack.c.b16 %v1230, %v1226
    %v1455 = vpack.c.b16 %v1231, %v1227
    %v1456 = vpack.c.b16 %v1232, %v1228
    %v1457 = vpack.c.b16 %v1233, %v1229
    %v1458 = vpack.c.b16 %v1238, %v1234
    %v1459 = vpack.c.b16 %v1239, %v1235
    %v1460 = vpack.c.b16 %v1240, %v1236
    %v1461 = vpack.c.b16 %v1241, %v1237
    %v1462 = vpack.c.b16 %v1246, %v1242
    %v1463 = vpack.c.b16 %v1247, %v1243
    %v1464 = vpack.c.b16 %v1248, %v1244
    %v1465 = vpack.c.b16 %v1249, %v1245
    %v1466 = vpack.c.b16 %v1254, %v1250
    %v1467 = vpack.c.b16 %v1255, %v1251
    %v1468 = vpack.c.b16 %v1256, %v1252
    %v1469 = vpack.c.b16 %v1257, %v1253
    %v1470 = vpack.c.b16 %v1262, %v1258
    %v1471 = vpack.c.b16 %v1263, %v1259
    %v1472 = vpack.c.b16 %v1264, %v1260
    %v1473 = vpack.c.b16 %v1265, %v1261
    %v1474 = vpack.c.b16 %v1270, %v1266
    %v1475 = vpack.c.b16 %v1271, %v1267
    %v1476 = vpack.c.b16 %v1272, %v1268
    %v1477 = vpack.c.b16 %v1273, %v1269
    %v1478 = vpack.c.b16 %v1278, %v1274
    %v1479 = vpack.c.b16 %v1279, %v1275
    %v1480 = vpack.c.b16 %v1280, %v1276
    %v1481 = vpack.c.b16 %v1281, %v1277
    %v1482 = vpack.c.b16 %v1286, %v1282
    %v1483 = vpack.c.b16 %v1287, %v1283
    %v1484 = vpack.c.b16 %v1288, %v1284
    %v1485 = vpack.c.b16 %v1289, %v1285
    %vm1682 = vcmask 130048
    %v1684 = vsel %vm1682, %v604, 0
    %v1687 = vsel %vm1682, %v611, 0
    %v1690 = vsel %vm1682, %v618, 0
    %v1693 = vsel %vm1682, %v625, 0
    %v1696 = vsel %vm1682, %v632, 0
    %v1699 = vsel %vm1682, %v639, 0
    %v1702 = vsel %vm1682, %v646, 0
    %v1705 = vsel %vm1682, %v653, 0
    %1707 = vmatprep.subr.bf16.mxu0 %v1319
    %1708 = vmatpush1.bf16.msra.mxu0 %v1318
    %1709 = vmatprep.subr.bf16.mxu0 %v1315
    %1710 = vmatpush1.bf16.msra.mxu0 %v1314
    %1711 = vmatprep.subr.bf16.mxu0 %v1311
    %1712 = vmatpush1.bf16.msra.mxu0 %v1310
    %1713 = vmatprep.subr.bf16.mxu0 %v1307
    %1714 = vmatpush1.bf16.msra.mxu0 %v1306
    %1715 = vmatprep.subr.bf16.mxu0 %v1303
    %1716 = vmatpush1.bf16.msra.mxu0 %v1302
    %1717 = vmatprep.subr.bf16.mxu0 %v1299
    %1718 = vmatpush1.bf16.msra.mxu0 %v1298
    %1719 = vmatprep.subr.bf16.mxu0 %v1295
    %1720 = vmatpush1.bf16.msra.mxu0 %v1294
    %1721 = vmatprep.subr.bf16.mxu0 %v1291
    %1722 = vmatpush1.bf16.msra.mxu0 %v1290
    %1723 = vmatprep.subr.bf16.mxu0 %v1351
    %1724 = vmatpush2.bf16.msra.mxu0 %v1350
    %1725 = vmatprep.subr.bf16.mxu0 %v1347
    %1726 = vmatpush2.bf16.msra.mxu0 %v1346
    %1727 = vmatprep.subr.bf16.mxu0 %v1343
    %1728 = vmatpush2.bf16.msra.mxu0 %v1342
    %1729 = vmatprep.subr.bf16.mxu0 %v1339
    %1730 = vmatpush2.bf16.msra.mxu0 %v1338
    %1731 = vmatprep.subr.bf16.mxu0 %v1335
    %1732 = vmatpush2.bf16.msra.mxu0 %v1334
    %1733 = vmatprep.subr.bf16.mxu0 %v1331
    %1734 = vmatpush2.bf16.msra.mxu0 %v1330
    %1735 = vmatprep.subr.bf16.mxu0 %v1327
    %1736 = vmatpush2.bf16.msra.mxu0 %v1326
    %1737 = vmatprep.subr.bf16.mxu0 %v1323
    %1738 = vmatpush2.bf16.msra.mxu0 %v1322
    %1739 = vmatprep.mubr.bf16.mxu0 %v599
    %1740 = vmatmul.mubr.bf16.gmra.mxu0 %v598
    %v1741 = vpop.f32.mrf.mxu0
    %v1742 = vadd.f32 %v405, %v1741
    %v1743 = vpop.f32.mrf.mxu0
    %v1744 = vadd.f32 %v409, %v1743
    %v1745 = vpop.f32.mrf.mxu0
    %v1746 = vadd.f32 %v405, %v1745
    %v1747 = vpop.f32.mrf.mxu0
    %v1748 = vadd.f32 %v409, %v1747
    %1749 = vmatprep.mubr.bf16.mxu0 %v606
    %1750 = vmatmul.mubr.bf16.gmra.mxu0 %v605
    %v1751 = vpop.f32.mrf.mxu0
    %v1752 = vadd.f32 %v405, %v1751
    %v1753 = vpop.f32.mrf.mxu0
    %v1754 = vadd.f32 %v409, %v1753
    %v1755 = vpop.f32.mrf.mxu0
    %v1756 = vadd.f32 %v405, %v1755
    %v1757 = vpop.f32.mrf.mxu0
    %v1758 = vadd.f32 %v409, %v1757
    %1759 = vmatprep.mubr.bf16.mxu0 %v613
    %1760 = vmatmul.mubr.bf16.gmra.mxu0 %v612
    %v1761 = vpop.f32.mrf.mxu0
    %v1762 = vadd.f32 %v405, %v1761
    %v1763 = vpop.f32.mrf.mxu0
    %v1764 = vadd.f32 %v409, %v1763
    %v1765 = vpop.f32.mrf.mxu0
    %v1766 = vadd.f32 %v405, %v1765
    %v1767 = vpop.f32.mrf.mxu0
    %v1768 = vadd.f32 %v409, %v1767
    %1769 = vmatprep.mubr.bf16.mxu0 %v620
    %1770 = vmatmul.mubr.bf16.gmra.mxu0 %v619
    %v1771 = vpop.f32.mrf.mxu0
    %v1772 = vadd.f32 %v405, %v1771
    %v1773 = vpop.f32.mrf.mxu0
    %v1774 = vadd.f32 %v409, %v1773
    %v1775 = vpop.f32.mrf.mxu0
    %v1776 = vadd.f32 %v405, %v1775
    %v1777 = vpop.f32.mrf.mxu0
    %v1778 = vadd.f32 %v409, %v1777
    %1779 = vmatprep.mubr.bf16.mxu0 %v627
    %1780 = vmatmul.mubr.bf16.gmra.mxu0 %v626
    %v1781 = vpop.f32.mrf.mxu0
    %v1782 = vadd.f32 %v405, %v1781
    %v1783 = vpop.f32.mrf.mxu0
    %v1784 = vadd.f32 %v409, %v1783
    %v1785 = vpop.f32.mrf.mxu0
    %v1786 = vadd.f32 %v405, %v1785
    %v1787 = vpop.f32.mrf.mxu0
    %v1788 = vadd.f32 %v409, %v1787
    %1789 = vmatprep.mubr.bf16.mxu0 %v634
    %1790 = vmatmul.mubr.bf16.gmra.mxu0 %v633
    %v1791 = vpop.f32.mrf.mxu0
    %v1792 = vadd.f32 %v405, %v1791
    %v1793 = vpop.f32.mrf.mxu0
    %v1794 = vadd.f32 %v409, %v1793
    %v1795 = vpop.f32.mrf.mxu0
    %v1796 = vadd.f32 %v405, %v1795
    %v1797 = vpop.f32.mrf.mxu0
    %v1798 = vadd.f32 %v409, %v1797
    %1799 = vmatprep.mubr.bf16.mxu0 %v641
    %1800 = vmatmul.mubr.bf16.gmra.mxu0 %v640
    %v1801 = vpop.f32.mrf.mxu0
    %v1802 = vadd.f32 %v405, %v1801
    %v1803 = vpop.f32.mrf.mxu0
    %v1804 = vadd.f32 %v409, %v1803
    %v1805 = vpop.f32.mrf.mxu0
    %v1806 = vadd.f32 %v405, %v1805
    %v1807 = vpop.f32.mrf.mxu0
    %v1808 = vadd.f32 %v409, %v1807
    %1809 = vmatprep.mubr.bf16.mxu0 %v648
    %1810 = vmatmul.mubr.bf16.gmra.mxu0 %v647
    %v1811 = vpop.f32.mrf.mxu0
    %v1812 = vadd.f32 %v405, %v1811
    %v1813 = vpop.f32.mrf.mxu0
    %v1814 = vadd.f32 %v409, %v1813
    %v1815 = vpop.f32.mrf.mxu0
    %v1816 = vadd.f32 %v405, %v1815
    %v1817 = vpop.f32.mrf.mxu0
    %v1818 = vadd.f32 %v409, %v1817
    %1819 = vdwg.mxu0
    %1820 = vmatprep.subr.bf16.mxu0 %v1383
    %1821 = vmatpush1.bf16.msra.mxu0 %v1382
    %1822 = vmatprep.subr.bf16.mxu0 %v1379
    %1823 = vmatpush1.bf16.msra.mxu0 %v1378
    %1824 = vmatprep.subr.bf16.mxu0 %v1375
    %1825 = vmatpush1.bf16.msra.mxu0 %v1374
    %1826 = vmatprep.subr.bf16.mxu0 %v1371
    %1827 = vmatpush1.bf16.msra.mxu0 %v1370
    %1828 = vmatprep.subr.bf16.mxu0 %v1367
    %1829 = vmatpush1.bf16.msra.mxu0 %v1366
    %1830 = vmatprep.subr.bf16.mxu0 %v1363
    %1831 = vmatpush1.bf16.msra.mxu0 %v1362
    %1832 = vmatprep.subr.bf16.mxu0 %v1359
    %1833 = vmatpush1.bf16.msra.mxu0 %v1358
    %1834 = vmatprep.subr.bf16.mxu0 %v1355
    %1835 = vmatpush1.bf16.msra.mxu0 %v1354
    %1836 = vmatprep.subr.bf16.mxu0 %v1415
    %1837 = vmatpush2.bf16.msra.mxu0 %v1414
    %1838 = vmatprep.subr.bf16.mxu0 %v1411
    %1839 = vmatpush2.bf16.msra.mxu0 %v1410
    %1840 = vmatprep.subr.bf16.mxu0 %v1407
    %1841 = vmatpush2.bf16.msra.mxu0 %v1406
    %1842 = vmatprep.subr.bf16.mxu0 %v1403
    %1843 = vmatpush2.bf16.msra.mxu0 %v1402
    %1844 = vmatprep.subr.bf16.mxu0 %v1399
    %1845 = vmatpush2.bf16.msra.mxu0 %v1398
    %1846 = vmatprep.subr.bf16.mxu0 %v1395
    %1847 = vmatpush2.bf16.msra.mxu0 %v1394
    %1848 = vmatprep.subr.bf16.mxu0 %v1391
    %1849 = vmatpush2.bf16.msra.mxu0 %v1390
    %1850 = vmatprep.subr.bf16.mxu0 %v1387
    %1851 = vmatpush2.bf16.msra.mxu0 %v1386
    %1852 = vmatprep.mubr.bf16.mxu0 %v601
    %1853 = vmatmul.mubr.bf16.gmra.mxu0 %v600
    %v1854 = vpop.f32.mrf.mxu0
    %v1855 = vadd.f32 %v1742, %v1854
    %v1856 = vpop.f32.mrf.mxu0
    %v1857 = vadd.f32 %v1744, %v1856
    %v1858 = vpop.f32.mrf.mxu0
    %v1859 = vadd.f32 %v1746, %v1858
    %v1860 = vpop.f32.mrf.mxu0
    %v1861 = vadd.f32 %v1748, %v1860
    %1862 = vmatprep.mubr.bf16.mxu0 %v608
    %1863 = vmatmul.mubr.bf16.gmra.mxu0 %v607
    %v1864 = vpop.f32.mrf.mxu0
    %v1865 = vadd.f32 %v1752, %v1864
    %v1866 = vpop.f32.mrf.mxu0
    %v1867 = vadd.f32 %v1754, %v1866
    %v1868 = vpop.f32.mrf.mxu0
    %v1869 = vadd.f32 %v1756, %v1868
    %v1870 = vpop.f32.mrf.mxu0
    %v1871 = vadd.f32 %v1758, %v1870
    %1872 = vmatprep.mubr.bf16.mxu0 %v615
    %1873 = vmatmul.mubr.bf16.gmra.mxu0 %v614
    %v1874 = vpop.f32.mrf.mxu0
    %v1875 = vadd.f32 %v1762, %v1874
    %v1876 = vpop.f32.mrf.mxu0
    %v1877 = vadd.f32 %v1764, %v1876
    %v1878 = vpop.f32.mrf.mxu0
    %v1879 = vadd.f32 %v1766, %v1878
    %v1880 = vpop.f32.mrf.mxu0
    %v1881 = vadd.f32 %v1768, %v1880
    %1882 = vmatprep.mubr.bf16.mxu0 %v622
    %1883 = vmatmul.mubr.bf16.gmra.mxu0 %v621
    %v1884 = vpop.f32.mrf.mxu0
    %v1885 = vadd.f32 %v1772, %v1884
    %v1886 = vpop.f32.mrf.mxu0
    %v1887 = vadd.f32 %v1774, %v1886
    %v1888 = vpop.f32.mrf.mxu0
    %v1889 = vadd.f32 %v1776, %v1888
    %v1890 = vpop.f32.mrf.mxu0
    %v1891 = vadd.f32 %v1778, %v1890
    %1892 = vmatprep.mubr.bf16.mxu0 %v629
    %1893 = vmatmul.mubr.bf16.gmra.mxu0 %v628
    %v1894 = vpop.f32.mrf.mxu0
    %v1895 = vadd.f32 %v1782, %v1894
    %v1896 = vpop.f32.mrf.mxu0
    %v1897 = vadd.f32 %v1784, %v1896
    %v1898 = vpop.f32.mrf.mxu0
    %v1899 = vadd.f32 %v1786, %v1898
    %v1900 = vpop.f32.mrf.mxu0
    %v1901 = vadd.f32 %v1788, %v1900
    %1902 = vmatprep.mubr.bf16.mxu0 %v636
    %1903 = vmatmul.mubr.bf16.gmra.mxu0 %v635
    %v1904 = vpop.f32.mrf.mxu0
    %v1905 = vadd.f32 %v1792, %v1904
    %v1906 = vpop.f32.mrf.mxu0
    %v1907 = vadd.f32 %v1794, %v1906
    %v1908 = vpop.f32.mrf.mxu0
    %v1909 = vadd.f32 %v1796, %v1908
    %v1910 = vpop.f32.mrf.mxu0
    %v1911 = vadd.f32 %v1798, %v1910
    %1912 = vmatprep.mubr.bf16.mxu0 %v643
    %1913 = vmatmul.mubr.bf16.gmra.mxu0 %v642
    %v1914 = vpop.f32.mrf.mxu0
    %v1915 = vadd.f32 %v1802, %v1914
    %v1916 = vpop.f32.mrf.mxu0
    %v1917 = vadd.f32 %v1804, %v1916
    %v1918 = vpop.f32.mrf.mxu0
    %v1919 = vadd.f32 %v1806, %v1918
    %v1920 = vpop.f32.mrf.mxu0
    %v1921 = vadd.f32 %v1808, %v1920
    %1922 = vmatprep.mubr.bf16.mxu0 %v650
    %1923 = vmatmul.mubr.bf16.gmra.mxu0 %v649
    %v1924 = vpop.f32.mrf.mxu0
    %v1925 = vadd.f32 %v1812, %v1924
    %v1926 = vpop.f32.mrf.mxu0
    %v1927 = vadd.f32 %v1814, %v1926
    %v1928 = vpop.f32.mrf.mxu0
    %v1929 = vadd.f32 %v1816, %v1928
    %v1930 = vpop.f32.mrf.mxu0
    %v1931 = vadd.f32 %v1818, %v1930
    %1932 = vdwg.mxu0
    %1933 = vmatprep.subr.bf16.mxu0 %v1447
    %1934 = vmatpush1.bf16.msra.mxu0 %v1446
    %1935 = vmatprep.subr.bf16.mxu0 %v1443
    %1936 = vmatpush1.bf16.msra.mxu0 %v1442
    %1937 = vmatprep.subr.bf16.mxu0 %v1439
    %1938 = vmatpush1.bf16.msra.mxu0 %v1438
    %1939 = vmatprep.subr.bf16.mxu0 %v1435
    %1940 = vmatpush1.bf16.msra.mxu0 %v1434
    %1941 = vmatprep.subr.bf16.mxu0 %v1431
    %1942 = vmatpush1.bf16.msra.mxu0 %v1430
    %1943 = vmatprep.subr.bf16.mxu0 %v1427
    %1944 = vmatpush1.bf16.msra.mxu0 %v1426
    %1945 = vmatprep.subr.bf16.mxu0 %v1423
    %1946 = vmatpush1.bf16.msra.mxu0 %v1422
    %1947 = vmatprep.subr.bf16.mxu0 %v1419
    %1948 = vmatpush1.bf16.msra.mxu0 %v1418
    %1949 = vmatprep.subr.bf16.mxu0 %v1479
    %1950 = vmatpush2.bf16.msra.mxu0 %v1478
    %1951 = vmatprep.subr.bf16.mxu0 %v1475
    %1952 = vmatpush2.bf16.msra.mxu0 %v1474
    %1953 = vmatprep.subr.bf16.mxu0 %v1471
    %1954 = vmatpush2.bf16.msra.mxu0 %v1470
    %1955 = vmatprep.subr.bf16.mxu0 %v1467
    %1956 = vmatpush2.bf16.msra.mxu0 %v1466
    %1957 = vmatprep.subr.bf16.mxu0 %v1463
    %1958 = vmatpush2.bf16.msra.mxu0 %v1462
    %1959 = vmatprep.subr.bf16.mxu0 %v1459
    %1960 = vmatpush2.bf16.msra.mxu0 %v1458
    %1961 = vmatprep.subr.bf16.mxu0 %v1455
    %1962 = vmatpush2.bf16.msra.mxu0 %v1454
    %1963 = vmatprep.subr.bf16.mxu0 %v1451
    %1964 = vmatpush2.bf16.msra.mxu0 %v1450
    %1965 = vmatprep.mubr.bf16.mxu0 %v603
    %1966 = vmatmul.mubr.bf16.gmra.mxu0 %v602
    %v1967 = vpop.f32.mrf.mxu0
    %v1968 = vadd.f32 %v1855, %v1967
    %v1969 = vpop.f32.mrf.mxu0
    %v1970 = vadd.f32 %v1857, %v1969
    %v1971 = vpop.f32.mrf.mxu0
    %v1972 = vadd.f32 %v1859, %v1971
    %v1973 = vpop.f32.mrf.mxu0
    %v1974 = vadd.f32 %v1861, %v1973
    %1975 = vmatprep.mubr.bf16.mxu0 %v610
    %1976 = vmatmul.mubr.bf16.gmra.mxu0 %v609
    %v1977 = vpop.f32.mrf.mxu0
    %v1978 = vadd.f32 %v1865, %v1977
    %v1979 = vpop.f32.mrf.mxu0
    %v1980 = vadd.f32 %v1867, %v1979
    %v1981 = vpop.f32.mrf.mxu0
    %v1982 = vadd.f32 %v1869, %v1981
    %v1983 = vpop.f32.mrf.mxu0
    %v1984 = vadd.f32 %v1871, %v1983
    %1985 = vmatprep.mubr.bf16.mxu0 %v617
    %1986 = vmatmul.mubr.bf16.gmra.mxu0 %v616
    %v1987 = vpop.f32.mrf.mxu0
    %v1988 = vadd.f32 %v1875, %v1987
    %v1989 = vpop.f32.mrf.mxu0
    %v1990 = vadd.f32 %v1877, %v1989
    %v1991 = vpop.f32.mrf.mxu0
    %v1992 = vadd.f32 %v1879, %v1991
    %v1993 = vpop.f32.mrf.mxu0
    %v1994 = vadd.f32 %v1881, %v1993
    %1995 = vmatprep.mubr.bf16.mxu0 %v624
    %1996 = vmatmul.mubr.bf16.gmra.mxu0 %v623
    %v1997 = vpop.f32.mrf.mxu0
    %v1998 = vadd.f32 %v1885, %v1997
    %v1999 = vpop.f32.mrf.mxu0
    %v2000 = vadd.f32 %v1887, %v1999
    %v2001 = vpop.f32.mrf.mxu0
    %v2002 = vadd.f32 %v1889, %v2001
    %v2003 = vpop.f32.mrf.mxu0
    %v2004 = vadd.f32 %v1891, %v2003
    %2005 = vmatprep.mubr.bf16.mxu0 %v631
    %2006 = vmatmul.mubr.bf16.gmra.mxu0 %v630
    %v2007 = vpop.f32.mrf.mxu0
    %v2008 = vadd.f32 %v1895, %v2007
    %v2009 = vpop.f32.mrf.mxu0
    %v2010 = vadd.f32 %v1897, %v2009
    %v2011 = vpop.f32.mrf.mxu0
    %v2012 = vadd.f32 %v1899, %v2011
    %v2013 = vpop.f32.mrf.mxu0
    %v2014 = vadd.f32 %v1901, %v2013
    %2015 = vmatprep.mubr.bf16.mxu0 %v638
    %2016 = vmatmul.mubr.bf16.gmra.mxu0 %v637
    %v2017 = vpop.f32.mrf.mxu0
    %v2018 = vadd.f32 %v1905, %v2017
    %v2019 = vpop.f32.mrf.mxu0
    %v2020 = vadd.f32 %v1907, %v2019
    %v2021 = vpop.f32.mrf.mxu0
    %v2022 = vadd.f32 %v1909, %v2021
    %v2023 = vpop.f32.mrf.mxu0
    %v2024 = vadd.f32 %v1911, %v2023
    %2025 = vmatprep.mubr.bf16.mxu0 %v645
    %2026 = vmatmul.mubr.bf16.gmra.mxu0 %v644
    %v2027 = vpop.f32.mrf.mxu0
    %v2028 = vadd.f32 %v1915, %v2027
    %v2029 = vpop.f32.mrf.mxu0
    %v2030 = vadd.f32 %v1917, %v2029
    %v2031 = vpop.f32.mrf.mxu0
    %v2032 = vadd.f32 %v1919, %v2031
    %v2033 = vpop.f32.mrf.mxu0
    %v2034 = vadd.f32 %v1921, %v2033
    %2035 = vmatprep.mubr.bf16.mxu0 %v652
    %2036 = vmatmul.mubr.bf16.gmra.mxu0 %v651
    %v2037 = vpop.f32.mrf.mxu0
    %v2038 = vadd.f32 %v1925, %v2037
    %v2039 = vpop.f32.mrf.mxu0
    %v2040 = vadd.f32 %v1927, %v2039
    %v2041 = vpop.f32.mrf.mxu0
    %v2042 = vadd.f32 %v1929, %v2041
    %v2043 = vpop.f32.mrf.mxu0
    %v2044 = vadd.f32 %v1931, %v2043
    %2045 = vdwg.mxu0
    %2046 = vmatprep.subr.bf16.mxu0 0
    %2047 = vmatpush1.bf16.msra.mxu0 0
    %2048 = vmatprep.subr.bf16.mxu0 0
    %2049 = vmatpush1.bf16.msra.mxu0 0
    %2050 = vmatprep.subr.bf16.mxu0 0
    %2051 = vmatpush1.bf16.msra.mxu0 0
    %2052 = vmatprep.subr.bf16.mxu0 0
    %2053 = vmatpush1.bf16.msra.mxu0 0
    %2054 = vmatprep.subr.bf16.mxu0 0
    %2055 = vmatpush1.bf16.msra.mxu0 0
    %2056 = vmatprep.subr.bf16.mxu0 0
    %2057 = vmatpush1.bf16.msra.mxu0 0
    %2058 = vmatprep.subr.bf16.mxu0 0
    %2059 = vmatpush1.bf16.msra.mxu0 0
    %2060 = vmatprep.subr.bf16.mxu0 %v1483
    %2061 = vmatpush1.bf16.msra.mxu0 %v1482
    %2062 = vmatprep.subr.bf16.mxu0 0
    %2063 = vmatpush2.bf16.msra.mxu0 0
    %2064 = vmatprep.subr.bf16.mxu0 0
    %2065 = vmatpush2.bf16.msra.mxu0 0
    %2066 = vmatprep.subr.bf16.mxu0 0
    %2067 = vmatpush2.bf16.msra.mxu0 0
    %2068 = vmatprep.subr.bf16.mxu0 0
    %2069 = vmatpush2.bf16.msra.mxu0 0
    %2070 = vmatprep.subr.bf16.mxu0 0
    %2071 = vmatpush2.bf16.msra.mxu0 0
    %2072 = vmatprep.subr.bf16.mxu0 0
    %2073 = vmatpush2.bf16.msra.mxu0 0
    %2074 = vmatprep.subr.bf16.mxu0 0
    %2075 = vmatpush2.bf16.msra.mxu0 0
    %2076 = vmatprep.subr.bf16.mxu0 0
    %2077 = vmatpush2.bf16.msra.mxu0 0
    %2078 = vmatprep.mubr.bf16.mxu0 0
    %2079 = vmatmul.mubr.bf16.gmra.mxu0 %v1684
    %v2080 = vpop.f32.mrf.mxu0
    %v2081 = vadd.f32 %v1968, %v2080
    %v2082 = vpop.f32.mrf.mxu0
    %v2083 = vadd.f32 %v1970, %v2082
    %v2084 = vpop.f32.mrf.mxu0
    %v2085 = vadd.f32 %v1972, %v2084
    %v2086 = vpop.f32.mrf.mxu0
    %v2087 = vadd.f32 %v1974, %v2086
    %2088 = vmatprep.mubr.bf16.mxu0 0
    %2089 = vmatmul.mubr.bf16.gmra.mxu0 %v1687
    %v2090 = vpop.f32.mrf.mxu0
    %v2091 = vadd.f32 %v1978, %v2090
    %v2092 = vpop.f32.mrf.mxu0
    %v2093 = vadd.f32 %v1980, %v2092
    %v2094 = vpop.f32.mrf.mxu0
    %v2095 = vadd.f32 %v1982, %v2094
    %v2096 = vpop.f32.mrf.mxu0
    %v2097 = vadd.f32 %v1984, %v2096
    %2098 = vmatprep.mubr.bf16.mxu0 0
    %2099 = vmatmul.mubr.bf16.gmra.mxu0 %v1690
    %v2100 = vpop.f32.mrf.mxu0
    %v2101 = vadd.f32 %v1988, %v2100
    %v2102 = vpop.f32.mrf.mxu0
    %v2103 = vadd.f32 %v1990, %v2102
    %v2104 = vpop.f32.mrf.mxu0
    %v2105 = vadd.f32 %v1992, %v2104
    %v2106 = vpop.f32.mrf.mxu0
    %v2107 = vadd.f32 %v1994, %v2106
    %2108 = vmatprep.mubr.bf16.mxu0 0
    %2109 = vmatmul.mubr.bf16.gmra.mxu0 %v1693
    %v2110 = vpop.f32.mrf.mxu0
    %v2111 = vadd.f32 %v1998, %v2110
    %v2112 = vpop.f32.mrf.mxu0
    %v2113 = vadd.f32 %v2000, %v2112
    %v2114 = vpop.f32.mrf.mxu0
    %v2115 = vadd.f32 %v2002, %v2114
    %v2116 = vpop.f32.mrf.mxu0
    %v2117 = vadd.f32 %v2004, %v2116
    %2118 = vmatprep.mubr.bf16.mxu0 0
    %2119 = vmatmul.mubr.bf16.gmra.mxu0 %v1696
    %v2120 = vpop.f32.mrf.mxu0
    %v2121 = vadd.f32 %v2008, %v2120
    %v2122 = vpop.f32.mrf.mxu0
    %v2123 = vadd.f32 %v2010, %v2122
    %v2124 = vpop.f32.mrf.mxu0
    %v2125 = vadd.f32 %v2012, %v2124
    %v2126 = vpop.f32.mrf.mxu0
    %v2127 = vadd.f32 %v2014, %v2126
    %2128 = vmatprep.mubr.bf16.mxu0 0
    %2129 = vmatmul.mubr.bf16.gmra.mxu0 %v1699
    %v2130 = vpop.f32.mrf.mxu0
    %v2131 = vadd.f32 %v2018, %v2130
    %v2132 = vpop.f32.mrf.mxu0
    %v2133 = vadd.f32 %v2020, %v2132
    %v2134 = vpop.f32.mrf.mxu0
    %v2135 = vadd.f32 %v2022, %v2134
    %v2136 = vpop.f32.mrf.mxu0
    %v2137 = vadd.f32 %v2024, %v2136
    %2138 = vmatprep.mubr.bf16.mxu0 0
    %2139 = vmatmul.mubr.bf16.gmra.mxu0 %v1702
    %v2140 = vpop.f32.mrf.mxu0
    %v2141 = vadd.f32 %v2028, %v2140
    %v2142 = vpop.f32.mrf.mxu0
    %v2143 = vadd.f32 %v2030, %v2142
    %v2144 = vpop.f32.mrf.mxu0
    %v2145 = vadd.f32 %v2032, %v2144
    %v2146 = vpop.f32.mrf.mxu0
    %v2147 = vadd.f32 %v2034, %v2146
    %2148 = vmatprep.mubr.bf16.mxu0 0
    %2149 = vmatmul.mubr.bf16.gmra.mxu0 %v1705
    %v2150 = vpop.f32.mrf.mxu0
    %v2151 = vadd.f32 %v2038, %v2150
    %v2152 = vpop.f32.mrf.mxu0
    %v2153 = vadd.f32 %v2040, %v2152
    %v2154 = vpop.f32.mrf.mxu0
    %v2155 = vadd.f32 %v2042, %v2154
    %v2156 = vpop.f32.mrf.mxu0
    %v2157 = vadd.f32 %v2044, %v2156
    %2158 = vdwg.mxu0
    %2159 = vmatprep.subr.bf16.mxu0 %v1321
    %2160 = vmatpush1.bf16.msra.mxu0 %v1320
    %2161 = vmatprep.subr.bf16.mxu0 %v1317
    %2162 = vmatpush1.bf16.msra.mxu0 %v1316
    %2163 = vmatprep.subr.bf16.mxu0 %v1313
    %2164 = vmatpush1.bf16.msra.mxu0 %v1312
    %2165 = vmatprep.subr.bf16.mxu0 %v1309
    %2166 = vmatpush1.bf16.msra.mxu0 %v1308
    %2167 = vmatprep.subr.bf16.mxu0 %v1305
    %2168 = vmatpush1.bf16.msra.mxu0 %v1304
    %2169 = vmatprep.subr.bf16.mxu0 %v1301
    %2170 = vmatpush1.bf16.msra.mxu0 %v1300
    %2171 = vmatprep.subr.bf16.mxu0 %v1297
    %2172 = vmatpush1.bf16.msra.mxu0 %v1296
    %2173 = vmatprep.subr.bf16.mxu0 %v1293
    %2174 = vmatpush1.bf16.msra.mxu0 %v1292
    %2175 = vmatprep.subr.bf16.mxu0 %v1353
    %2176 = vmatpush2.bf16.msra.mxu0 %v1352
    %2177 = vmatprep.subr.bf16.mxu0 %v1349
    %2178 = vmatpush2.bf16.msra.mxu0 %v1348
    %2179 = vmatprep.subr.bf16.mxu0 %v1345
    %2180 = vmatpush2.bf16.msra.mxu0 %v1344
    %2181 = vmatprep.subr.bf16.mxu0 %v1341
    %2182 = vmatpush2.bf16.msra.mxu0 %v1340
    %2183 = vmatprep.subr.bf16.mxu0 %v1337
    %2184 = vmatpush2.bf16.msra.mxu0 %v1336
    %2185 = vmatprep.subr.bf16.mxu0 %v1333
    %2186 = vmatpush2.bf16.msra.mxu0 %v1332
    %2187 = vmatprep.subr.bf16.mxu0 %v1329
    %2188 = vmatpush2.bf16.msra.mxu0 %v1328
    %2189 = vmatprep.subr.bf16.mxu0 %v1325
    %2190 = vmatpush2.bf16.msra.mxu0 %v1324
    %2191 = vmatprep.mubr.bf16.mxu0 %v599
    %2192 = vmatmul.mubr.bf16.gmra.mxu0 %v598
    %v2193 = vpop.f32.mrf.mxu0
    %v2194 = vadd.f32 %v413, %v2193
    %v2195 = vpop.f32.mrf.mxu0
    %v2196 = vadd.f32 %v417, %v2195
    %v2197 = vpop.f32.mrf.mxu0
    %v2198 = vadd.f32 %v413, %v2197
    %v2199 = vpop.f32.mrf.mxu0
    %v2200 = vadd.f32 %v417, %v2199
    %2201 = vmatprep.mubr.bf16.mxu0 %v606
    %2202 = vmatmul.mubr.bf16.gmra.mxu0 %v605
    %v2203 = vpop.f32.mrf.mxu0
    %v2204 = vadd.f32 %v413, %v2203
    %v2205 = vpop.f32.mrf.mxu0
    %v2206 = vadd.f32 %v417, %v2205
    %v2207 = vpop.f32.mrf.mxu0
    %v2208 = vadd.f32 %v413, %v2207
    %v2209 = vpop.f32.mrf.mxu0
    %v2210 = vadd.f32 %v417, %v2209
    %2211 = vmatprep.mubr.bf16.mxu0 %v613
    %2212 = vmatmul.mubr.bf16.gmra.mxu0 %v612
    %v2213 = vpop.f32.mrf.mxu0
    %v2214 = vadd.f32 %v413, %v2213
    %v2215 = vpop.f32.mrf.mxu0
    %v2216 = vadd.f32 %v417, %v2215
    %v2217 = vpop.f32.mrf.mxu0
    %v2218 = vadd.f32 %v413, %v2217
    %v2219 = vpop.f32.mrf.mxu0
    %v2220 = vadd.f32 %v417, %v2219
    %2221 = vmatprep.mubr.bf16.mxu0 %v620
    %2222 = vmatmul.mubr.bf16.gmra.mxu0 %v619
    %v2223 = vpop.f32.mrf.mxu0
    %v2224 = vadd.f32 %v413, %v2223
    %v2225 = vpop.f32.mrf.mxu0
    %v2226 = vadd.f32 %v417, %v2225
    %v2227 = vpop.f32.mrf.mxu0
    %v2228 = vadd.f32 %v413, %v2227
    %v2229 = vpop.f32.mrf.mxu0
    %v2230 = vadd.f32 %v417, %v2229
    %2231 = vmatprep.mubr.bf16.mxu0 %v627
    %2232 = vmatmul.mubr.bf16.gmra.mxu0 %v626
    %v2233 = vpop.f32.mrf.mxu0
    %v2234 = vadd.f32 %v413, %v2233
    %v2235 = vpop.f32.mrf.mxu0
    %v2236 = vadd.f32 %v417, %v2235
    %v2237 = vpop.f32.mrf.mxu0
    %v2238 = vadd.f32 %v413, %v2237
    %v2239 = vpop.f32.mrf.mxu0
    %v2240 = vadd.f32 %v417, %v2239
    %2241 = vmatprep.mubr.bf16.mxu0 %v634
    %2242 = vmatmul.mubr.bf16.gmra.mxu0 %v633
    %v2243 = vpop.f32.mrf.mxu0
    %v2244 = vadd.f32 %v413, %v2243
    %v2245 = vpop.f32.mrf.mxu0
    %v2246 = vadd.f32 %v417, %v2245
    %v2247 = vpop.f32.mrf.mxu0
    %v2248 = vadd.f32 %v413, %v2247
    %v2249 = vpop.f32.mrf.mxu0
    %v2250 = vadd.f32 %v417, %v2249
    %2251 = vmatprep.mubr.bf16.mxu0 %v641
    %2252 = vmatmul.mubr.bf16.gmra.mxu0 %v640
    %v2253 = vpop.f32.mrf.mxu0
    %v2254 = vadd.f32 %v413, %v2253
    %v2255 = vpop.f32.mrf.mxu0
    %v2256 = vadd.f32 %v417, %v2255
    %v2257 = vpop.f32.mrf.mxu0
    %v2258 = vadd.f32 %v413, %v2257
    %v2259 = vpop.f32.mrf.mxu0
    %v2260 = vadd.f32 %v417, %v2259
    %2261 = vmatprep.mubr.bf16.mxu0 %v648
    %2262 = vmatmul.mubr.bf16.gmra.mxu0 %v647
    %v2263 = vpop.f32.mrf.mxu0
    %v2264 = vadd.f32 %v413, %v2263
    %v2265 = vpop.f32.mrf.mxu0
    %v2266 = vadd.f32 %v417, %v2265
    %v2267 = vpop.f32.mrf.mxu0
    %v2268 = vadd.f32 %v413, %v2267
    %v2269 = vpop.f32.mrf.mxu0
    %v2270 = vadd.f32 %v417, %v2269
    %2271 = vdwg.mxu0
    %2272 = vmatprep.subr.bf16.mxu0 %v1385
    %2273 = vmatpush1.bf16.msra.mxu0 %v1384
    %2274 = vmatprep.subr.bf16.mxu0 %v1381
    %2275 = vmatpush1.bf16.msra.mxu0 %v1380
    %2276 = vmatprep.subr.bf16.mxu0 %v1377
    %2277 = vmatpush1.bf16.msra.mxu0 %v1376
    %2278 = vmatprep.subr.bf16.mxu0 %v1373
    %2279 = vmatpush1.bf16.msra.mxu0 %v1372
    %2280 = vmatprep.subr.bf16.mxu0 %v1369
    %2281 = vmatpush1.bf16.msra.mxu0 %v1368
    %2282 = vmatprep.subr.bf16.mxu0 %v1365
    %2283 = vmatpush1.bf16.msra.mxu0 %v1364
    %2284 = vmatprep.subr.bf16.mxu0 %v1361
    %2285 = vmatpush1.bf16.msra.mxu0 %v1360
    %2286 = vmatprep.subr.bf16.mxu0 %v1357
    %2287 = vmatpush1.bf16.msra.mxu0 %v1356
    %2288 = vmatprep.subr.bf16.mxu0 %v1417
    %2289 = vmatpush2.bf16.msra.mxu0 %v1416
    %2290 = vmatprep.subr.bf16.mxu0 %v1413
    %2291 = vmatpush2.bf16.msra.mxu0 %v1412
    %2292 = vmatprep.subr.bf16.mxu0 %v1409
    %2293 = vmatpush2.bf16.msra.mxu0 %v1408
    %2294 = vmatprep.subr.bf16.mxu0 %v1405
    %2295 = vmatpush2.bf16.msra.mxu0 %v1404
    %2296 = vmatprep.subr.bf16.mxu0 %v1401
    %2297 = vmatpush2.bf16.msra.mxu0 %v1400
    %2298 = vmatprep.subr.bf16.mxu0 %v1397
    %2299 = vmatpush2.bf16.msra.mxu0 %v1396
    %2300 = vmatprep.subr.bf16.mxu0 %v1393
    %2301 = vmatpush2.bf16.msra.mxu0 %v1392
    %2302 = vmatprep.subr.bf16.mxu0 %v1389
    %2303 = vmatpush2.bf16.msra.mxu0 %v1388
    %2304 = vmatprep.mubr.bf16.mxu0 %v601
    %2305 = vmatmul.mubr.bf16.gmra.mxu0 %v600
    %v2306 = vpop.f32.mrf.mxu0
    %v2307 = vadd.f32 %v2194, %v2306
    %v2308 = vpop.f32.mrf.mxu0
    %v2309 = vadd.f32 %v2196, %v2308
    %v2310 = vpop.f32.mrf.mxu0
    %v2311 = vadd.f32 %v2198, %v2310
    %v2312 = vpop.f32.mrf.mxu0
    %v2313 = vadd.f32 %v2200, %v2312
    %2314 = vmatprep.mubr.bf16.mxu0 %v608
    %2315 = vmatmul.mubr.bf16.gmra.mxu0 %v607
    %v2316 = vpop.f32.mrf.mxu0
    %v2317 = vadd.f32 %v2204, %v2316
    %v2318 = vpop.f32.mrf.mxu0
    %v2319 = vadd.f32 %v2206, %v2318
    %v2320 = vpop.f32.mrf.mxu0
    %v2321 = vadd.f32 %v2208, %v2320
    %v2322 = vpop.f32.mrf.mxu0
    %v2323 = vadd.f32 %v2210, %v2322
    %2324 = vmatprep.mubr.bf16.mxu0 %v615
    %2325 = vmatmul.mubr.bf16.gmra.mxu0 %v614
    %v2326 = vpop.f32.mrf.mxu0
    %v2327 = vadd.f32 %v2214, %v2326
    %v2328 = vpop.f32.mrf.mxu0
    %v2329 = vadd.f32 %v2216, %v2328
    %v2330 = vpop.f32.mrf.mxu0
    %v2331 = vadd.f32 %v2218, %v2330
    %v2332 = vpop.f32.mrf.mxu0
    %v2333 = vadd.f32 %v2220, %v2332
    %2334 = vmatprep.mubr.bf16.mxu0 %v622
    %2335 = vmatmul.mubr.bf16.gmra.mxu0 %v621
    %v2336 = vpop.f32.mrf.mxu0
    %v2337 = vadd.f32 %v2224, %v2336
    %v2338 = vpop.f32.mrf.mxu0
    %v2339 = vadd.f32 %v2226, %v2338
    %v2340 = vpop.f32.mrf.mxu0
    %v2341 = vadd.f32 %v2228, %v2340
    %v2342 = vpop.f32.mrf.mxu0
    %v2343 = vadd.f32 %v2230, %v2342
    %2344 = vmatprep.mubr.bf16.mxu0 %v629
    %2345 = vmatmul.mubr.bf16.gmra.mxu0 %v628
    %v2346 = vpop.f32.mrf.mxu0
    %v2347 = vadd.f32 %v2234, %v2346
    %v2348 = vpop.f32.mrf.mxu0
    %v2349 = vadd.f32 %v2236, %v2348
    %v2350 = vpop.f32.mrf.mxu0
    %v2351 = vadd.f32 %v2238, %v2350
    %v2352 = vpop.f32.mrf.mxu0
    %v2353 = vadd.f32 %v2240, %v2352
    %2354 = vmatprep.mubr.bf16.mxu0 %v636
    %2355 = vmatmul.mubr.bf16.gmra.mxu0 %v635
    %v2356 = vpop.f32.mrf.mxu0
    %v2357 = vadd.f32 %v2244, %v2356
    %v2358 = vpop.f32.mrf.mxu0
    %v2359 = vadd.f32 %v2246, %v2358
    %v2360 = vpop.f32.mrf.mxu0
    %v2361 = vadd.f32 %v2248, %v2360
    %v2362 = vpop.f32.mrf.mxu0
    %v2363 = vadd.f32 %v2250, %v2362
    %2364 = vmatprep.mubr.bf16.mxu0 %v643
    %2365 = vmatmul.mubr.bf16.gmra.mxu0 %v642
    %v2366 = vpop.f32.mrf.mxu0
    %v2367 = vadd.f32 %v2254, %v2366
    %v2368 = vpop.f32.mrf.mxu0
    %v2369 = vadd.f32 %v2256, %v2368
    %v2370 = vpop.f32.mrf.mxu0
    %v2371 = vadd.f32 %v2258, %v2370
    %v2372 = vpop.f32.mrf.mxu0
    %v2373 = vadd.f32 %v2260, %v2372
    %2374 = vmatprep.mubr.bf16.mxu0 %v650
    %2375 = vmatmul.mubr.bf16.gmra.mxu0 %v649
    %v2376 = vpop.f32.mrf.mxu0
    %v2377 = vadd.f32 %v2264, %v2376
    %v2378 = vpop.f32.mrf.mxu0
    %v2379 = vadd.f32 %v2266, %v2378
    %v2380 = vpop.f32.mrf.mxu0
    %v2381 = vadd.f32 %v2268, %v2380
    %v2382 = vpop.f32.mrf.mxu0
    %v2383 = vadd.f32 %v2270, %v2382
    %2384 = vdwg.mxu0
    %2385 = vmatprep.subr.bf16.mxu0 %v1449
    %2386 = vmatpush1.bf16.msra.mxu0 %v1448
    %2387 = vmatprep.subr.bf16.mxu0 %v1445
    %2388 = vmatpush1.bf16.msra.mxu0 %v1444
    %2389 = vmatprep.subr.bf16.mxu0 %v1441
    %2390 = vmatpush1.bf16.msra.mxu0 %v1440
    %2391 = vmatprep.subr.bf16.mxu0 %v1437
    %2392 = vmatpush1.bf16.msra.mxu0 %v1436
    %2393 = vmatprep.subr.bf16.mxu0 %v1433
    %2394 = vmatpush1.bf16.msra.mxu0 %v1432
    %2395 = vmatprep.subr.bf16.mxu0 %v1429
    %2396 = vmatpush1.bf16.msra.mxu0 %v1428
    %2397 = vmatprep.subr.bf16.mxu0 %v1425
    %2398 = vmatpush1.bf16.msra.mxu0 %v1424
    %2399 = vmatprep.subr.bf16.mxu0 %v1421
    %2400 = vmatpush1.bf16.msra.mxu0 %v1420
    %2401 = vmatprep.subr.bf16.mxu0 %v1481
    %2402 = vmatpush2.bf16.msra.mxu0 %v1480
    %2403 = vmatprep.subr.bf16.mxu0 %v1477
    %2404 = vmatpush2.bf16.msra.mxu0 %v1476
    %2405 = vmatprep.subr.bf16.mxu0 %v1473
    %2406 = vmatpush2.bf16.msra.mxu0 %v1472
    %2407 = vmatprep.subr.bf16.mxu0 %v1469
    %2408 = vmatpush2.bf16.msra.mxu0 %v1468
    %2409 = vmatprep.subr.bf16.mxu0 %v1465
    %2410 = vmatpush2.bf16.msra.mxu0 %v1464
    %2411 = vmatprep.subr.bf16.mxu0 %v1461
    %2412 = vmatpush2.bf16.msra.mxu0 %v1460
    %2413 = vmatprep.subr.bf16.mxu0 %v1457
    %2414 = vmatpush2.bf16.msra.mxu0 %v1456
    %2415 = vmatprep.subr.bf16.mxu0 %v1453
    %2416 = vmatpush2.bf16.msra.mxu0 %v1452
    %2417 = vmatprep.mubr.bf16.mxu0 %v603
    %2418 = vmatmul.mubr.bf16.gmra.mxu0 %v602
    %v2419 = vpop.f32.mrf.mxu0
    %v2420 = vadd.f32 %v2307, %v2419
    %v2421 = vpop.f32.mrf.mxu0
    %v2422 = vadd.f32 %v2309, %v2421
    %v2423 = vpop.f32.mrf.mxu0
    %v2424 = vadd.f32 %v2311, %v2423
    %v2425 = vpop.f32.mrf.mxu0
    %v2426 = vadd.f32 %v2313, %v2425
    %2427 = vmatprep.mubr.bf16.mxu0 %v610
    %2428 = vmatmul.mubr.bf16.gmra.mxu0 %v609
    %v2429 = vpop.f32.mrf.mxu0
    %v2430 = vadd.f32 %v2317, %v2429
    %v2431 = vpop.f32.mrf.mxu0
    %v2432 = vadd.f32 %v2319, %v2431
    %v2433 = vpop.f32.mrf.mxu0
    %v2434 = vadd.f32 %v2321, %v2433
    %v2435 = vpop.f32.mrf.mxu0
    %v2436 = vadd.f32 %v2323, %v2435
    %2437 = vmatprep.mubr.bf16.mxu0 %v617
    %2438 = vmatmul.mubr.bf16.gmra.mxu0 %v616
    %v2439 = vpop.f32.mrf.mxu0
    %v2440 = vadd.f32 %v2327, %v2439
    %v2441 = vpop.f32.mrf.mxu0
    %v2442 = vadd.f32 %v2329, %v2441
    %v2443 = vpop.f32.mrf.mxu0
    %v2444 = vadd.f32 %v2331, %v2443
    %v2445 = vpop.f32.mrf.mxu0
    %v2446 = vadd.f32 %v2333, %v2445
    %2447 = vmatprep.mubr.bf16.mxu0 %v624
    %2448 = vmatmul.mubr.bf16.gmra.mxu0 %v623
    %v2449 = vpop.f32.mrf.mxu0
    %v2450 = vadd.f32 %v2337, %v2449
    %v2451 = vpop.f32.mrf.mxu0
    %v2452 = vadd.f32 %v2339, %v2451
    %v2453 = vpop.f32.mrf.mxu0
    %v2454 = vadd.f32 %v2341, %v2453
    %v2455 = vpop.f32.mrf.mxu0
    %v2456 = vadd.f32 %v2343, %v2455
    %2457 = vmatprep.mubr.bf16.mxu0 %v631
    %2458 = vmatmul.mubr.bf16.gmra.mxu0 %v630
    %v2459 = vpop.f32.mrf.mxu0
    %v2460 = vadd.f32 %v2347, %v2459
    %v2461 = vpop.f32.mrf.mxu0
    %v2462 = vadd.f32 %v2349, %v2461
    %v2463 = vpop.f32.mrf.mxu0
    %v2464 = vadd.f32 %v2351, %v2463
    %v2465 = vpop.f32.mrf.mxu0
    %v2466 = vadd.f32 %v2353, %v2465
    %2467 = vmatprep.mubr.bf16.mxu0 %v638
    %2468 = vmatmul.mubr.bf16.gmra.mxu0 %v637
    %v2469 = vpop.f32.mrf.mxu0
    %v2470 = vadd.f32 %v2357, %v2469
    %v2471 = vpop.f32.mrf.mxu0
    %v2472 = vadd.f32 %v2359, %v2471
    %v2473 = vpop.f32.mrf.mxu0
    %v2474 = vadd.f32 %v2361, %v2473
    %v2475 = vpop.f32.mrf.mxu0
    %v2476 = vadd.f32 %v2363, %v2475
    %2477 = vmatprep.mubr.bf16.mxu0 %v645
    %2478 = vmatmul.mubr.bf16.gmra.mxu0 %v644
    %v2479 = vpop.f32.mrf.mxu0
    %v2480 = vadd.f32 %v2367, %v2479
    %v2481 = vpop.f32.mrf.mxu0
    %v2482 = vadd.f32 %v2369, %v2481
    %v2483 = vpop.f32.mrf.mxu0
    %v2484 = vadd.f32 %v2371, %v2483
    %v2485 = vpop.f32.mrf.mxu0
    %v2486 = vadd.f32 %v2373, %v2485
    %2487 = vmatprep.mubr.bf16.mxu0 %v652
    %2488 = vmatmul.mubr.bf16.gmra.mxu0 %v651
    %v2489 = vpop.f32.mrf.mxu0
    %v2490 = vadd.f32 %v2377, %v2489
    %v2491 = vpop.f32.mrf.mxu0
    %v2492 = vadd.f32 %v2379, %v2491
    %v2493 = vpop.f32.mrf.mxu0
    %v2494 = vadd.f32 %v2381, %v2493
    %v2495 = vpop.f32.mrf.mxu0
    %v2496 = vadd.f32 %v2383, %v2495
    %2497 = vdwg.mxu0
    %2498 = vmatprep.subr.bf16.mxu0 0
    %2499 = vmatpush1.bf16.msra.mxu0 0
    %2500 = vmatprep.subr.bf16.mxu0 0
    %2501 = vmatpush1.bf16.msra.mxu0 0
    %2502 = vmatprep.subr.bf16.mxu0 0
    %2503 = vmatpush1.bf16.msra.mxu0 0
    %2504 = vmatprep.subr.bf16.mxu0 0
    %2505 = vmatpush1.bf16.msra.mxu0 0
    %2506 = vmatprep.subr.bf16.mxu0 0
    %2507 = vmatpush1.bf16.msra.mxu0 0
    %2508 = vmatprep.subr.bf16.mxu0 0
    %2509 = vmatpush1.bf16.msra.mxu0 0
    %2510 = vmatprep.subr.bf16.mxu0 0
    %2511 = vmatpush1.bf16.msra.mxu0 0
    %2512 = vmatprep.subr.bf16.mxu0 %v1485
    %2513 = vmatpush1.bf16.msra.mxu0 %v1484
    %2514 = vmatprep.subr.bf16.mxu0 0
    %2515 = vmatpush2.bf16.msra.mxu0 0
    %2516 = vmatprep.subr.bf16.mxu0 0
    %2517 = vmatpush2.bf16.msra.mxu0 0
    %2518 = vmatprep.subr.bf16.mxu0 0
    %2519 = vmatpush2.bf16.msra.mxu0 0
    %2520 = vmatprep.subr.bf16.mxu0 0
    %2521 = vmatpush2.bf16.msra.mxu0 0
    %2522 = vmatprep.subr.bf16.mxu0 0
    %2523 = vmatpush2.bf16.msra.mxu0 0
    %2524 = vmatprep.subr.bf16.mxu0 0
    %2525 = vmatpush2.bf16.msra.mxu0 0
    %2526 = vmatprep.subr.bf16.mxu0 0
    %2527 = vmatpush2.bf16.msra.mxu0 0
    %2528 = vmatprep.subr.bf16.mxu0 0
    %2529 = vmatpush2.bf16.msra.mxu0 0
    %2530 = vmatprep.mubr.bf16.mxu0 0
    %2531 = vmatmul.mubr.bf16.gmra.mxu0 %v1684
    %v2532 = vpop.f32.mrf.mxu0
    %v2533 = vadd.f32 %v2420, %v2532
    %v2534 = vpop.f32.mrf.mxu0
    %v2535 = vadd.f32 %v2422, %v2534
    %v2536 = vpop.f32.mrf.mxu0
    %v2537 = vadd.f32 %v2424, %v2536
    %v2538 = vpop.f32.mrf.mxu0
    %v2539 = vadd.f32 %v2426, %v2538
    %2540 = vmatprep.mubr.bf16.mxu0 0
    %2541 = vmatmul.mubr.bf16.gmra.mxu0 %v1687
    %v2542 = vpop.f32.mrf.mxu0
    %v2543 = vadd.f32 %v2430, %v2542
    %v2544 = vpop.f32.mrf.mxu0
    %v2545 = vadd.f32 %v2432, %v2544
    %v2546 = vpop.f32.mrf.mxu0
    %v2547 = vadd.f32 %v2434, %v2546
    %v2548 = vpop.f32.mrf.mxu0
    %v2549 = vadd.f32 %v2436, %v2548
    %2550 = vmatprep.mubr.bf16.mxu0 0
    %2551 = vmatmul.mubr.bf16.gmra.mxu0 %v1690
    %v2552 = vpop.f32.mrf.mxu0
    %v2553 = vadd.f32 %v2440, %v2552
    %v2554 = vpop.f32.mrf.mxu0
    %v2555 = vadd.f32 %v2442, %v2554
    %v2556 = vpop.f32.mrf.mxu0
    %v2557 = vadd.f32 %v2444, %v2556
    %v2558 = vpop.f32.mrf.mxu0
    %v2559 = vadd.f32 %v2446, %v2558
    %2560 = vmatprep.mubr.bf16.mxu0 0
    %2561 = vmatmul.mubr.bf16.gmra.mxu0 %v1693
    %v2562 = vpop.f32.mrf.mxu0
    %v2563 = vadd.f32 %v2450, %v2562
    %v2564 = vpop.f32.mrf.mxu0
    %v2565 = vadd.f32 %v2452, %v2564
    %v2566 = vpop.f32.mrf.mxu0
    %v2567 = vadd.f32 %v2454, %v2566
    %v2568 = vpop.f32.mrf.mxu0
    %v2569 = vadd.f32 %v2456, %v2568
    %2570 = vmatprep.mubr.bf16.mxu0 0
    %2571 = vmatmul.mubr.bf16.gmra.mxu0 %v1696
    %v2572 = vpop.f32.mrf.mxu0
    %v2573 = vadd.f32 %v2460, %v2572
    %v2574 = vpop.f32.mrf.mxu0
    %v2575 = vadd.f32 %v2462, %v2574
    %v2576 = vpop.f32.mrf.mxu0
    %v2577 = vadd.f32 %v2464, %v2576
    %v2578 = vpop.f32.mrf.mxu0
    %v2579 = vadd.f32 %v2466, %v2578
    %2580 = vmatprep.mubr.bf16.mxu0 0
    %2581 = vmatmul.mubr.bf16.gmra.mxu0 %v1699
    %v2582 = vpop.f32.mrf.mxu0
    %v2583 = vadd.f32 %v2470, %v2582
    %v2584 = vpop.f32.mrf.mxu0
    %v2585 = vadd.f32 %v2472, %v2584
    %v2586 = vpop.f32.mrf.mxu0
    %v2587 = vadd.f32 %v2474, %v2586
    %v2588 = vpop.f32.mrf.mxu0
    %v2589 = vadd.f32 %v2476, %v2588
    %2590 = vmatprep.mubr.bf16.mxu0 0
    %2591 = vmatmul.mubr.bf16.gmra.mxu0 %v1702
    %v2592 = vpop.f32.mrf.mxu0
    %v2593 = vadd.f32 %v2480, %v2592
    %v2594 = vpop.f32.mrf.mxu0
    %v2595 = vadd.f32 %v2482, %v2594
    %v2596 = vpop.f32.mrf.mxu0
    %v2597 = vadd.f32 %v2484, %v2596
    %v2598 = vpop.f32.mrf.mxu0
    %v2599 = vadd.f32 %v2486, %v2598
    %2600 = vmatprep.mubr.bf16.mxu0 0
    %2601 = vmatmul.mubr.bf16.gmra.mxu0 %v1705
    %v2602 = vpop.f32.mrf.mxu0
    %v2603 = vadd.f32 %v2490, %v2602
    %v2604 = vpop.f32.mrf.mxu0
    %v2605 = vadd.f32 %v2492, %v2604
    %v2606 = vpop.f32.mrf.mxu0
    %v2607 = vadd.f32 %v2494, %v2606
    %v2608 = vpop.f32.mrf.mxu0
    %v2609 = vadd.f32 %v2496, %v2608
    %2610 = vdwg.mxu0
    %v2611 = vld [vmem:[#allocation2] sm:$0xf]
    %v2612 = vld [vmem:[#allocation4] sm:$0xf]
    %v2613 = vadd.f32 %v2081, %v2085
    %v2614 = vadd.f32 %v2613, %v2091
    %v2615 = vadd.f32 %v2614, %v2095
    %v2616 = vadd.f32 %v2615, %v2101
    %v2617 = vadd.f32 %v2616, %v2105
    %v2618 = vadd.f32 %v2617, %v2111
    %v2619 = vadd.f32 %v2618, %v2115
    %v2620 = vadd.f32 %v2619, %v2121
    %v2621 = vadd.f32 %v2620, %v2125
    %v2622 = vadd.f32 %v2621, %v2131
    %v2623 = vadd.f32 %v2622, %v2135
    %v2624 = vadd.f32 %v2623, %v2141
    %v2625 = vadd.f32 %v2624, %v2145
    %v2626 = vadd.f32 %v2625, %v2151
    %v2627 = vadd.f32 %v2626, %v2155
    %v2628 = vrot.slane %v2627, 4
    %v2629 = vadd.f32 %v2627, %v2628
    %v2630 = vrot.slane %v2629, 2
    %v2631 = vadd.f32 %v2629, %v2630
    %v2632 = vrot.slane %v2631, 1
    %v2633 = vadd.f32 %v2631, %v2632
    %v2634 = vadd.f32 %v2083, %v2087
    %v2635 = vadd.f32 %v2634, %v2093
    %v2636 = vadd.f32 %v2635, %v2097
    %v2637 = vadd.f32 %v2636, %v2103
    %v2638 = vadd.f32 %v2637, %v2107
    %v2639 = vadd.f32 %v2638, %v2113
    %v2640 = vadd.f32 %v2639, %v2117
    %v2641 = vadd.f32 %v2640, %v2123
    %v2642 = vadd.f32 %v2641, %v2127
    %v2643 = vadd.f32 %v2642, %v2133
    %v2644 = vadd.f32 %v2643, %v2137
    %v2645 = vadd.f32 %v2644, %v2143
    %v2646 = vadd.f32 %v2645, %v2147
    %v2647 = vadd.f32 %v2646, %v2153
    %v2648 = vadd.f32 %v2647, %v2157
    %v2649 = vrot.slane %v2648, 4
    %v2650 = vadd.f32 %v2648, %v2649
    %v2651 = vrot.slane %v2650, 2
    %v2652 = vadd.f32 %v2650, %v2651
    %v2653 = vrot.slane %v2652, 1
    %v2654 = vadd.f32 %v2652, %v2653
    %v2655 = vadd.f32 %v2533, %v2537
    %v2656 = vadd.f32 %v2655, %v2543
    %v2657 = vadd.f32 %v2656, %v2547
    %v2658 = vadd.f32 %v2657, %v2553
    %v2659 = vadd.f32 %v2658, %v2557
    %v2660 = vadd.f32 %v2659, %v2563
    %v2661 = vadd.f32 %v2660, %v2567
    %v2662 = vadd.f32 %v2661, %v2573
    %v2663 = vadd.f32 %v2662, %v2577
    %v2664 = vadd.f32 %v2663, %v2583
    %v2665 = vadd.f32 %v2664, %v2587
    %v2666 = vadd.f32 %v2665, %v2593
    %v2667 = vadd.f32 %v2666, %v2597
    %v2668 = vadd.f32 %v2667, %v2603
    %v2669 = vadd.f32 %v2668, %v2607
    %v2670 = vrot.slane %v2669, 4
    %v2671 = vadd.f32 %v2669, %v2670
    %v2672 = vrot.slane %v2671, 2
    %v2673 = vadd.f32 %v2671, %v2672
    %v2674 = vrot.slane %v2673, 1
    %v2675 = vadd.f32 %v2673, %v2674
    %v2676 = vadd.f32 %v2535, %v2539
    %v2677 = vadd.f32 %v2676, %v2545
    %v2678 = vadd.f32 %v2677, %v2549
    %v2679 = vadd.f32 %v2678, %v2555
    %v2680 = vadd.f32 %v2679, %v2559
    %v2681 = vadd.f32 %v2680, %v2565
    %v2682 = vadd.f32 %v2681, %v2569
    %v2683 = vadd.f32 %v2682, %v2575
    %v2684 = vadd.f32 %v2683, %v2579
    %v2685 = vadd.f32 %v2684, %v2585
    %v2686 = vadd.f32 %v2685, %v2589
    %v2687 = vadd.f32 %v2686, %v2595
    %v2688 = vadd.f32 %v2687, %v2599
    %v2689 = vadd.f32 %v2688, %v2605
    %v2690 = vadd.f32 %v2689, %v2609
    %v2691 = vrot.slane %v2690, 4
    %v2692 = vadd.f32 %v2690, %v2691
    %v2693 = vrot.slane %v2692, 2
    %v2694 = vadd.f32 %v2692, %v2693
    %v2695 = vrot.slane %v2694, 1
    %v2696 = vadd.f32 %v2694, %v2695
    %v2697 = vmul.f32 %v2633, 0.0078125
    %v2698 = vmul.f32 %v2654, 0.0078125
    %v2699 = vmul.f32 %v2675, 0.0078125
    %v2700 = vmul.f32 %v2696, 0.0078125
    %v2701 = vsub.f32 %v2081, %v2697
    %v2702 = vsub.f32 %v2083, %v2698
    %v2703 = vsub.f32 %v2533, %v2699
    %v2704 = vsub.f32 %v2535, %v2700
    %v2705 = vsub.f32 %v2085, %v2697
    %v2706 = vsub.f32 %v2087, %v2698
    %v2707 = vsub.f32 %v2537, %v2699
    %v2708 = vsub.f32 %v2539, %v2700
    %v2709 = vsub.f32 %v2091, %v2697
    %v2710 = vsub.f32 %v2093, %v2698
    %v2711 = vsub.f32 %v2543, %v2699
    %v2712 = vsub.f32 %v2545, %v2700
    %v2713 = vsub.f32 %v2095, %v2697
    %v2714 = vsub.f32 %v2097, %v2698
    %v2715 = vsub.f32 %v2547, %v2699
    %v2716 = vsub.f32 %v2549, %v2700
    %v2717 = vsub.f32 %v2101, %v2697
    %v2718 = vsub.f32 %v2103, %v2698
    %v2719 = vsub.f32 %v2553, %v2699
    %v2720 = vsub.f32 %v2555, %v2700
    %v2721 = vsub.f32 %v2105, %v2697
    %v2722 = vsub.f32 %v2107, %v2698
    %v2723 = vsub.f32 %v2557, %v2699
    %v2724 = vsub.f32 %v2559, %v2700
    %v2725 = vsub.f32 %v2111, %v2697
    %v2726 = vsub.f32 %v2113, %v2698
    %v2727 = vsub.f32 %v2563, %v2699
    %v2728 = vsub.f32 %v2565, %v2700
    %v2729 = vsub.f32 %v2115, %v2697
    %v2730 = vsub.f32 %v2117, %v2698
    %v2731 = vsub.f32 %v2567, %v2699
    %v2732 = vsub.f32 %v2569, %v2700
    %v2733 = vsub.f32 %v2121, %v2697
    %v2734 = vsub.f32 %v2123, %v2698
    %v2735 = vsub.f32 %v2573, %v2699
    %v2736 = vsub.f32 %v2575, %v2700
    %v2737 = vsub.f32 %v2125, %v2697
    %v2738 = vsub.f32 %v2127, %v2698
    %v2739 = vsub.f32 %v2577, %v2699
    %v2740 = vsub.f32 %v2579, %v2700
    %v2741 = vsub.f32 %v2131, %v2697
    %v2742 = vsub.f32 %v2133, %v2698
    %v2743 = vsub.f32 %v2583, %v2699
    %v2744 = vsub.f32 %v2585, %v2700
    %v2745 = vsub.f32 %v2135, %v2697
    %v2746 = vsub.f32 %v2137, %v2698
    %v2747 = vsub.f32 %v2587, %v2699
    %v2748 = vsub.f32 %v2589, %v2700
    %v2749 = vsub.f32 %v2141, %v2697
    %v2750 = vsub.f32 %v2143, %v2698
    %v2751 = vsub.f32 %v2593, %v2699
    %v2752 = vsub.f32 %v2595, %v2700
    %v2753 = vsub.f32 %v2145, %v2697
    %v2754 = vsub.f32 %v2147, %v2698
    %v2755 = vsub.f32 %v2597, %v2699
    %v2756 = vsub.f32 %v2599, %v2700
    %v2757 = vsub.f32 %v2151, %v2697
    %v2758 = vsub.f32 %v2153, %v2698
    %v2759 = vsub.f32 %v2603, %v2699
    %v2760 = vsub.f32 %v2605, %v2700
    %v2761 = vsub.f32 %v2155, %v2697
    %v2762 = vsub.f32 %v2157, %v2698
    %v2763 = vsub.f32 %v2607, %v2699
    %v2764 = vsub.f32 %v2609, %v2700
    %v2765 = vmul.f32 %v2701, %v2701
    %v2766 = vmul.f32 %v2702, %v2702
    %v2767 = vmul.f32 %v2703, %v2703
    %v2768 = vmul.f32 %v2704, %v2704
    %v2769 = vmul.f32 %v2705, %v2705
    %v2770 = vmul.f32 %v2706, %v2706
    %v2771 = vmul.f32 %v2707, %v2707
    %v2772 = vmul.f32 %v2708, %v2708
    %v2773 = vmul.f32 %v2709, %v2709
    %v2774 = vmul.f32 %v2710, %v2710
    %v2775 = vmul.f32 %v2711, %v2711
    %v2776 = vmul.f32 %v2712, %v2712
    %v2777 = vmul.f32 %v2713, %v2713
    %v2778 = vmul.f32 %v2714, %v2714
    %v2779 = vmul.f32 %v2715, %v2715
    %v2780 = vmul.f32 %v2716, %v2716
    %v2781 = vmul.f32 %v2717, %v2717
    %v2782 = vmul.f32 %v2718, %v2718
    %v2783 = vmul.f32 %v2719, %v2719
    %v2784 = vmul.f32 %v2720, %v2720
    %v2785 = vmul.f32 %v2721, %v2721
    %v2786 = vmul.f32 %v2722, %v2722
    %v2787 = vmul.f32 %v2723, %v2723
    %v2788 = vmul.f32 %v2724, %v2724
    %v2789 = vmul.f32 %v2725, %v2725
    %v2790 = vmul.f32 %v2726, %v2726
    %v2791 = vmul.f32 %v2727, %v2727
    %v2792 = vmul.f32 %v2728, %v2728
    %v2793 = vmul.f32 %v2729, %v2729
    %v2794 = vmul.f32 %v2730, %v2730
    %v2795 = vmul.f32 %v2731, %v2731
    %v2796 = vmul.f32 %v2732, %v2732
    %v2797 = vmul.f32 %v2733, %v2733
    %v2798 = vmul.f32 %v2734, %v2734
    %v2799 = vmul.f32 %v2735, %v2735
    %v2800 = vmul.f32 %v2736, %v2736
    %v2801 = vmul.f32 %v2737, %v2737
    %v2802 = vmul.f32 %v2738, %v2738
    %v2803 = vmul.f32 %v2739, %v2739
    %v2804 = vmul.f32 %v2740, %v2740
    %v2805 = vmul.f32 %v2741, %v2741
    %v2806 = vmul.f32 %v2742, %v2742
    %v2807 = vmul.f32 %v2743, %v2743
    %v2808 = vmul.f32 %v2744, %v2744
    %v2809 = vmul.f32 %v2745, %v2745
    %v2810 = vmul.f32 %v2746, %v2746
    %v2811 = vmul.f32 %v2747, %v2747
    %v2812 = vmul.f32 %v2748, %v2748
    %v2813 = vmul.f32 %v2749, %v2749
    %v2814 = vmul.f32 %v2750, %v2750
    %v2815 = vmul.f32 %v2751, %v2751
    %v2816 = vmul.f32 %v2752, %v2752
    %v2817 = vmul.f32 %v2753, %v2753
    %v2818 = vmul.f32 %v2754, %v2754
    %v2819 = vmul.f32 %v2755, %v2755
    %v2820 = vmul.f32 %v2756, %v2756
    %v2821 = vmul.f32 %v2757, %v2757
    %v2822 = vmul.f32 %v2758, %v2758
    %v2823 = vmul.f32 %v2759, %v2759
    %v2824 = vmul.f32 %v2760, %v2760
    %v2825 = vmul.f32 %v2761, %v2761
    %v2826 = vmul.f32 %v2762, %v2762
    %v2827 = vmul.f32 %v2763, %v2763
    %v2828 = vmul.f32 %v2764, %v2764
    %v2829 = vadd.f32 %v2765, %v2769
    %v2830 = vadd.f32 %v2829, %v2773
    %v2831 = vadd.f32 %v2830, %v2777
    %v2832 = vadd.f32 %v2831, %v2781
    %v2833 = vadd.f32 %v2832, %v2785
    %v2834 = vadd.f32 %v2833, %v2789
    %v2835 = vadd.f32 %v2834, %v2793
    %v2836 = vadd.f32 %v2835, %v2797
    %v2837 = vadd.f32 %v2836, %v2801
    %v2838 = vadd.f32 %v2837, %v2805
    %v2839 = vadd.f32 %v2838, %v2809
    %v2840 = vadd.f32 %v2839, %v2813
    %v2841 = vadd.f32 %v2840, %v2817
    %v2842 = vadd.f32 %v2841, %v2821
    %v2843 = vadd.f32 %v2842, %v2825
    %v2844 = vrot.slane %v2843, 4
    %v2845 = vadd.f32 %v2843, %v2844
    %v2846 = vrot.slane %v2845, 2
    %v2847 = vadd.f32 %v2845, %v2846
    %v2848 = vrot.slane %v2847, 1
    %v2849 = vadd.f32 %v2847, %v2848
    %v2850 = vadd.f32 %v2766, %v2770
    %v2851 = vadd.f32 %v2850, %v2774
    %v2852 = vadd.f32 %v2851, %v2778
    %v2853 = vadd.f32 %v2852, %v2782
    %v2854 = vadd.f32 %v2853, %v2786
    %v2855 = vadd.f32 %v2854, %v2790
    %v2856 = vadd.f32 %v2855, %v2794
    %v2857 = vadd.f32 %v2856, %v2798
    %v2858 = vadd.f32 %v2857, %v2802
    %v2859 = vadd.f32 %v2858, %v2806
    %v2860 = vadd.f32 %v2859, %v2810
    %v2861 = vadd.f32 %v2860, %v2814
    %v2862 = vadd.f32 %v2861, %v2818
    %v2863 = vadd.f32 %v2862, %v2822
    %v2864 = vadd.f32 %v2863, %v2826
    %v2865 = vrot.slane %v2864, 4
    %v2866 = vadd.f32 %v2864, %v2865
    %v2867 = vrot.slane %v2866, 2
    %v2868 = vadd.f32 %v2866, %v2867
    %v2869 = vrot.slane %v2868, 1
    %v2870 = vadd.f32 %v2868, %v2869
    %v2871 = vadd.f32 %v2767, %v2771
    %v2872 = vadd.f32 %v2871, %v2775
    %v2873 = vadd.f32 %v2872, %v2779
    %v2874 = vadd.f32 %v2873, %v2783
    %v2875 = vadd.f32 %v2874, %v2787
    %v2876 = vadd.f32 %v2875, %v2791
    %v2877 = vadd.f32 %v2876, %v2795
    %v2878 = vadd.f32 %v2877, %v2799
    %v2879 = vadd.f32 %v2878, %v2803
    %v2880 = vadd.f32 %v2879, %v2807
    %v2881 = vadd.f32 %v2880, %v2811
    %v2882 = vadd.f32 %v2881, %v2815
    %v2883 = vadd.f32 %v2882, %v2819
    %v2884 = vadd.f32 %v2883, %v2823
    %v2885 = vadd.f32 %v2884, %v2827
    %v2886 = vrot.slane %v2885, 4
    %v2887 = vadd.f32 %v2885, %v2886
    %v2888 = vrot.slane %v2887, 2
    %v2889 = vadd.f32 %v2887, %v2888
    %v2890 = vrot.slane %v2889, 1
    %v2891 = vadd.f32 %v2889, %v2890
    %v2892 = vadd.f32 %v2768, %v2772
    %v2893 = vadd.f32 %v2892, %v2776
    %v2894 = vadd.f32 %v2893, %v2780
    %v2895 = vadd.f32 %v2894, %v2784
    %v2896 = vadd.f32 %v2895, %v2788
    %v2897 = vadd.f32 %v2896, %v2792
    %v2898 = vadd.f32 %v2897, %v2796
    %v2899 = vadd.f32 %v2898, %v2800
    %v2900 = vadd.f32 %v2899, %v2804
    %v2901 = vadd.f32 %v2900, %v2808
    %v2902 = vadd.f32 %v2901, %v2812
    %v2903 = vadd.f32 %v2902, %v2816
    %v2904 = vadd.f32 %v2903, %v2820
    %v2905 = vadd.f32 %v2904, %v2824
    %v2906 = vadd.f32 %v2905, %v2828
    %v2907 = vrot.slane %v2906, 4
    %v2908 = vadd.f32 %v2906, %v2907
    %v2909 = vrot.slane %v2908, 2
    %v2910 = vadd.f32 %v2908, %v2909
    %v2911 = vrot.slane %v2910, 1
    %v2912 = vadd.f32 %v2910, %v2911
    %v2913 = vmul.f32 %v2849, 0.0078125
    %v2914 = vmul.f32 %v2870, 0.0078125
    %v2915 = vmul.f32 %v2891, 0.0078125
    %v2916 = vmul.f32 %v2912, 0.0078125
    %v2917 = vadd.f32 %v2913, 1e-05
    %v2918 = vadd.f32 %v2914, 1e-05
    %v2919 = vadd.f32 %v2915, 1e-05
    %v2920 = vadd.f32 %v2916, 1e-05
    %v2921 = vrsqrt.pop %v2917
    %v2922 = vrsqrt.pop %v2918
    %v2923 = vrsqrt.pop %v2919
    %v2924 = vrsqrt.pop %v2920
    %v2929 = vcombine.low %v2921, %v2922
    %v2930 = vcombine.low %v2923, %v2924
    %v2932 = vunpack.c.l.s4 1966171168
    %v2933 = vunpack.c.0.s8 %v2932
    %v2934 = vlaneseq
    %v2935 = vshrl.u32 %v2934, 7
    %v2936 = vsub.s32 %v2933, %v2935
    %v2937 = vrot.slane %v2929, %v2936
    %v2939 = vunpack.c.l.s4 1966171168
    %v2940 = vunpack.c.0.s8 %v2939
    %v2941 = vlaneseq
    %v2942 = vshrl.u32 %v2941, 7
    %v2943 = vsub.s32 %v2940, %v2942
    %v2944 = vrot.slane %v2930, %v2943
    %v2945 = vcombine.low %v2937, %v2944
    %v2947 = vunpack.c.l.s4 1966171168
    %v2948 = vunpack.c.0.s8 %v2947
    %v2949 = vlaneseq
    %v2950 = vshrl.u32 %v2949, 7
    %v2951 = vsub.s32 %v2948, %v2950
    %v2952 = vrot.slane %v2945, %v2951
    %v2954 = vmul.f32 %v2611, %v2952
    %v2956 = vlaneseq
    %v2957 = vshrl.u32 %v2956, 7
    %v2958 = vsub.s32 0, %v2957
    %v2959 = vrot.slane %v2954, %v2958
    %v2960 = vlaneseq
    %v2961 = vshrl.u32 %v2960, 7
    %v2962 = vsub.s32 1, %v2961
    %v2963 = vrot.slane %v2954, %v2962
    %v2964 = vlaneseq
    %v2965 = vshrl.u32 %v2964, 7
    %v2966 = vsub.s32 2, %v2965
    %v2967 = vrot.slane %v2954, %v2966
    %v2968 = vlaneseq
    %v2969 = vshrl.u32 %v2968, 7
    %v2970 = vsub.s32 3, %v2969
    %v2971 = vrot.slane %v2954, %v2970
    %v2976 = vmul.f32 %v2697, %v2959
    %v2977 = vmul.f32 %v2698, %v2963
    %v2978 = vmul.f32 %v2699, %v2967
    %v2979 = vmul.f32 %v2700, %v2971
    %v2984 = vcombine.low %v2976, %v2977
    %v2985 = vcombine.low %v2978, %v2979
    %v2987 = vunpack.c.l.s4 1966171168
    %v2988 = vunpack.c.0.s8 %v2987
    %v2989 = vlaneseq
    %v2990 = vshrl.u32 %v2989, 7
    %v2991 = vsub.s32 %v2988, %v2990
    %v2992 = vrot.slane %v2984, %v2991
    %v2994 = vunpack.c.l.s4 1966171168
    %v2995 = vunpack.c.0.s8 %v2994
    %v2996 = vlaneseq
    %v2997 = vshrl.u32 %v2996, 7
    %v2998 = vsub.s32 %v2995, %v2997
    %v2999 = vrot.slane %v2985, %v2998
    %v3000 = vcombine.low %v2992, %v2999
    %v3002 = vunpack.c.l.s4 1966171168
    %v3003 = vunpack.c.0.s8 %v3002
    %v3004 = vlaneseq
    %v3005 = vshrl.u32 %v3004, 7
    %v3006 = vsub.s32 %v3003, %v3005
    %v3007 = vrot.slane %v3000, %v3006
    %v3009 = vsub.f32 %v2612, %v3007
    %v3010 = vmul.f32 %v2081, %v2959
    %v3011 = vmul.f32 %v2083, %v2963
    %v3012 = vmul.f32 %v2533, %v2967
    %v3013 = vmul.f32 %v2535, %v2971
    %v3014 = vmul.f32 %v2085, %v2959
    %v3015 = vmul.f32 %v2087, %v2963
    %v3016 = vmul.f32 %v2537, %v2967
    %v3017 = vmul.f32 %v2539, %v2971
    %v3018 = vmul.f32 %v2091, %v2959
    %v3019 = vmul.f32 %v2093, %v2963
    %v3020 = vmul.f32 %v2543, %v2967
    %v3021 = vmul.f32 %v2545, %v2971
    %v3022 = vmul.f32 %v2095, %v2959
    %v3023 = vmul.f32 %v2097, %v2963
    %v3024 = vmul.f32 %v2547, %v2967
    %v3025 = vmul.f32 %v2549, %v2971
    %v3026 = vmul.f32 %v2101, %v2959
    %v3027 = vmul.f32 %v2103, %v2963
    %v3028 = vmul.f32 %v2553, %v2967
    %v3029 = vmul.f32 %v2555, %v2971
    %v3030 = vmul.f32 %v2105, %v2959
    %v3031 = vmul.f32 %v2107, %v2963
    %v3032 = vmul.f32 %v2557, %v2967
    %v3033 = vmul.f32 %v2559, %v2971
    %v3034 = vmul.f32 %v2111, %v2959
    %v3035 = vmul.f32 %v2113, %v2963
    %v3036 = vmul.f32 %v2563, %v2967
    %v3037 = vmul.f32 %v2565, %v2971
    %v3038 = vmul.f32 %v2115, %v2959
    %v3039 = vmul.f32 %v2117, %v2963
    %v3040 = vmul.f32 %v2567, %v2967
    %v3041 = vmul.f32 %v2569, %v2971
    %v3042 = vmul.f32 %v2121, %v2959
    %v3043 = vmul.f32 %v2123, %v2963
    %v3044 = vmul.f32 %v2573, %v2967
    %v3045 = vmul.f32 %v2575, %v2971
    %v3046 = vmul.f32 %v2125, %v2959
    %v3047 = vmul.f32 %v2127, %v2963
    %v3048 = vmul.f32 %v2577, %v2967
    %v3049 = vmul.f32 %v2579, %v2971
    %v3050 = vmul.f32 %v2131, %v2959
    %v3051 = vmul.f32 %v2133, %v2963
    %v3052 = vmul.f32 %v2583, %v2967
    %v3053 = vmul.f32 %v2585, %v2971
    %v3054 = vmul.f32 %v2135, %v2959
    %v3055 = vmul.f32 %v2137, %v2963
    %v3056 = vmul.f32 %v2587, %v2967
    %v3057 = vmul.f32 %v2589, %v2971
    %v3058 = vmul.f32 %v2141, %v2959
    %v3059 = vmul.f32 %v2143, %v2963
    %v3060 = vmul.f32 %v2593, %v2967
    %v3061 = vmul.f32 %v2595, %v2971
    %v3062 = vmul.f32 %v2145, %v2959
    %v3063 = vmul.f32 %v2147, %v2963
    %v3064 = vmul.f32 %v2597, %v2967
    %v3065 = vmul.f32 %v2599, %v2971
    %v3066 = vmul.f32 %v2151, %v2959
    %v3067 = vmul.f32 %v2153, %v2963
    %v3068 = vmul.f32 %v2603, %v2967
    %v3069 = vmul.f32 %v2605, %v2971
    %v3070 = vmul.f32 %v2155, %v2959
    %v3071 = vmul.f32 %v2157, %v2963
    %v3072 = vmul.f32 %v2607, %v2967
    %v3073 = vmul.f32 %v2609, %v2971
    %v3075 = vlaneseq
    %v3076 = vshrl.u32 %v3075, 7
    %v3077 = vsub.s32 0, %v3076
    %v3078 = vrot.slane %v3009, %v3077
    %v3079 = vlaneseq
    %v3080 = vshrl.u32 %v3079, 7
    %v3081 = vsub.s32 1, %v3080
    %v3082 = vrot.slane %v3009, %v3081
    %v3083 = vlaneseq
    %v3084 = vshrl.u32 %v3083, 7
    %v3085 = vsub.s32 2, %v3084
    %v3086 = vrot.slane %v3009, %v3085
    %v3087 = vlaneseq
    %v3088 = vshrl.u32 %v3087, 7
    %v3089 = vsub.s32 3, %v3088
    %v3090 = vrot.slane %v3009, %v3089
    %v3095 = vadd.f32 %v3010, %v3078
    %v3096 = vadd.f32 %v3011, %v3082
    %v3097 = vadd.f32 %v3012, %v3086
    %v3098 = vadd.f32 %v3013, %v3090
    %v3099 = vadd.f32 %v3014, %v3078
    %v3100 = vadd.f32 %v3015, %v3082
    %v3101 = vadd.f32 %v3016, %v3086
    %v3102 = vadd.f32 %v3017, %v3090
    %v3103 = vadd.f32 %v3018, %v3078
    %v3104 = vadd.f32 %v3019, %v3082
    %v3105 = vadd.f32 %v3020, %v3086
    %v3106 = vadd.f32 %v3021, %v3090
    %v3107 = vadd.f32 %v3022, %v3078
    %v3108 = vadd.f32 %v3023, %v3082
    %v3109 = vadd.f32 %v3024, %v3086
    %v3110 = vadd.f32 %v3025, %v3090
    %v3111 = vadd.f32 %v3026, %v3078
    %v3112 = vadd.f32 %v3027, %v3082
    %v3113 = vadd.f32 %v3028, %v3086
    %v3114 = vadd.f32 %v3029, %v3090
    %v3115 = vadd.f32 %v3030, %v3078
    %v3116 = vadd.f32 %v3031, %v3082
    %v3117 = vadd.f32 %v3032, %v3086
    %v3118 = vadd.f32 %v3033, %v3090
    %v3119 = vadd.f32 %v3034, %v3078
    %v3120 = vadd.f32 %v3035, %v3082
    %v3121 = vadd.f32 %v3036, %v3086
    %v3122 = vadd.f32 %v3037, %v3090
    %v3123 = vadd.f32 %v3038, %v3078
    %v3124 = vadd.f32 %v3039, %v3082
    %v3125 = vadd.f32 %v3040, %v3086
    %v3126 = vadd.f32 %v3041, %v3090
    %v3127 = vadd.f32 %v3042, %v3078
    %v3128 = vadd.f32 %v3043, %v3082
    %v3129 = vadd.f32 %v3044, %v3086
    %v3130 = vadd.f32 %v3045, %v3090
    %v3131 = vadd.f32 %v3046, %v3078
    %v3132 = vadd.f32 %v3047, %v3082
    %v3133 = vadd.f32 %v3048, %v3086
    %v3134 = vadd.f32 %v3049, %v3090
    %v3135 = vadd.f32 %v3050, %v3078
    %v3136 = vadd.f32 %v3051, %v3082
    %v3137 = vadd.f32 %v3052, %v3086
    %v3138 = vadd.f32 %v3053, %v3090
    %v3139 = vadd.f32 %v3054, %v3078
    %v3140 = vadd.f32 %v3055, %v3082
    %v3141 = vadd.f32 %v3056, %v3086
    %v3142 = vadd.f32 %v3057, %v3090
    %v3143 = vadd.f32 %v3058, %v3078
    %v3144 = vadd.f32 %v3059, %v3082
    %v3145 = vadd.f32 %v3060, %v3086
    %v3146 = vadd.f32 %v3061, %v3090
    %v3147 = vadd.f32 %v3062, %v3078
    %v3148 = vadd.f32 %v3063, %v3082
    %v3149 = vadd.f32 %v3064, %v3086
    %v3150 = vadd.f32 %v3065, %v3090
    %v3151 = vadd.f32 %v3066, %v3078
    %v3152 = vadd.f32 %v3067, %v3082
    %v3153 = vadd.f32 %v3068, %v3086
    %v3154 = vadd.f32 %v3069, %v3090
    %v3155 = vadd.f32 %v3070, %v3078
    %v3156 = vadd.f32 %v3071, %v3082
    %v3157 = vadd.f32 %v3072, %v3086
    %v3158 = vadd.f32 %v3073, %v3090
    %v3159 = vmax.f32 %v3095, 0.0
    %v3160 = vmax.f32 %v3096, 0.0
    %v3161 = vmax.f32 %v3097, 0.0
    %v3162 = vmax.f32 %v3098, 0.0
    %v3163 = vmax.f32 %v3099, 0.0
    %v3164 = vmax.f32 %v3100, 0.0
    %v3165 = vmax.f32 %v3101, 0.0
    %v3166 = vmax.f32 %v3102, 0.0
    %v3167 = vmax.f32 %v3103, 0.0
    %v3168 = vmax.f32 %v3104, 0.0
    %v3169 = vmax.f32 %v3105, 0.0
    %v3170 = vmax.f32 %v3106, 0.0
    %v3171 = vmax.f32 %v3107, 0.0
    %v3172 = vmax.f32 %v3108, 0.0
    %v3173 = vmax.f32 %v3109, 0.0
    %v3174 = vmax.f32 %v3110, 0.0
    %v3175 = vmax.f32 %v3111, 0.0
    %v3176 = vmax.f32 %v3112, 0.0
    %v3177 = vmax.f32 %v3113, 0.0
    %v3178 = vmax.f32 %v3114, 0.0
    %v3179 = vmax.f32 %v3115, 0.0
    %v3180 = vmax.f32 %v3116, 0.0
    %v3181 = vmax.f32 %v3117, 0.0
    %v3182 = vmax.f32 %v3118, 0.0
    %v3183 = vmax.f32 %v3119, 0.0
    %v3184 = vmax.f32 %v3120, 0.0
    %v3185 = vmax.f32 %v3121, 0.0
    %v3186 = vmax.f32 %v3122, 0.0
    %v3187 = vmax.f32 %v3123, 0.0
    %v3188 = vmax.f32 %v3124, 0.0
    %v3189 = vmax.f32 %v3125, 0.0
    %v3190 = vmax.f32 %v3126, 0.0
    %v3191 = vmax.f32 %v3127, 0.0
    %v3192 = vmax.f32 %v3128, 0.0
    %v3193 = vmax.f32 %v3129, 0.0
    %v3194 = vmax.f32 %v3130, 0.0
    %v3195 = vmax.f32 %v3131, 0.0
    %v3196 = vmax.f32 %v3132, 0.0
    %v3197 = vmax.f32 %v3133, 0.0
    %v3198 = vmax.f32 %v3134, 0.0
    %v3199 = vmax.f32 %v3135, 0.0
    %v3200 = vmax.f32 %v3136, 0.0
    %v3201 = vmax.f32 %v3137, 0.0
    %v3202 = vmax.f32 %v3138, 0.0
    %v3203 = vmax.f32 %v3139, 0.0
    %v3204 = vmax.f32 %v3140, 0.0
    %v3205 = vmax.f32 %v3141, 0.0
    %v3206 = vmax.f32 %v3142, 0.0
    %v3207 = vmax.f32 %v3143, 0.0
    %v3208 = vmax.f32 %v3144, 0.0
    %v3209 = vmax.f32 %v3145, 0.0
    %v3210 = vmax.f32 %v3146, 0.0
    %v3211 = vmax.f32 %v3147, 0.0
    %v3212 = vmax.f32 %v3148, 0.0
    %v3213 = vmax.f32 %v3149, 0.0
    %v3214 = vmax.f32 %v3150, 0.0
    %v3215 = vmax.f32 %v3151, 0.0
    %v3216 = vmax.f32 %v3152, 0.0
    %v3217 = vmax.f32 %v3153, 0.0
    %v3218 = vmax.f32 %v3154, 0.0
    %v3219 = vmax.f32 %v3155, 0.0
    %v3220 = vmax.f32 %v3156, 0.0
    %v3221 = vmax.f32 %v3157, 0.0
    %v3222 = vmax.f32 %v3158, 0.0
    %v3223 = vpack.c.bf16 %v3163, %v3159
    %v3224 = vpack.c.bf16 %v3164, %v3160
    %v3225 = vpack.c.bf16 %v3165, %v3161
    %v3226 = vpack.c.bf16 %v3166, %v3162
    %v3227 = vpack.c.bf16 %v3171, %v3167
    %v3228 = vpack.c.bf16 %v3172, %v3168
    %v3229 = vpack.c.bf16 %v3173, %v3169
    %v3230 = vpack.c.bf16 %v3174, %v3170
    %v3231 = vpack.c.bf16 %v3179, %v3175
    %v3232 = vpack.c.bf16 %v3180, %v3176
    %v3233 = vpack.c.bf16 %v3181, %v3177
    %v3234 = vpack.c.bf16 %v3182, %v3178
    %v3235 = vpack.c.bf16 %v3187, %v3183
    %v3236 = vpack.c.bf16 %v3188, %v3184
    %v3237 = vpack.c.bf16 %v3189, %v3185
    %v3238 = vpack.c.bf16 %v3190, %v3186
    %v3239 = vpack.c.bf16 %v3195, %v3191
    %v3240 = vpack.c.bf16 %v3196, %v3192
    %v3241 = vpack.c.bf16 %v3197, %v3193
    %v3242 = vpack.c.bf16 %v3198, %v3194
    %v3243 = vpack.c.bf16 %v3203, %v3199
    %v3244 = vpack.c.bf16 %v3204, %v3200
    %v3245 = vpack.c.bf16 %v3205, %v3201
    %v3246 = vpack.c.bf16 %v3206, %v3202
    %v3247 = vpack.c.bf16 %v3211, %v3207
    %v3248 = vpack.c.bf16 %v3212, %v3208
    %v3249 = vpack.c.bf16 %v3213, %v3209
    %v3250 = vpack.c.bf16 %v3214, %v3210
    %v3251 = vpack.c.bf16 %v3219, %v3215
    %v3252 = vpack.c.bf16 %v3220, %v3216
    %v3253 = vpack.c.bf16 %v3221, %v3217
    %v3254 = vpack.c.bf16 %v3222, %v3218
    %v3255 = vld [vmem:[#allocation6] sm:$0xff]
    %v3256 = vld [vmem:[#allocation6 + $0x8] sm:$0xff]
    %v3257 = vld [vmem:[#allocation6 + $0x10] sm:$0xff]
    %v3258 = vld [vmem:[#allocation6 + $0x18] sm:$0xff]
    %v3259 = vld [vmem:[#allocation6 + $0x20] sm:$0xff]
    %v3260 = vld [vmem:[#allocation6 + $0x28] sm:$0xff]
    %v3261 = vld [vmem:[#allocation6 + $0x30] sm:$0xff]
    %v3262 = vld [vmem:[#allocation6 + $0x38] sm:$0xff]
    %v3263 = vld [vmem:[#allocation6 + $0x40] sm:$0xff]
    %v3264 = vld [vmem:[#allocation6 + $0x48] sm:$0xff]
    %v3265 = vld [vmem:[#allocation6 + $0x50] sm:$0xff]
    %v3266 = vld [vmem:[#allocation6 + $0x58] sm:$0xff]
    %v3267 = vld [vmem:[#allocation6 + $0x60] sm:$0xff]
    %v3268 = vld [vmem:[#allocation6 + $0x68] sm:$0xff]
    %v3269 = vld [vmem:[#allocation6 + $0x70] sm:$0xff]
    %v3270 = vld [vmem:[#allocation6 + $0x78] sm:$0xff]
    %v3271 = vld [vmem:[#allocation6 + $0x80] sm:$0xff]
    %v3272 = vld [vmem:[#allocation6 + $0x88] sm:$0xff]
    %v3273 = vld [vmem:[#allocation6 + $0x90] sm:$0xff]
    %v3274 = vld [vmem:[#allocation6 + $0x98] sm:$0xff]
    %v3275 = vld [vmem:[#allocation6 + $0xa0] sm:$0xff]
    %v3276 = vld [vmem:[#allocation6 + $0xa8] sm:$0xff]
    %v3277 = vld [vmem:[#allocation6 + $0xb0] sm:$0xff]
    %v3278 = vld [vmem:[#allocation6 + $0xb8] sm:$0xff]
    %v3279 = vld [vmem:[#allocation6 + $0xc0] sm:$0xff]
    %v3280 = vld [vmem:[#allocation6 + $0xc8] sm:$0xff]
    %v3281 = vld [vmem:[#allocation6 + $0xd0] sm:$0xff]
    %v3282 = vld [vmem:[#allocation6 + $0xd8] sm:$0xff]
    %v3283 = vld [vmem:[#allocation6 + $0xe0] sm:$0xff]
    %v3284 = vld [vmem:[#allocation6 + $0xe8] sm:$0xff]
    %v3285 = vld [vmem:[#allocation6 + $0xf0] sm:$0xff]
    %v3286 = vld [vmem:[#allocation6 + $0xf8] sm:$0xff]
    %v3287 = vld [vmem:[#allocation6 + $0x100] sm:$0xff]
    %v3288 = vld [vmem:[#allocation6 + $0x108] sm:$0xff]
    %v3289 = vld [vmem:[#allocation6 + $0x110] sm:$0xff]
    %v3290 = vld [vmem:[#allocation6 + $0x118] sm:$0xff]
    %v3291 = vld [vmem:[#allocation6 + $0x120] sm:$0xff]
    %v3292 = vld [vmem:[#allocation6 + $0x128] sm:$0xff]
    %v3293 = vld [vmem:[#allocation6 + $0x130] sm:$0xff]
    %v3294 = vld [vmem:[#allocation6 + $0x138] sm:$0xff]
    %v3295 = vld [vmem:[#allocation6 + $0x140] sm:$0xff]
    %v3296 = vld [vmem:[#allocation6 + $0x148] sm:$0xff]
    %v3297 = vld [vmem:[#allocation6 + $0x150] sm:$0xff]
    %v3298 = vld [vmem:[#allocation6 + $0x158] sm:$0xff]
    %v3299 = vld [vmem:[#allocation6 + $0x160] sm:$0xff]
    %v3300 = vld [vmem:[#allocation6 + $0x168] sm:$0xff]
    %v3301 = vld [vmem:[#allocation6 + $0x170] sm:$0xff]
    %v3302 = vld [vmem:[#allocation6 + $0x178] sm:$0xff]
    %v3303 = vld [vmem:[#allocation6 + $0x180] sm:$0xff]
    %v3304 = vld [vmem:[#allocation6 + $0x188] sm:$0xff]
    %v3305 = vld [vmem:[#allocation6 + $0x190] sm:$0xff]
    %v3306 = vld [vmem:[#allocation6 + $0x198] sm:$0xff]
    %v3307 = vld [vmem:[#allocation6 + $0x1a0] sm:$0xff]
    %v3308 = vld [vmem:[#allocation6 + $0x1a8] sm:$0xff]
    %v3309 = vld [vmem:[#allocation6 + $0x1b0] sm:$0xff]
    %v3310 = vld [vmem:[#allocation6 + $0x1b8] sm:$0xff]
    %v3311 = vld [vmem:[#allocation6 + $0x1c0] sm:$0xff]
    %v3312 = vld [vmem:[#allocation6 + $0x1c8] sm:$0xff]
    %v3313 = vld [vmem:[#allocation6 + $0x1d0] sm:$0xff]
    %v3314 = vld [vmem:[#allocation6 + $0x1d8] sm:$0xff]
    %v3315 = vld [vmem:[#allocation6 + $0x1e0] sm:$0xff]
    %v3316 = vld [vmem:[#allocation6 + $0x1e8] sm:$0xff]
    %v3317 = vld [vmem:[#allocation6 + $0x1f0] sm:$0xff]
    %v3318 = vld [vmem:[#allocation6 + $0x1f8] sm:$0xff]
    %v3319 = vld [vmem:[#allocation6 + $0x200] sm:$0xff]
    %v3320 = vld [vmem:[#allocation6 + $0x208] sm:$0xff]
    %v3321 = vld [vmem:[#allocation6 + $0x210] sm:$0xff]
    %v3322 = vld [vmem:[#allocation6 + $0x218] sm:$0xff]
    %v3323 = vld [vmem:[#allocation6 + $0x220] sm:$0xff]
    %v3324 = vld [vmem:[#allocation6 + $0x228] sm:$0xff]
    %v3325 = vld [vmem:[#allocation6 + $0x230] sm:$0xff]
    %v3326 = vld [vmem:[#allocation6 + $0x238] sm:$0xff]
    %v3327 = vld [vmem:[#allocation6 + $0x240] sm:$0xff]
    %v3328 = vld [vmem:[#allocation6 + $0x248] sm:$0xff]
    %v3329 = vld [vmem:[#allocation6 + $0x250] sm:$0xff]
    %v3330 = vld [vmem:[#allocation6 + $0x258] sm:$0xff]
    %v3331 = vld [vmem:[#allocation6 + $0x260] sm:$0xff]
    %v3332 = vld [vmem:[#allocation6 + $0x268] sm:$0xff]
    %v3333 = vld [vmem:[#allocation6 + $0x270] sm:$0xff]
    %v3334 = vld [vmem:[#allocation6 + $0x278] sm:$0xff]
    %v3335 = vld [vmem:[#allocation6 + $0x280] sm:$0xff]
    %v3336 = vld [vmem:[#allocation6 + $0x288] sm:$0xff]
    %v3337 = vld [vmem:[#allocation6 + $0x290] sm:$0xff]
    %v3338 = vld [vmem:[#allocation6 + $0x298] sm:$0xff]
    %v3339 = vld [vmem:[#allocation6 + $0x2a0] sm:$0xff]
    %v3340 = vld [vmem:[#allocation6 + $0x2a8] sm:$0xff]
    %v3341 = vld [vmem:[#allocation6 + $0x2b0] sm:$0xff]
    %v3342 = vld [vmem:[#allocation6 + $0x2b8] sm:$0xff]
    %v3343 = vld [vmem:[#allocation6 + $0x2c0] sm:$0xff]
    %v3344 = vld [vmem:[#allocation6 + $0x2c8] sm:$0xff]
    %v3345 = vld [vmem:[#allocation6 + $0x2d0] sm:$0xff]
    %v3346 = vld [vmem:[#allocation6 + $0x2d8] sm:$0xff]
    %v3347 = vld [vmem:[#allocation6 + $0x2e0] sm:$0xff]
    %v3348 = vld [vmem:[#allocation6 + $0x2e8] sm:$0xff]
    %v3349 = vld [vmem:[#allocation6 + $0x2f0] sm:$0xff]
    %v3350 = vld [vmem:[#allocation6 + $0x2f8] sm:$0xff]
    %v3351 = vld [vmem:[#allocation6 + $0x300] sm:$0xff]
    %v3352 = vld [vmem:[#allocation6 + $0x308] sm:$0xff]
    %v3353 = vld [vmem:[#allocation6 + $0x310] sm:$0xff]
    %v3354 = vld [vmem:[#allocation6 + $0x318] sm:$0xff]
    %v3355 = vld [vmem:[#allocation6 + $0x320] sm:$0xff]
    %v3356 = vld [vmem:[#allocation6 + $0x328] sm:$0xff]
    %v3357 = vld [vmem:[#allocation6 + $0x330] sm:$0xff]
    %v3358 = vld [vmem:[#allocation6 + $0x338] sm:$0xff]
    %v3359 = vld [vmem:[#allocation6 + $0x340] sm:$0xff]
    %v3360 = vld [vmem:[#allocation6 + $0x348] sm:$0xff]
    %v3361 = vld [vmem:[#allocation6 + $0x350] sm:$0xff]
    %v3362 = vld [vmem:[#allocation6 + $0x358] sm:$0xff]
    %v3363 = vld [vmem:[#allocation6 + $0x360] sm:$0xff]
    %v3364 = vld [vmem:[#allocation6 + $0x368] sm:$0xff]
    %v3365 = vld [vmem:[#allocation6 + $0x370] sm:$0xff]
    %v3366 = vld [vmem:[#allocation6 + $0x378] sm:$0xff]
    %v3367 = vld [vmem:[#allocation6 + $0x380] sm:$0xff]
    %v3368 = vld [vmem:[#allocation6 + $0x388] sm:$0xff]
    %v3369 = vld [vmem:[#allocation6 + $0x390] sm:$0xff]
    %v3370 = vld [vmem:[#allocation6 + $0x398] sm:$0xff]
    %v3371 = vld [vmem:[#allocation6 + $0x3a0] sm:$0xff]
    %v3372 = vld [vmem:[#allocation6 + $0x3a8] sm:$0xff]
    %v3373 = vld [vmem:[#allocation6 + $0x3b0] sm:$0xff]
    %v3374 = vld [vmem:[#allocation6 + $0x3b8] sm:$0xff]
    %v3375 = vld [vmem:[#allocation6 + $0x3c0] sm:$0xff]
    %v3376 = vld [vmem:[#allocation6 + $0x3c8] sm:$0xff]
    %v3377 = vld [vmem:[#allocation6 + $0x3d0] sm:$0xff]
    %v3378 = vld [vmem:[#allocation6 + $0x3d8] sm:$0xff]
    %v3379 = vld [vmem:[#allocation6 + $0x3e0] sm:$0xff]
    %v3380 = vld [vmem:[#allocation6 + $0x3e8] sm:$0xff]
    %v3381 = vld [vmem:[#allocation6 + $0x3f0] sm:$0xff]
    %v3382 = vld [vmem:[#allocation6 + $0x3f8] sm:$0xff]
    %v3383 = vld [vmem:[%s6] sm:$0xf]
    %v3385 = vlaneseq
    %v3386 = vshrl.u32 %v3385, 7
    %v3387 = vsub.s32 0, %v3386
    %v3388 = vrot.slane %v3383, %v3387
    %v3389 = vlaneseq
    %v3390 = vshrl.u32 %v3389, 7
    %v3391 = vsub.s32 1, %v3390
    %v3392 = vrot.slane %v3383, %v3391
    %v3393 = vlaneseq
    %v3394 = vshrl.u32 %v3393, 7
    %v3395 = vsub.s32 2, %v3394
    %v3396 = vrot.slane %v3383, %v3395
    %v3397 = vlaneseq
    %v3398 = vshrl.u32 %v3397, 7
    %v3399 = vsub.s32 3, %v3398
    %v3400 = vrot.slane %v3383, %v3399
    %v3533 = vunpack.c.l.b16 %v3255
    %v3534 = vunpack.c.h.b16 %v3255
    %v3535 = vunpack.c.l.b16 %v3256
    %v3536 = vunpack.c.h.b16 %v3256
    %v3537 = vunpack.c.l.b16 %v3257
    %v3538 = vunpack.c.h.b16 %v3257
    %v3539 = vunpack.c.l.b16 %v3258
    %v3540 = vunpack.c.h.b16 %v3258
    %v3541 = vunpack.c.l.b16 %v3259
    %v3542 = vunpack.c.h.b16 %v3259
    %v3543 = vunpack.c.l.b16 %v3260
    %v3544 = vunpack.c.h.b16 %v3260
    %v3545 = vunpack.c.l.b16 %v3261
    %v3546 = vunpack.c.h.b16 %v3261
    %v3547 = vunpack.c.l.b16 %v3262
    %v3548 = vunpack.c.h.b16 %v3262
    %v3549 = vunpack.c.l.b16 %v3263
    %v3550 = vunpack.c.h.b16 %v3263
    %v3551 = vunpack.c.l.b16 %v3264
    %v3552 = vunpack.c.h.b16 %v3264
    %v3553 = vunpack.c.l.b16 %v3265
    %v3554 = vunpack.c.h.b16 %v3265
    %v3555 = vunpack.c.l.b16 %v3266
    %v3556 = vunpack.c.h.b16 %v3266
    %v3557 = vunpack.c.l.b16 %v3267
    %v3558 = vunpack.c.h.b16 %v3267
    %v3559 = vunpack.c.l.b16 %v3268
    %v3560 = vunpack.c.h.b16 %v3268
    %v3561 = vunpack.c.l.b16 %v3269
    %v3562 = vunpack.c.h.b16 %v3269
    %v3563 = vunpack.c.l.b16 %v3270
    %v3564 = vunpack.c.h.b16 %v3270
    %v3565 = vunpack.c.l.b16 %v3271
    %v3566 = vunpack.c.h.b16 %v3271
    %v3567 = vunpack.c.l.b16 %v3272
    %v3568 = vunpack.c.h.b16 %v3272
    %v3569 = vunpack.c.l.b16 %v3273
    %v3570 = vunpack.c.h.b16 %v3273
    %v3571 = vunpack.c.l.b16 %v3274
    %v3572 = vunpack.c.h.b16 %v3274
    %v3573 = vunpack.c.l.b16 %v3275
    %v3574 = vunpack.c.h.b16 %v3275
    %v3575 = vunpack.c.l.b16 %v3276
    %v3576 = vunpack.c.h.b16 %v3276
    %v3577 = vunpack.c.l.b16 %v3277
    %v3578 = vunpack.c.h.b16 %v3277
    %v3579 = vunpack.c.l.b16 %v3278
    %v3580 = vunpack.c.h.b16 %v3278
    %v3581 = vunpack.c.l.b16 %v3279
    %v3582 = vunpack.c.h.b16 %v3279
    %v3583 = vunpack.c.l.b16 %v3280
    %v3584 = vunpack.c.h.b16 %v3280
    %v3585 = vunpack.c.l.b16 %v3281
    %v3586 = vunpack.c.h.b16 %v3281
    %v3587 = vunpack.c.l.b16 %v3282
    %v3588 = vunpack.c.h.b16 %v3282
    %v3589 = vunpack.c.l.b16 %v3283
    %v3590 = vunpack.c.h.b16 %v3283
    %v3591 = vunpack.c.l.b16 %v3284
    %v3592 = vunpack.c.h.b16 %v3284
    %v3593 = vunpack.c.l.b16 %v3285
    %v3594 = vunpack.c.h.b16 %v3285
    %v3595 = vunpack.c.l.b16 %v3286
    %v3596 = vunpack.c.h.b16 %v3286
    %v3597 = vunpack.c.l.b16 %v3287
    %v3598 = vunpack.c.h.b16 %v3287
    %v3599 = vunpack.c.l.b16 %v3288
    %v3600 = vunpack.c.h.b16 %v3288
    %v3601 = vunpack.c.l.b16 %v3289
    %v3602 = vunpack.c.h.b16 %v3289
    %v3603 = vunpack.c.l.b16 %v3290
    %v3604 = vunpack.c.h.b16 %v3290
    %v3605 = vunpack.c.l.b16 %v3291
    %v3606 = vunpack.c.h.b16 %v3291
    %v3607 = vunpack.c.l.b16 %v3292
    %v3608 = vunpack.c.h.b16 %v3292
    %v3609 = vunpack.c.l.b16 %v3293
    %v3610 = vunpack.c.h.b16 %v3293
    %v3611 = vunpack.c.l.b16 %v3294
    %v3612 = vunpack.c.h.b16 %v3294
    %v3613 = vunpack.c.l.b16 %v3295
    %v3614 = vunpack.c.h.b16 %v3295
    %v3615 = vunpack.c.l.b16 %v3296
    %v3616 = vunpack.c.h.b16 %v3296
    %v3617 = vunpack.c.l.b16 %v3297
    %v3618 = vunpack.c.h.b16 %v3297
    %v3619 = vunpack.c.l.b16 %v3298
    %v3620 = vunpack.c.h.b16 %v3298
    %v3621 = vunpack.c.l.b16 %v3299
    %v3622 = vunpack.c.h.b16 %v3299
    %v3623 = vunpack.c.l.b16 %v3300
    %v3624 = vunpack.c.h.b16 %v3300
    %v3625 = vunpack.c.l.b16 %v3301
    %v3626 = vunpack.c.h.b16 %v3301
    %v3627 = vunpack.c.l.b16 %v3302
    %v3628 = vunpack.c.h.b16 %v3302
    %v3629 = vunpack.c.l.b16 %v3303
    %v3630 = vunpack.c.h.b16 %v3303
    %v3631 = vunpack.c.l.b16 %v3304
    %v3632 = vunpack.c.h.b16 %v3304
    %v3633 = vunpack.c.l.b16 %v3305
    %v3634 = vunpack.c.h.b16 %v3305
    %v3635 = vunpack.c.l.b16 %v3306
    %v3636 = vunpack.c.h.b16 %v3306
    %v3637 = vunpack.c.l.b16 %v3307
    %v3638 = vunpack.c.h.b16 %v3307
    %v3639 = vunpack.c.l.b16 %v3308
    %v3640 = vunpack.c.h.b16 %v3308
    %v3641 = vunpack.c.l.b16 %v3309
    %v3642 = vunpack.c.h.b16 %v3309
    %v3643 = vunpack.c.l.b16 %v3310
    %v3644 = vunpack.c.h.b16 %v3310
    %v3645 = vunpack.c.l.b16 %v3311
    %v3646 = vunpack.c.h.b16 %v3311
    %v3647 = vunpack.c.l.b16 %v3312
    %v3648 = vunpack.c.h.b16 %v3312
    %v3649 = vunpack.c.l.b16 %v3313
    %v3650 = vunpack.c.h.b16 %v3313
    %v3651 = vunpack.c.l.b16 %v3314
    %v3652 = vunpack.c.h.b16 %v3314
    %v3653 = vunpack.c.l.b16 %v3315
    %v3654 = vunpack.c.h.b16 %v3315
    %v3655 = vunpack.c.l.b16 %v3316
    %v3656 = vunpack.c.h.b16 %v3316
    %v3657 = vunpack.c.l.b16 %v3317
    %v3658 = vunpack.c.h.b16 %v3317
    %v3659 = vunpack.c.l.b16 %v3318
    %v3660 = vunpack.c.h.b16 %v3318
    %v3661 = vunpack.c.l.b16 %v3319
    %v3662 = vunpack.c.h.b16 %v3319
    %v3663 = vunpack.c.l.b16 %v3320
    %v3664 = vunpack.c.h.b16 %v3320
    %v3665 = vunpack.c.l.b16 %v3321
    %v3666 = vunpack.c.h.b16 %v3321
    %v3667 = vunpack.c.l.b16 %v3322
    %v3668 = vunpack.c.h.b16 %v3322
    %v3669 = vunpack.c.l.b16 %v3323
    %v3670 = vunpack.c.h.b16 %v3323
    %v3671 = vunpack.c.l.b16 %v3324
    %v3672 = vunpack.c.h.b16 %v3324
    %v3673 = vunpack.c.l.b16 %v3325
    %v3674 = vunpack.c.h.b16 %v3325
    %v3675 = vunpack.c.l.b16 %v3326
    %v3676 = vunpack.c.h.b16 %v3326
    %v3677 = vunpack.c.l.b16 %v3327
    %v3678 = vunpack.c.h.b16 %v3327
    %v3679 = vunpack.c.l.b16 %v3328
    %v3680 = vunpack.c.h.b16 %v3328
    %v3681 = vunpack.c.l.b16 %v3329
    %v3682 = vunpack.c.h.b16 %v3329
    %v3683 = vunpack.c.l.b16 %v3330
    %v3684 = vunpack.c.h.b16 %v3330
    %v3685 = vunpack.c.l.b16 %v3331
    %v3686 = vunpack.c.h.b16 %v3331
    %v3687 = vunpack.c.l.b16 %v3332
    %v3688 = vunpack.c.h.b16 %v3332
    %v3689 = vunpack.c.l.b16 %v3333
    %v3690 = vunpack.c.h.b16 %v3333
    %v3691 = vunpack.c.l.b16 %v3334
    %v3692 = vunpack.c.h.b16 %v3334
    %v3693 = vunpack.c.l.b16 %v3335
    %v3694 = vunpack.c.h.b16 %v3335
    %v3695 = vunpack.c.l.b16 %v3336
    %v3696 = vunpack.c.h.b16 %v3336
    %v3697 = vunpack.c.l.b16 %v3337
    %v3698 = vunpack.c.h.b16 %v3337
    %v3699 = vunpack.c.l.b16 %v3338
    %v3700 = vunpack.c.h.b16 %v3338
    %v3701 = vunpack.c.l.b16 %v3339
    %v3702 = vunpack.c.h.b16 %v3339
    %v3703 = vunpack.c.l.b16 %v3340
    %v3704 = vunpack.c.h.b16 %v3340
    %v3705 = vunpack.c.l.b16 %v3341
    %v3706 = vunpack.c.h.b16 %v3341
    %v3707 = vunpack.c.l.b16 %v3342
    %v3708 = vunpack.c.h.b16 %v3342
    %v3709 = vunpack.c.l.b16 %v3343
    %v3710 = vunpack.c.h.b16 %v3343
    %v3711 = vunpack.c.l.b16 %v3344
    %v3712 = vunpack.c.h.b16 %v3344
    %v3713 = vunpack.c.l.b16 %v3345
    %v3714 = vunpack.c.h.b16 %v3345
    %v3715 = vunpack.c.l.b16 %v3346
    %v3716 = vunpack.c.h.b16 %v3346
    %v3717 = vunpack.c.l.b16 %v3347
    %v3718 = vunpack.c.h.b16 %v3347
    %v3719 = vunpack.c.l.b16 %v3348
    %v3720 = vunpack.c.h.b16 %v3348
    %v3721 = vunpack.c.l.b16 %v3349
    %v3722 = vunpack.c.h.b16 %v3349
    %v3723 = vunpack.c.l.b16 %v3350
    %v3724 = vunpack.c.h.b16 %v3350
    %v3725 = vunpack.c.l.b16 %v3351
    %v3726 = vunpack.c.h.b16 %v3351
    %v3727 = vunpack.c.l.b16 %v3352
    %v3728 = vunpack.c.h.b16 %v3352
    %v3729 = vunpack.c.l.b16 %v3353
    %v3730 = vunpack.c.h.b16 %v3353
    %v3731 = vunpack.c.l.b16 %v3354
    %v3732 = vunpack.c.h.b16 %v3354
    %v3733 = vunpack.c.l.b16 %v3355
    %v3734 = vunpack.c.h.b16 %v3355
    %v3735 = vunpack.c.l.b16 %v3356
    %v3736 = vunpack.c.h.b16 %v3356
    %v3737 = vunpack.c.l.b16 %v3357
    %v3738 = vunpack.c.h.b16 %v3357
    %v3739 = vunpack.c.l.b16 %v3358
    %v3740 = vunpack.c.h.b16 %v3358
    %v3741 = vunpack.c.l.b16 %v3359
    %v3742 = vunpack.c.h.b16 %v3359
    %v3743 = vunpack.c.l.b16 %v3360
    %v3744 = vunpack.c.h.b16 %v3360
    %v3745 = vunpack.c.l.b16 %v3361
    %v3746 = vunpack.c.h.b16 %v3361
    %v3747 = vunpack.c.l.b16 %v3362
    %v3748 = vunpack.c.h.b16 %v3362
    %v3749 = vunpack.c.l.b16 %v3363
    %v3750 = vunpack.c.h.b16 %v3363
    %v3751 = vunpack.c.l.b16 %v3364
    %v3752 = vunpack.c.h.b16 %v3364
    %v3753 = vunpack.c.l.b16 %v3365
    %v3754 = vunpack.c.h.b16 %v3365
    %v3755 = vunpack.c.l.b16 %v3366
    %v3756 = vunpack.c.h.b16 %v3366
    %v3757 = vunpack.c.l.b16 %v3367
    %v3758 = vunpack.c.h.b16 %v3367
    %v3759 = vunpack.c.l.b16 %v3368
    %v3760 = vunpack.c.h.b16 %v3368
    %v3761 = vunpack.c.l.b16 %v3369
    %v3762 = vunpack.c.h.b16 %v3369
    %v3763 = vunpack.c.l.b16 %v3370
    %v3764 = vunpack.c.h.b16 %v3370
    %v3765 = vunpack.c.l.b16 %v3371
    %v3766 = vunpack.c.h.b16 %v3371
    %v3767 = vunpack.c.l.b16 %v3372
    %v3768 = vunpack.c.h.b16 %v3372
    %v3769 = vunpack.c.l.b16 %v3373
    %v3770 = vunpack.c.h.b16 %v3373
    %v3771 = vunpack.c.l.b16 %v3374
    %v3772 = vunpack.c.h.b16 %v3374
    %v3773 = vunpack.c.l.b16 %v3375
    %v3774 = vunpack.c.h.b16 %v3375
    %v3775 = vunpack.c.l.b16 %v3376
    %v3776 = vunpack.c.h.b16 %v3376
    %v3777 = vunpack.c.l.b16 %v3377
    %v3778 = vunpack.c.h.b16 %v3377
    %v3779 = vunpack.c.l.b16 %v3378
    %v3780 = vunpack.c.h.b16 %v3378
    %v3781 = vunpack.c.l.b16 %v3379
    %v3782 = vunpack.c.h.b16 %v3379
    %v3783 = vunpack.c.l.b16 %v3380
    %v3784 = vunpack.c.h.b16 %v3380
    %v3785 = vunpack.c.l.b16 %v3381
    %v3786 = vunpack.c.h.b16 %v3381
    %v3787 = vunpack.c.l.b16 %v3382
    %v3788 = vunpack.c.h.b16 %v3382
    %v3789 = vpack.c.b16 %v3537, %v3533
    %v3790 = vpack.c.b16 %v3538, %v3534
    %v3791 = vpack.c.b16 %v3539, %v3535
    %v3792 = vpack.c.b16 %v3540, %v3536
    %v3793 = vpack.c.b16 %v3545, %v3541
    %v3794 = vpack.c.b16 %v3546, %v3542
    %v3795 = vpack.c.b16 %v3547, %v3543
    %v3796 = vpack.c.b16 %v3548, %v3544
    %v3797 = vpack.c.b16 %v3553, %v3549
    %v3798 = vpack.c.b16 %v3554, %v3550
    %v3799 = vpack.c.b16 %v3555, %v3551
    %v3800 = vpack.c.b16 %v3556, %v3552
    %v3801 = vpack.c.b16 %v3561, %v3557
    %v3802 = vpack.c.b16 %v3562, %v3558
    %v3803 = vpack.c.b16 %v3563, %v3559
    %v3804 = vpack.c.b16 %v3564, %v3560
    %v3805 = vpack.c.b16 %v3569, %v3565
    %v3806 = vpack.c.b16 %v3570, %v3566
    %v3807 = vpack.c.b16 %v3571, %v3567
    %v3808 = vpack.c.b16 %v3572, %v3568
    %v3809 = vpack.c.b16 %v3577, %v3573
    %v3810 = vpack.c.b16 %v3578, %v3574
    %v3811 = vpack.c.b16 %v3579, %v3575
    %v3812 = vpack.c.b16 %v3580, %v3576
    %v3813 = vpack.c.b16 %v3585, %v3581
    %v3814 = vpack.c.b16 %v3586, %v3582
    %v3815 = vpack.c.b16 %v3587, %v3583
    %v3816 = vpack.c.b16 %v3588, %v3584
    %v3817 = vpack.c.b16 %v3593, %v3589
    %v3818 = vpack.c.b16 %v3594, %v3590
    %v3819 = vpack.c.b16 %v3595, %v3591
    %v3820 = vpack.c.b16 %v3596, %v3592
    %v3821 = vpack.c.b16 %v3601, %v3597
    %v3822 = vpack.c.b16 %v3602, %v3598
    %v3823 = vpack.c.b16 %v3603, %v3599
    %v3824 = vpack.c.b16 %v3604, %v3600
    %v3825 = vpack.c.b16 %v3609, %v3605
    %v3826 = vpack.c.b16 %v3610, %v3606
    %v3827 = vpack.c.b16 %v3611, %v3607
    %v3828 = vpack.c.b16 %v3612, %v3608
    %v3829 = vpack.c.b16 %v3617, %v3613
    %v3830 = vpack.c.b16 %v3618, %v3614
    %v3831 = vpack.c.b16 %v3619, %v3615
    %v3832 = vpack.c.b16 %v3620, %v3616
    %v3833 = vpack.c.b16 %v3625, %v3621
    %v3834 = vpack.c.b16 %v3626, %v3622
    %v3835 = vpack.c.b16 %v3627, %v3623
    %v3836 = vpack.c.b16 %v3628, %v3624
    %v3837 = vpack.c.b16 %v3633, %v3629
    %v3838 = vpack.c.b16 %v3634, %v3630
    %v3839 = vpack.c.b16 %v3635, %v3631
    %v3840 = vpack.c.b16 %v3636, %v3632
    %v3841 = vpack.c.b16 %v3641, %v3637
    %v3842 = vpack.c.b16 %v3642, %v3638
    %v3843 = vpack.c.b16 %v3643, %v3639
    %v3844 = vpack.c.b16 %v3644, %v3640
    %v3845 = vpack.c.b16 %v3649, %v3645
    %v3846 = vpack.c.b16 %v3650, %v3646
    %v3847 = vpack.c.b16 %v3651, %v3647
    %v3848 = vpack.c.b16 %v3652, %v3648
    %v3849 = vpack.c.b16 %v3657, %v3653
    %v3850 = vpack.c.b16 %v3658, %v3654
    %v3851 = vpack.c.b16 %v3659, %v3655
    %v3852 = vpack.c.b16 %v3660, %v3656
    %v3853 = vpack.c.b16 %v3665, %v3661
    %v3854 = vpack.c.b16 %v3666, %v3662
    %v3855 = vpack.c.b16 %v3667, %v3663
    %v3856 = vpack.c.b16 %v3668, %v3664
    %v3857 = vpack.c.b16 %v3673, %v3669
    %v3858 = vpack.c.b16 %v3674, %v3670
    %v3859 = vpack.c.b16 %v3675, %v3671
    %v3860 = vpack.c.b16 %v3676, %v3672
    %v3861 = vpack.c.b16 %v3681, %v3677
    %v3862 = vpack.c.b16 %v3682, %v3678
    %v3863 = vpack.c.b16 %v3683, %v3679
    %v3864 = vpack.c.b16 %v3684, %v3680
    %v3865 = vpack.c.b16 %v3689, %v3685
    %v3866 = vpack.c.b16 %v3690, %v3686
    %v3867 = vpack.c.b16 %v3691, %v3687
    %v3868 = vpack.c.b16 %v3692, %v3688
    %v3869 = vpack.c.b16 %v3697, %v3693
    %v3870 = vpack.c.b16 %v3698, %v3694
    %v3871 = vpack.c.b16 %v3699, %v3695
    %v3872 = vpack.c.b16 %v3700, %v3696
    %v3873 = vpack.c.b16 %v3705, %v3701
    %v3874 = vpack.c.b16 %v3706, %v3702
    %v3875 = vpack.c.b16 %v3707, %v3703
    %v3876 = vpack.c.b16 %v3708, %v3704
    %v3877 = vpack.c.b16 %v3713, %v3709
    %v3878 = vpack.c.b16 %v3714, %v3710
    %v3879 = vpack.c.b16 %v3715, %v3711
    %v3880 = vpack.c.b16 %v3716, %v3712
    %v3881 = vpack.c.b16 %v3721, %v3717
    %v3882 = vpack.c.b16 %v3722, %v3718
    %v3883 = vpack.c.b16 %v3723, %v3719
    %v3884 = vpack.c.b16 %v3724, %v3720
    %v3885 = vpack.c.b16 %v3729, %v3725
    %v3886 = vpack.c.b16 %v3730, %v3726
    %v3887 = vpack.c.b16 %v3731, %v3727
    %v3888 = vpack.c.b16 %v3732, %v3728
    %v3889 = vpack.c.b16 %v3737, %v3733
    %v3890 = vpack.c.b16 %v3738, %v3734
    %v3891 = vpack.c.b16 %v3739, %v3735
    %v3892 = vpack.c.b16 %v3740, %v3736
    %v3893 = vpack.c.b16 %v3745, %v3741
    %v3894 = vpack.c.b16 %v3746, %v3742
    %v3895 = vpack.c.b16 %v3747, %v3743
    %v3896 = vpack.c.b16 %v3748, %v3744
    %v3897 = vpack.c.b16 %v3753, %v3749
    %v3898 = vpack.c.b16 %v3754, %v3750
    %v3899 = vpack.c.b16 %v3755, %v3751
    %v3900 = vpack.c.b16 %v3756, %v3752
    %v3901 = vpack.c.b16 %v3761, %v3757
    %v3902 = vpack.c.b16 %v3762, %v3758
    %v3903 = vpack.c.b16 %v3763, %v3759
    %v3904 = vpack.c.b16 %v3764, %v3760
    %v3905 = vpack.c.b16 %v3769, %v3765
    %v3906 = vpack.c.b16 %v3770, %v3766
    %v3907 = vpack.c.b16 %v3771, %v3767
    %v3908 = vpack.c.b16 %v3772, %v3768
    %v3909 = vpack.c.b16 %v3777, %v3773
    %v3910 = vpack.c.b16 %v3778, %v3774
    %v3911 = vpack.c.b16 %v3779, %v3775
    %v3912 = vpack.c.b16 %v3780, %v3776
    %v3913 = vpack.c.b16 %v3785, %v3781
    %v3914 = vpack.c.b16 %v3786, %v3782
    %v3915 = vpack.c.b16 %v3787, %v3783
    %v3916 = vpack.c.b16 %v3788, %v3784
    %4045 = vmatprep.subr.bf16.mxu0 %v3818
    %4046 = vmatpush1.bf16.msra.mxu0 %v3817
    %4047 = vmatprep.subr.bf16.mxu0 %v3814
    %4048 = vmatpush1.bf16.msra.mxu0 %v3813
    %4049 = vmatprep.subr.bf16.mxu0 %v3810
    %4050 = vmatpush1.bf16.msra.mxu0 %v3809
    %4051 = vmatprep.subr.bf16.mxu0 %v3806
    %4052 = vmatpush1.bf16.msra.mxu0 %v3805
    %4053 = vmatprep.subr.bf16.mxu0 %v3802
    %4054 = vmatpush1.bf16.msra.mxu0 %v3801
    %4055 = vmatprep.subr.bf16.mxu0 %v3798
    %4056 = vmatpush1.bf16.msra.mxu0 %v3797
    %4057 = vmatprep.subr.bf16.mxu0 %v3794
    %4058 = vmatpush1.bf16.msra.mxu0 %v3793
    %4059 = vmatprep.subr.bf16.mxu0 %v3790
    %4060 = vmatpush1.bf16.msra.mxu0 %v3789
    %4061 = vmatprep.subr.bf16.mxu0 %v3850
    %4062 = vmatpush2.bf16.msra.mxu0 %v3849
    %4063 = vmatprep.subr.bf16.mxu0 %v3846
    %4064 = vmatpush2.bf16.msra.mxu0 %v3845
    %4065 = vmatprep.subr.bf16.mxu0 %v3842
    %4066 = vmatpush2.bf16.msra.mxu0 %v3841
    %4067 = vmatprep.subr.bf16.mxu0 %v3838
    %4068 = vmatpush2.bf16.msra.mxu0 %v3837
    %4069 = vmatprep.subr.bf16.mxu0 %v3834
    %4070 = vmatpush2.bf16.msra.mxu0 %v3833
    %4071 = vmatprep.subr.bf16.mxu0 %v3830
    %4072 = vmatpush2.bf16.msra.mxu0 %v3829
    %4073 = vmatprep.subr.bf16.mxu0 %v3826
    %4074 = vmatpush2.bf16.msra.mxu0 %v3825
    %4075 = vmatprep.subr.bf16.mxu0 %v3822
    %4076 = vmatpush2.bf16.msra.mxu0 %v3821
    %4077 = vmatprep.mubr.bf16.mxu0 %v3224
    %4078 = vmatmul.mubr.bf16.gmra.mxu0 %v3223
    %v4079 = vpop.f32.mrf.mxu0
    %v4080 = vadd.f32 %v3388, %v4079
    %v4081 = vpop.f32.mrf.mxu0
    %v4082 = vadd.f32 %v3392, %v4081
    %v4083 = vpop.f32.mrf.mxu0
    %v4084 = vadd.f32 %v3388, %v4083
    %v4085 = vpop.f32.mrf.mxu0
    %v4086 = vadd.f32 %v3392, %v4085
    %4087 = vmatprep.mubr.bf16.mxu0 %v3228
    %4088 = vmatmul.mubr.bf16.gmra.mxu0 %v3227
    %v4089 = vpop.f32.mrf.mxu0
    %v4090 = vadd.f32 %v3388, %v4089
    %v4091 = vpop.f32.mrf.mxu0
    %v4092 = vadd.f32 %v3392, %v4091
    %v4093 = vpop.f32.mrf.mxu0
    %v4094 = vadd.f32 %v3388, %v4093
    %v4095 = vpop.f32.mrf.mxu0
    %v4096 = vadd.f32 %v3392, %v4095
    %4097 = vmatprep.mubr.bf16.mxu0 %v3232
    %4098 = vmatmul.mubr.bf16.gmra.mxu0 %v3231
    %v4099 = vpop.f32.mrf.mxu0
    %v4100 = vadd.f32 %v3388, %v4099
    %v4101 = vpop.f32.mrf.mxu0
    %v4102 = vadd.f32 %v3392, %v4101
    %v4103 = vpop.f32.mrf.mxu0
    %v4104 = vadd.f32 %v3388, %v4103
    %v4105 = vpop.f32.mrf.mxu0
    %v4106 = vadd.f32 %v3392, %v4105
    %4107 = vmatprep.mubr.bf16.mxu0 %v3236
    %4108 = vmatmul.mubr.bf16.gmra.mxu0 %v3235
    %v4109 = vpop.f32.mrf.mxu0
    %v4110 = vadd.f32 %v3388, %v4109
    %v4111 = vpop.f32.mrf.mxu0
    %v4112 = vadd.f32 %v3392, %v4111
    %v4113 = vpop.f32.mrf.mxu0
    %v4114 = vadd.f32 %v3388, %v4113
    %v4115 = vpop.f32.mrf.mxu0
    %v4116 = vadd.f32 %v3392, %v4115
    %4117 = vmatprep.mubr.bf16.mxu0 %v3240
    %4118 = vmatmul.mubr.bf16.gmra.mxu0 %v3239
    %v4119 = vpop.f32.mrf.mxu0
    %v4120 = vadd.f32 %v3388, %v4119
    %v4121 = vpop.f32.mrf.mxu0
    %v4122 = vadd.f32 %v3392, %v4121
    %v4123 = vpop.f32.mrf.mxu0
    %v4124 = vadd.f32 %v3388, %v4123
    %v4125 = vpop.f32.mrf.mxu0
    %v4126 = vadd.f32 %v3392, %v4125
    %4127 = vmatprep.mubr.bf16.mxu0 %v3244
    %4128 = vmatmul.mubr.bf16.gmra.mxu0 %v3243
    %v4129 = vpop.f32.mrf.mxu0
    %v4130 = vadd.f32 %v3388, %v4129
    %v4131 = vpop.f32.mrf.mxu0
    %v4132 = vadd.f32 %v3392, %v4131
    %v4133 = vpop.f32.mrf.mxu0
    %v4134 = vadd.f32 %v3388, %v4133
    %v4135 = vpop.f32.mrf.mxu0
    %v4136 = vadd.f32 %v3392, %v4135
    %4137 = vmatprep.mubr.bf16.mxu0 %v3248
    %4138 = vmatmul.mubr.bf16.gmra.mxu0 %v3247
    %v4139 = vpop.f32.mrf.mxu0
    %v4140 = vadd.f32 %v3388, %v4139
    %v4141 = vpop.f32.mrf.mxu0
    %v4142 = vadd.f32 %v3392, %v4141
    %v4143 = vpop.f32.mrf.mxu0
    %v4144 = vadd.f32 %v3388, %v4143
    %v4145 = vpop.f32.mrf.mxu0
    %v4146 = vadd.f32 %v3392, %v4145
    %4147 = vmatprep.mubr.bf16.mxu0 %v3252
    %4148 = vmatmul.mubr.bf16.gmra.mxu0 %v3251
    %v4149 = vpop.f32.mrf.mxu0
    %v4150 = vadd.f32 %v3388, %v4149
    %v4151 = vpop.f32.mrf.mxu0
    %v4152 = vadd.f32 %v3392, %v4151
    %v4153 = vpop.f32.mrf.mxu0
    %v4154 = vadd.f32 %v3388, %v4153
    %v4155 = vpop.f32.mrf.mxu0
    %v4156 = vadd.f32 %v3392, %v4155
    %4157 = vdwg.mxu0
    %4158 = vmatprep.subr.bf16.mxu0 %v3882
    %4159 = vmatpush1.bf16.msra.mxu0 %v3881
    %4160 = vmatprep.subr.bf16.mxu0 %v3878
    %4161 = vmatpush1.bf16.msra.mxu0 %v3877
    %4162 = vmatprep.subr.bf16.mxu0 %v3874
    %4163 = vmatpush1.bf16.msra.mxu0 %v3873
    %4164 = vmatprep.subr.bf16.mxu0 %v3870
    %4165 = vmatpush1.bf16.msra.mxu0 %v3869
    %4166 = vmatprep.subr.bf16.mxu0 %v3866
    %4167 = vmatpush1.bf16.msra.mxu0 %v3865
    %4168 = vmatprep.subr.bf16.mxu0 %v3862
    %4169 = vmatpush1.bf16.msra.mxu0 %v3861
    %4170 = vmatprep.subr.bf16.mxu0 %v3858
    %4171 = vmatpush1.bf16.msra.mxu0 %v3857
    %4172 = vmatprep.subr.bf16.mxu0 %v3854
    %4173 = vmatpush1.bf16.msra.mxu0 %v3853
    %4174 = vmatprep.subr.bf16.mxu0 %v3914
    %4175 = vmatpush2.bf16.msra.mxu0 %v3913
    %4176 = vmatprep.subr.bf16.mxu0 %v3910
    %4177 = vmatpush2.bf16.msra.mxu0 %v3909
    %4178 = vmatprep.subr.bf16.mxu0 %v3906
    %4179 = vmatpush2.bf16.msra.mxu0 %v3905
    %4180 = vmatprep.subr.bf16.mxu0 %v3902
    %4181 = vmatpush2.bf16.msra.mxu0 %v3901
    %4182 = vmatprep.subr.bf16.mxu0 %v3898
    %4183 = vmatpush2.bf16.msra.mxu0 %v3897
    %4184 = vmatprep.subr.bf16.mxu0 %v3894
    %4185 = vmatpush2.bf16.msra.mxu0 %v3893
    %4186 = vmatprep.subr.bf16.mxu0 %v3890
    %4187 = vmatpush2.bf16.msra.mxu0 %v3889
    %4188 = vmatprep.subr.bf16.mxu0 %v3886
    %4189 = vmatpush2.bf16.msra.mxu0 %v3885
    %4190 = vmatprep.mubr.bf16.mxu0 %v3226
    %4191 = vmatmul.mubr.bf16.gmra.mxu0 %v3225
    %v4192 = vpop.f32.mrf.mxu0
    %v4193 = vadd.f32 %v4080, %v4192
    %v4194 = vpop.f32.mrf.mxu0
    %v4195 = vadd.f32 %v4082, %v4194
    %v4196 = vpop.f32.mrf.mxu0
    %v4197 = vadd.f32 %v4084, %v4196
    %v4198 = vpop.f32.mrf.mxu0
    %v4199 = vadd.f32 %v4086, %v4198
    %4200 = vmatprep.mubr.bf16.mxu0 %v3230
    %4201 = vmatmul.mubr.bf16.gmra.mxu0 %v3229
    %v4202 = vpop.f32.mrf.mxu0
    %v4203 = vadd.f32 %v4090, %v4202
    %v4204 = vpop.f32.mrf.mxu0
    %v4205 = vadd.f32 %v4092, %v4204
    %v4206 = vpop.f32.mrf.mxu0
    %v4207 = vadd.f32 %v4094, %v4206
    %v4208 = vpop.f32.mrf.mxu0
    %v4209 = vadd.f32 %v4096, %v4208
    %4210 = vmatprep.mubr.bf16.mxu0 %v3234
    %4211 = vmatmul.mubr.bf16.gmra.mxu0 %v3233
    %v4212 = vpop.f32.mrf.mxu0
    %v4213 = vadd.f32 %v4100, %v4212
    %v4214 = vpop.f32.mrf.mxu0
    %v4215 = vadd.f32 %v4102, %v4214
    %v4216 = vpop.f32.mrf.mxu0
    %v4217 = vadd.f32 %v4104, %v4216
    %v4218 = vpop.f32.mrf.mxu0
    %v4219 = vadd.f32 %v4106, %v4218
    %4220 = vmatprep.mubr.bf16.mxu0 %v3238
    %4221 = vmatmul.mubr.bf16.gmra.mxu0 %v3237
    %v4222 = vpop.f32.mrf.mxu0
    %v4223 = vadd.f32 %v4110, %v4222
    %v4224 = vpop.f32.mrf.mxu0
    %v4225 = vadd.f32 %v4112, %v4224
    %v4226 = vpop.f32.mrf.mxu0
    %v4227 = vadd.f32 %v4114, %v4226
    %v4228 = vpop.f32.mrf.mxu0
    %v4229 = vadd.f32 %v4116, %v4228
    %4230 = vmatprep.mubr.bf16.mxu0 %v3242
    %4231 = vmatmul.mubr.bf16.gmra.mxu0 %v3241
    %v4232 = vpop.f32.mrf.mxu0
    %v4233 = vadd.f32 %v4120, %v4232
    %v4234 = vpop.f32.mrf.mxu0
    %v4235 = vadd.f32 %v4122, %v4234
    %v4236 = vpop.f32.mrf.mxu0
    %v4237 = vadd.f32 %v4124, %v4236
    %v4238 = vpop.f32.mrf.mxu0
    %v4239 = vadd.f32 %v4126, %v4238
    %4240 = vmatprep.mubr.bf16.mxu0 %v3246
    %4241 = vmatmul.mubr.bf16.gmra.mxu0 %v3245
    %v4242 = vpop.f32.mrf.mxu0
    %v4243 = vadd.f32 %v4130, %v4242
    %v4244 = vpop.f32.mrf.mxu0
    %v4245 = vadd.f32 %v4132, %v4244
    %v4246 = vpop.f32.mrf.mxu0
    %v4247 = vadd.f32 %v4134, %v4246
    %v4248 = vpop.f32.mrf.mxu0
    %v4249 = vadd.f32 %v4136, %v4248
    %4250 = vmatprep.mubr.bf16.mxu0 %v3250
    %4251 = vmatmul.mubr.bf16.gmra.mxu0 %v3249
    %v4252 = vpop.f32.mrf.mxu0
    %v4253 = vadd.f32 %v4140, %v4252
    %v4254 = vpop.f32.mrf.mxu0
    %v4255 = vadd.f32 %v4142, %v4254
    %v4256 = vpop.f32.mrf.mxu0
    %v4257 = vadd.f32 %v4144, %v4256
    %v4258 = vpop.f32.mrf.mxu0
    %v4259 = vadd.f32 %v4146, %v4258
    %4260 = vmatprep.mubr.bf16.mxu0 %v3254
    %4261 = vmatmul.mubr.bf16.gmra.mxu0 %v3253
    %v4262 = vpop.f32.mrf.mxu0
    %v4263 = vadd.f32 %v4150, %v4262
    %v4264 = vpop.f32.mrf.mxu0
    %v4265 = vadd.f32 %v4152, %v4264
    %v4266 = vpop.f32.mrf.mxu0
    %v4267 = vadd.f32 %v4154, %v4266
    %v4268 = vpop.f32.mrf.mxu0
    %v4269 = vadd.f32 %v4156, %v4268
    %4270 = vdwg.mxu0
    %4271 = vmatprep.subr.bf16.mxu0 %v3820
    %4272 = vmatpush1.bf16.msra.mxu0 %v3819
    %4273 = vmatprep.subr.bf16.mxu0 %v3816
    %4274 = vmatpush1.bf16.msra.mxu0 %v3815
    %4275 = vmatprep.subr.bf16.mxu0 %v3812
    %4276 = vmatpush1.bf16.msra.mxu0 %v3811
    %4277 = vmatprep.subr.bf16.mxu0 %v3808
    %4278 = vmatpush1.bf16.msra.mxu0 %v3807
    %4279 = vmatprep.subr.bf16.mxu0 %v3804
    %4280 = vmatpush1.bf16.msra.mxu0 %v3803
    %4281 = vmatprep.subr.bf16.mxu0 %v3800
    %4282 = vmatpush1.bf16.msra.mxu0 %v3799
    %4283 = vmatprep.subr.bf16.mxu0 %v3796
    %4284 = vmatpush1.bf16.msra.mxu0 %v3795
    %4285 = vmatprep.subr.bf16.mxu0 %v3792
    %4286 = vmatpush1.bf16.msra.mxu0 %v3791
    %4287 = vmatprep.subr.bf16.mxu0 %v3852
    %4288 = vmatpush2.bf16.msra.mxu0 %v3851
    %4289 = vmatprep.subr.bf16.mxu0 %v3848
    %4290 = vmatpush2.bf16.msra.mxu0 %v3847
    %4291 = vmatprep.subr.bf16.mxu0 %v3844
    %4292 = vmatpush2.bf16.msra.mxu0 %v3843
    %4293 = vmatprep.subr.bf16.mxu0 %v3840
    %4294 = vmatpush2.bf16.msra.mxu0 %v3839
    %4295 = vmatprep.subr.bf16.mxu0 %v3836
    %4296 = vmatpush2.bf16.msra.mxu0 %v3835
    %4297 = vmatprep.subr.bf16.mxu0 %v3832
    %4298 = vmatpush2.bf16.msra.mxu0 %v3831
    %4299 = vmatprep.subr.bf16.mxu0 %v3828
    %4300 = vmatpush2.bf16.msra.mxu0 %v3827
    %4301 = vmatprep.subr.bf16.mxu0 %v3824
    %4302 = vmatpush2.bf16.msra.mxu0 %v3823
    %4303 = vmatprep.mubr.bf16.mxu0 %v3224
    %4304 = vmatmul.mubr.bf16.gmra.mxu0 %v3223
    %v4305 = vpop.f32.mrf.mxu0
    %v4306 = vadd.f32 %v3396, %v4305
    %v4307 = vpop.f32.mrf.mxu0
    %v4308 = vadd.f32 %v3400, %v4307
    %v4309 = vpop.f32.mrf.mxu0
    %v4310 = vadd.f32 %v3396, %v4309
    %v4311 = vpop.f32.mrf.mxu0
    %v4312 = vadd.f32 %v3400, %v4311
    %4313 = vmatprep.mubr.bf16.mxu0 %v3228
    %4314 = vmatmul.mubr.bf16.gmra.mxu0 %v3227
    %v4315 = vpop.f32.mrf.mxu0
    %v4316 = vadd.f32 %v3396, %v4315
    %v4317 = vpop.f32.mrf.mxu0
    %v4318 = vadd.f32 %v3400, %v4317
    %v4319 = vpop.f32.mrf.mxu0
    %v4320 = vadd.f32 %v3396, %v4319
    %v4321 = vpop.f32.mrf.mxu0
    %v4322 = vadd.f32 %v3400, %v4321
    %4323 = vmatprep.mubr.bf16.mxu0 %v3232
    %4324 = vmatmul.mubr.bf16.gmra.mxu0 %v3231
    %v4325 = vpop.f32.mrf.mxu0
    %v4326 = vadd.f32 %v3396, %v4325
    %v4327 = vpop.f32.mrf.mxu0
    %v4328 = vadd.f32 %v3400, %v4327
    %v4329 = vpop.f32.mrf.mxu0
    %v4330 = vadd.f32 %v3396, %v4329
    %v4331 = vpop.f32.mrf.mxu0
    %v4332 = vadd.f32 %v3400, %v4331
    %4333 = vmatprep.mubr.bf16.mxu0 %v3236
    %4334 = vmatmul.mubr.bf16.gmra.mxu0 %v3235
    %v4335 = vpop.f32.mrf.mxu0
    %v4336 = vadd.f32 %v3396, %v4335
    %v4337 = vpop.f32.mrf.mxu0
    %v4338 = vadd.f32 %v3400, %v4337
    %v4339 = vpop.f32.mrf.mxu0
    %v4340 = vadd.f32 %v3396, %v4339
    %v4341 = vpop.f32.mrf.mxu0
    %v4342 = vadd.f32 %v3400, %v4341
    %4343 = vmatprep.mubr.bf16.mxu0 %v3240
    %4344 = vmatmul.mubr.bf16.gmra.mxu0 %v3239
    %v4345 = vpop.f32.mrf.mxu0
    %v4346 = vadd.f32 %v3396, %v4345
    %v4347 = vpop.f32.mrf.mxu0
    %v4348 = vadd.f32 %v3400, %v4347
    %v4349 = vpop.f32.mrf.mxu0
    %v4350 = vadd.f32 %v3396, %v4349
    %v4351 = vpop.f32.mrf.mxu0
    %v4352 = vadd.f32 %v3400, %v4351
    %4353 = vmatprep.mubr.bf16.mxu0 %v3244
    %4354 = vmatmul.mubr.bf16.gmra.mxu0 %v3243
    %v4355 = vpop.f32.mrf.mxu0
    %v4356 = vadd.f32 %v3396, %v4355
    %v4357 = vpop.f32.mrf.mxu0
    %v4358 = vadd.f32 %v3400, %v4357
    %v4359 = vpop.f32.mrf.mxu0
    %v4360 = vadd.f32 %v3396, %v4359
    %v4361 = vpop.f32.mrf.mxu0
    %v4362 = vadd.f32 %v3400, %v4361
    %4363 = vmatprep.mubr.bf16.mxu0 %v3248
    %4364 = vmatmul.mubr.bf16.gmra.mxu0 %v3247
    %v4365 = vpop.f32.mrf.mxu0
    %v4366 = vadd.f32 %v3396, %v4365
    %v4367 = vpop.f32.mrf.mxu0
    %v4368 = vadd.f32 %v3400, %v4367
    %v4369 = vpop.f32.mrf.mxu0
    %v4370 = vadd.f32 %v3396, %v4369
    %v4371 = vpop.f32.mrf.mxu0
    %v4372 = vadd.f32 %v3400, %v4371
    %4373 = vmatprep.mubr.bf16.mxu0 %v3252
    %4374 = vmatmul.mubr.bf16.gmra.mxu0 %v3251
    %v4375 = vpop.f32.mrf.mxu0
    %v4376 = vadd.f32 %v3396, %v4375
    %v4377 = vpop.f32.mrf.mxu0
    %v4378 = vadd.f32 %v3400, %v4377
    %v4379 = vpop.f32.mrf.mxu0
    %v4380 = vadd.f32 %v3396, %v4379
    %v4381 = vpop.f32.mrf.mxu0
    %v4382 = vadd.f32 %v3400, %v4381
    %4383 = vdwg.mxu0
    %4384 = vmatprep.subr.bf16.mxu0 %v3884
    %4385 = vmatpush1.bf16.msra.mxu0 %v3883
    %4386 = vmatprep.subr.bf16.mxu0 %v3880
    %4387 = vmatpush1.bf16.msra.mxu0 %v3879
    %4388 = vmatprep.subr.bf16.mxu0 %v3876
    %4389 = vmatpush1.bf16.msra.mxu0 %v3875
    %4390 = vmatprep.subr.bf16.mxu0 %v3872
    %4391 = vmatpush1.bf16.msra.mxu0 %v3871
    %4392 = vmatprep.subr.bf16.mxu0 %v3868
    %4393 = vmatpush1.bf16.msra.mxu0 %v3867
    %4394 = vmatprep.subr.bf16.mxu0 %v3864
    %4395 = vmatpush1.bf16.msra.mxu0 %v3863
    %4396 = vmatprep.subr.bf16.mxu0 %v3860
    %4397 = vmatpush1.bf16.msra.mxu0 %v3859
    %4398 = vmatprep.subr.bf16.mxu0 %v3856
    %4399 = vmatpush1.bf16.msra.mxu0 %v3855
    %4400 = vmatprep.subr.bf16.mxu0 %v3916
    %4401 = vmatpush2.bf16.msra.mxu0 %v3915
    %4402 = vmatprep.subr.bf16.mxu0 %v3912
    %4403 = vmatpush2.bf16.msra.mxu0 %v3911
    %4404 = vmatprep.subr.bf16.mxu0 %v3908
    %4405 = vmatpush2.bf16.msra.mxu0 %v3907
    %4406 = vmatprep.subr.bf16.mxu0 %v3904
    %4407 = vmatpush2.bf16.msra.mxu0 %v3903
    %4408 = vmatprep.subr.bf16.mxu0 %v3900
    %4409 = vmatpush2.bf16.msra.mxu0 %v3899
    %4410 = vmatprep.subr.bf16.mxu0 %v3896
    %4411 = vmatpush2.bf16.msra.mxu0 %v3895
    %4412 = vmatprep.subr.bf16.mxu0 %v3892
    %4413 = vmatpush2.bf16.msra.mxu0 %v3891
    %4414 = vmatprep.subr.bf16.mxu0 %v3888
    %4415 = vmatpush2.bf16.msra.mxu0 %v3887
    %4416 = vmatprep.mubr.bf16.mxu0 %v3226
    %4417 = vmatmul.mubr.bf16.gmra.mxu0 %v3225
    %v4418 = vpop.f32.mrf.mxu0
    %v4419 = vadd.f32 %v4306, %v4418
    %v4420 = vpop.f32.mrf.mxu0
    %v4421 = vadd.f32 %v4308, %v4420
    %v4422 = vpop.f32.mrf.mxu0
    %v4423 = vadd.f32 %v4310, %v4422
    %v4424 = vpop.f32.mrf.mxu0
    %v4425 = vadd.f32 %v4312, %v4424
    %4426 = vmatprep.mubr.bf16.mxu0 %v3230
    %4427 = vmatmul.mubr.bf16.gmra.mxu0 %v3229
    %v4428 = vpop.f32.mrf.mxu0
    %v4429 = vadd.f32 %v4316, %v4428
    %v4430 = vpop.f32.mrf.mxu0
    %v4431 = vadd.f32 %v4318, %v4430
    %v4432 = vpop.f32.mrf.mxu0
    %v4433 = vadd.f32 %v4320, %v4432
    %v4434 = vpop.f32.mrf.mxu0
    %v4435 = vadd.f32 %v4322, %v4434
    %4436 = vmatprep.mubr.bf16.mxu0 %v3234
    %4437 = vmatmul.mubr.bf16.gmra.mxu0 %v3233
    %v4438 = vpop.f32.mrf.mxu0
    %v4439 = vadd.f32 %v4326, %v4438
    %v4440 = vpop.f32.mrf.mxu0
    %v4441 = vadd.f32 %v4328, %v4440
    %v4442 = vpop.f32.mrf.mxu0
    %v4443 = vadd.f32 %v4330, %v4442
    %v4444 = vpop.f32.mrf.mxu0
    %v4445 = vadd.f32 %v4332, %v4444
    %4446 = vmatprep.mubr.bf16.mxu0 %v3238
    %4447 = vmatmul.mubr.bf16.gmra.mxu0 %v3237
    %v4448 = vpop.f32.mrf.mxu0
    %v4449 = vadd.f32 %v4336, %v4448
    %v4450 = vpop.f32.mrf.mxu0
    %v4451 = vadd.f32 %v4338, %v4450
    %v4452 = vpop.f32.mrf.mxu0
    %v4453 = vadd.f32 %v4340, %v4452
    %v4454 = vpop.f32.mrf.mxu0
    %v4455 = vadd.f32 %v4342, %v4454
    %4456 = vmatprep.mubr.bf16.mxu0 %v3242
    %4457 = vmatmul.mubr.bf16.gmra.mxu0 %v3241
    %v4458 = vpop.f32.mrf.mxu0
    %v4459 = vadd.f32 %v4346, %v4458
    %v4460 = vpop.f32.mrf.mxu0
    %v4461 = vadd.f32 %v4348, %v4460
    %v4462 = vpop.f32.mrf.mxu0
    %v4463 = vadd.f32 %v4350, %v4462
    %v4464 = vpop.f32.mrf.mxu0
    %v4465 = vadd.f32 %v4352, %v4464
    %4466 = vmatprep.mubr.bf16.mxu0 %v3246
    %4467 = vmatmul.mubr.bf16.gmra.mxu0 %v3245
    %v4468 = vpop.f32.mrf.mxu0
    %v4469 = vadd.f32 %v4356, %v4468
    %v4470 = vpop.f32.mrf.mxu0
    %v4471 = vadd.f32 %v4358, %v4470
    %v4472 = vpop.f32.mrf.mxu0
    %v4473 = vadd.f32 %v4360, %v4472
    %v4474 = vpop.f32.mrf.mxu0
    %v4475 = vadd.f32 %v4362, %v4474
    %4476 = vmatprep.mubr.bf16.mxu0 %v3250
    %4477 = vmatmul.mubr.bf16.gmra.mxu0 %v3249
    %v4478 = vpop.f32.mrf.mxu0
    %v4479 = vadd.f32 %v4366, %v4478
    %v4480 = vpop.f32.mrf.mxu0
    %v4481 = vadd.f32 %v4368, %v4480
    %v4482 = vpop.f32.mrf.mxu0
    %v4483 = vadd.f32 %v4370, %v4482
    %v4484 = vpop.f32.mrf.mxu0
    %v4485 = vadd.f32 %v4372, %v4484
    %4486 = vmatprep.mubr.bf16.mxu0 %v3254
    %4487 = vmatmul.mubr.bf16.gmra.mxu0 %v3253
    %v4488 = vpop.f32.mrf.mxu0
    %v4489 = vadd.f32 %v4376, %v4488
    %v4490 = vpop.f32.mrf.mxu0
    %v4491 = vadd.f32 %v4378, %v4490
    %v4492 = vpop.f32.mrf.mxu0
    %v4493 = vadd.f32 %v4380, %v4492
    %v4494 = vpop.f32.mrf.mxu0
    %v4495 = vadd.f32 %v4382, %v4494
    %4496 = vdwg.mxu0
    %v4497 = vmax.f32 %v4193, 0.0
    %v4498 = vmax.f32 %v4195, 0.0
    %v4499 = vmax.f32 %v4419, 0.0
    %v4500 = vmax.f32 %v4421, 0.0
    %v4501 = vmax.f32 %v4197, 0.0
    %v4502 = vmax.f32 %v4199, 0.0
    %v4503 = vmax.f32 %v4423, 0.0
    %v4504 = vmax.f32 %v4425, 0.0
    %v4505 = vmax.f32 %v4203, 0.0
    %v4506 = vmax.f32 %v4205, 0.0
    %v4507 = vmax.f32 %v4429, 0.0
    %v4508 = vmax.f32 %v4431, 0.0
    %v4509 = vmax.f32 %v4207, 0.0
    %v4510 = vmax.f32 %v4209, 0.0
    %v4511 = vmax.f32 %v4433, 0.0
    %v4512 = vmax.f32 %v4435, 0.0
    %v4513 = vmax.f32 %v4213, 0.0
    %v4514 = vmax.f32 %v4215, 0.0
    %v4515 = vmax.f32 %v4439, 0.0
    %v4516 = vmax.f32 %v4441, 0.0
    %v4517 = vmax.f32 %v4217, 0.0
    %v4518 = vmax.f32 %v4219, 0.0
    %v4519 = vmax.f32 %v4443, 0.0
    %v4520 = vmax.f32 %v4445, 0.0
    %v4521 = vmax.f32 %v4223, 0.0
    %v4522 = vmax.f32 %v4225, 0.0
    %v4523 = vmax.f32 %v4449, 0.0
    %v4524 = vmax.f32 %v4451, 0.0
    %v4525 = vmax.f32 %v4227, 0.0
    %v4526 = vmax.f32 %v4229, 0.0
    %v4527 = vmax.f32 %v4453, 0.0
    %v4528 = vmax.f32 %v4455, 0.0
    %v4529 = vmax.f32 %v4233, 0.0
    %v4530 = vmax.f32 %v4235, 0.0
    %v4531 = vmax.f32 %v4459, 0.0
    %v4532 = vmax.f32 %v4461, 0.0
    %v4533 = vmax.f32 %v4237, 0.0
    %v4534 = vmax.f32 %v4239, 0.0
    %v4535 = vmax.f32 %v4463, 0.0
    %v4536 = vmax.f32 %v4465, 0.0
    %v4537 = vmax.f32 %v4243, 0.0
    %v4538 = vmax.f32 %v4245, 0.0
    %v4539 = vmax.f32 %v4469, 0.0
    %v4540 = vmax.f32 %v4471, 0.0
    %v4541 = vmax.f32 %v4247, 0.0
    %v4542 = vmax.f32 %v4249, 0.0
    %v4543 = vmax.f32 %v4473, 0.0
    %v4544 = vmax.f32 %v4475, 0.0
    %v4545 = vmax.f32 %v4253, 0.0
    %v4546 = vmax.f32 %v4255, 0.0
    %v4547 = vmax.f32 %v4479, 0.0
    %v4548 = vmax.f32 %v4481, 0.0
    %v4549 = vmax.f32 %v4257, 0.0
    %v4550 = vmax.f32 %v4259, 0.0
    %v4551 = vmax.f32 %v4483, 0.0
    %v4552 = vmax.f32 %v4485, 0.0
    %v4553 = vmax.f32 %v4263, 0.0
    %v4554 = vmax.f32 %v4265, 0.0
    %v4555 = vmax.f32 %v4489, 0.0
    %v4556 = vmax.f32 %v4491, 0.0
    %v4557 = vmax.f32 %v4267, 0.0
    %v4558 = vmax.f32 %v4269, 0.0
    %v4559 = vmax.f32 %v4493, 0.0
    %v4560 = vmax.f32 %v4495, 0.0
    %v4561 = vpack.c.bf16 %v4501, %v4497
    %v4562 = vpack.c.bf16 %v4502, %v4498
    %v4563 = vpack.c.bf16 %v4503, %v4499
    %v4564 = vpack.c.bf16 %v4504, %v4500
    %v4565 = vpack.c.bf16 %v4509, %v4505
    %v4566 = vpack.c.bf16 %v4510, %v4506
    %v4567 = vpack.c.bf16 %v4511, %v4507
    %v4568 = vpack.c.bf16 %v4512, %v4508
    %v4569 = vpack.c.bf16 %v4517, %v4513
    %v4570 = vpack.c.bf16 %v4518, %v4514
    %v4571 = vpack.c.bf16 %v4519, %v4515
    %v4572 = vpack.c.bf16 %v4520, %v4516
    %v4573 = vpack.c.bf16 %v4525, %v4521
    %v4574 = vpack.c.bf16 %v4526, %v4522
    %v4575 = vpack.c.bf16 %v4527, %v4523
    %v4576 = vpack.c.bf16 %v4528, %v4524
    %v4577 = vpack.c.bf16 %v4533, %v4529
    %v4578 = vpack.c.bf16 %v4534, %v4530
    %v4579 = vpack.c.bf16 %v4535, %v4531
    %v4580 = vpack.c.bf16 %v4536, %v4532
    %v4581 = vpack.c.bf16 %v4541, %v4537
    %v4582 = vpack.c.bf16 %v4542, %v4538
    %v4583 = vpack.c.bf16 %v4543, %v4539
    %v4584 = vpack.c.bf16 %v4544, %v4540
    %v4585 = vpack.c.bf16 %v4549, %v4545
    %v4586 = vpack.c.bf16 %v4550, %v4546
    %v4587 = vpack.c.bf16 %v4551, %v4547
    %v4588 = vpack.c.bf16 %v4552, %v4548
    %v4589 = vpack.c.bf16 %v4557, %v4553
    %v4590 = vpack.c.bf16 %v4558, %v4554
    %v4591 = vpack.c.bf16 %v4559, %v4555
    %v4592 = vpack.c.bf16 %v4560, %v4556
    %v4593 = vld [vmem:[%s7] sm:$0xff]
    %v4594 = vld [vmem:[%s7 + $0x8] sm:$0xff]
    %v4595 = vld [vmem:[%s7 + $0x10] sm:$0xff]
    %v4596 = vld [vmem:[%s7 + $0x18] sm:$0xff]
    %v4597 = vld [vmem:[%s7 + $0x20] sm:$0xff]
    %v4598 = vld [vmem:[%s7 + $0x28] sm:$0xff]
    %v4599 = vld [vmem:[%s7 + $0x30] sm:$0xff]
    %v4600 = vld [vmem:[%s7 + $0x38] sm:$0xff]
    %v4601 = vld [vmem:[%s7 + $0x40] sm:$0xff]
    %v4602 = vld [vmem:[%s7 + $0x48] sm:$0xff]
    %v4603 = vld [vmem:[%s7 + $0x50] sm:$0xff]
    %v4604 = vld [vmem:[%s7 + $0x58] sm:$0xff]
    %v4605 = vld [vmem:[%s7 + $0x60] sm:$0xff]
    %v4606 = vld [vmem:[%s7 + $0x68] sm:$0xff]
    %v4607 = vld [vmem:[%s7 + $0x70] sm:$0xff]
    %v4608 = vld [vmem:[%s7 + $0x78] sm:$0xff]
    %v4609 = vld [vmem:[%s7 + $0x80] sm:$0xff]
    %v4610 = vld [vmem:[%s7 + $0x88] sm:$0xff]
    %v4611 = vld [vmem:[%s7 + $0x90] sm:$0xff]
    %v4612 = vld [vmem:[%s7 + $0x98] sm:$0xff]
    %v4613 = vld [vmem:[%s7 + $0xa0] sm:$0xff]
    %v4614 = vld [vmem:[%s7 + $0xa8] sm:$0xff]
    %v4615 = vld [vmem:[%s7 + $0xb0] sm:$0xff]
    %v4616 = vld [vmem:[%s7 + $0xb8] sm:$0xff]
    %v4617 = vld [vmem:[%s7 + $0xc0] sm:$0xff]
    %v4618 = vld [vmem:[%s7 + $0xc8] sm:$0xff]
    %v4619 = vld [vmem:[%s7 + $0xd0] sm:$0xff]
    %v4620 = vld [vmem:[%s7 + $0xd8] sm:$0xff]
    %v4621 = vld [vmem:[%s7 + $0xe0] sm:$0xff]
    %v4622 = vld [vmem:[%s7 + $0xe8] sm:$0xff]
    %v4623 = vld [vmem:[%s7 + $0xf0] sm:$0xff]
    %v4624 = vld [vmem:[%s7 + $0xf8] sm:$0xff]
    %v4625 = vld [vmem:[%s7 + $0x100] sm:$0xff]
    %v4626 = vld [vmem:[%s7 + $0x108] sm:$0xff]
    %v4627 = vld [vmem:[%s7 + $0x110] sm:$0xff]
    %v4628 = vld [vmem:[%s7 + $0x118] sm:$0xff]
    %v4629 = vld [vmem:[%s7 + $0x120] sm:$0xff]
    %v4630 = vld [vmem:[%s7 + $0x128] sm:$0xff]
    %v4631 = vld [vmem:[%s7 + $0x130] sm:$0xff]
    %v4632 = vld [vmem:[%s7 + $0x138] sm:$0xff]
    %v4633 = vld [vmem:[%s7 + $0x140] sm:$0xff]
    %v4634 = vld [vmem:[%s7 + $0x148] sm:$0xff]
    %v4635 = vld [vmem:[%s7 + $0x150] sm:$0xff]
    %v4636 = vld [vmem:[%s7 + $0x158] sm:$0xff]
    %v4637 = vld [vmem:[%s7 + $0x160] sm:$0xff]
    %v4638 = vld [vmem:[%s7 + $0x168] sm:$0xff]
    %v4639 = vld [vmem:[%s7 + $0x170] sm:$0xff]
    %v4640 = vld [vmem:[%s7 + $0x178] sm:$0xff]
    %v4641 = vld [vmem:[%s7 + $0x180] sm:$0xff]
    %v4642 = vld [vmem:[%s7 + $0x188] sm:$0xff]
    %v4643 = vld [vmem:[%s7 + $0x190] sm:$0xff]
    %v4644 = vld [vmem:[%s7 + $0x198] sm:$0xff]
    %v4645 = vld [vmem:[%s7 + $0x1a0] sm:$0xff]
    %v4646 = vld [vmem:[%s7 + $0x1a8] sm:$0xff]
    %v4647 = vld [vmem:[%s7 + $0x1b0] sm:$0xff]
    %v4648 = vld [vmem:[%s7 + $0x1b8] sm:$0xff]
    %v4649 = vld [vmem:[%s7 + $0x1c0] sm:$0xff]
    %v4650 = vld [vmem:[%s7 + $0x1c8] sm:$0xff]
    %v4651 = vld [vmem:[%s7 + $0x1d0] sm:$0xff]
    %v4652 = vld [vmem:[%s7 + $0x1d8] sm:$0xff]
    %v4653 = vld [vmem:[%s7 + $0x1e0] sm:$0xff]
    %v4654 = vld [vmem:[%s7 + $0x1e8] sm:$0xff]
    %v4655 = vld [vmem:[%s7 + $0x1f0] sm:$0xff]
    %v4656 = vld [vmem:[%s7 + $0x1f8] sm:$0xff]
    %v4657 = vld [vmem:[%s8] sm:$0x3]
    %v4659 = vlaneseq
    %v4660 = vshrl.u32 %v4659, 7
    %v4661 = vsub.s32 0, %v4660
    %v4662 = vrot.slane %v4657, %v4661
    %v4663 = vlaneseq
    %v4664 = vshrl.u32 %v4663, 7
    %v4665 = vsub.s32 1, %v4664
    %v4666 = vrot.slane %v4657, %v4665
    %v4733 = vunpack.c.l.b16 %v4593
    %v4734 = vunpack.c.h.b16 %v4593
    %v4735 = vunpack.c.l.b16 %v4594
    %v4736 = vunpack.c.h.b16 %v4594
    %v4737 = vunpack.c.l.b16 %v4595
    %v4738 = vunpack.c.h.b16 %v4595
    %v4739 = vunpack.c.l.b16 %v4596
    %v4740 = vunpack.c.h.b16 %v4596
    %v4741 = vunpack.c.l.b16 %v4597
    %v4742 = vunpack.c.h.b16 %v4597
    %v4743 = vunpack.c.l.b16 %v4598
    %v4744 = vunpack.c.h.b16 %v4598
    %v4745 = vunpack.c.l.b16 %v4599
    %v4746 = vunpack.c.h.b16 %v4599
    %v4747 = vunpack.c.l.b16 %v4600
    %v4748 = vunpack.c.h.b16 %v4600
    %v4749 = vunpack.c.l.b16 %v4601
    %v4750 = vunpack.c.h.b16 %v4601
    %v4751 = vunpack.c.l.b16 %v4602
    %v4752 = vunpack.c.h.b16 %v4602
    %v4753 = vunpack.c.l.b16 %v4603
    %v4754 = vunpack.c.h.b16 %v4603
    %v4755 = vunpack.c.l.b16 %v4604
    %v4756 = vunpack.c.h.b16 %v4604
    %v4757 = vunpack.c.l.b16 %v4605
    %v4758 = vunpack.c.h.b16 %v4605
    %v4759 = vunpack.c.l.b16 %v4606
    %v4760 = vunpack.c.h.b16 %v4606
    %v4761 = vunpack.c.l.b16 %v4607
    %v4762 = vunpack.c.h.b16 %v4607
    %v4763 = vunpack.c.l.b16 %v4608
    %v4764 = vunpack.c.h.b16 %v4608
    %v4765 = vunpack.c.l.b16 %v4609
    %v4766 = vunpack.c.h.b16 %v4609
    %v4767 = vunpack.c.l.b16 %v4610
    %v4768 = vunpack.c.h.b16 %v4610
    %v4769 = vunpack.c.l.b16 %v4611
    %v4770 = vunpack.c.h.b16 %v4611
    %v4771 = vunpack.c.l.b16 %v4612
    %v4772 = vunpack.c.h.b16 %v4612
    %v4773 = vunpack.c.l.b16 %v4613
    %v4774 = vunpack.c.h.b16 %v4613
    %v4775 = vunpack.c.l.b16 %v4614
    %v4776 = vunpack.c.h.b16 %v4614
    %v4777 = vunpack.c.l.b16 %v4615
    %v4778 = vunpack.c.h.b16 %v4615
    %v4779 = vunpack.c.l.b16 %v4616
    %v4780 = vunpack.c.h.b16 %v4616
    %v4781 = vunpack.c.l.b16 %v4617
    %v4782 = vunpack.c.h.b16 %v4617
    %v4783 = vunpack.c.l.b16 %v4618
    %v4784 = vunpack.c.h.b16 %v4618
    %v4785 = vunpack.c.l.b16 %v4619
    %v4786 = vunpack.c.h.b16 %v4619
    %v4787 = vunpack.c.l.b16 %v4620
    %v4788 = vunpack.c.h.b16 %v4620
    %v4789 = vunpack.c.l.b16 %v4621
    %v4790 = vunpack.c.h.b16 %v4621
    %v4791 = vunpack.c.l.b16 %v4622
    %v4792 = vunpack.c.h.b16 %v4622
    %v4793 = vunpack.c.l.b16 %v4623
    %v4794 = vunpack.c.h.b16 %v4623
    %v4795 = vunpack.c.l.b16 %v4624
    %v4796 = vunpack.c.h.b16 %v4624
    %v4797 = vunpack.c.l.b16 %v4625
    %v4798 = vunpack.c.h.b16 %v4625
    %v4799 = vunpack.c.l.b16 %v4626
    %v4800 = vunpack.c.h.b16 %v4626
    %v4801 = vunpack.c.l.b16 %v4627
    %v4802 = vunpack.c.h.b16 %v4627
    %v4803 = vunpack.c.l.b16 %v4628
    %v4804 = vunpack.c.h.b16 %v4628
    %v4805 = vunpack.c.l.b16 %v4629
    %v4806 = vunpack.c.h.b16 %v4629
    %v4807 = vunpack.c.l.b16 %v4630
    %v4808 = vunpack.c.h.b16 %v4630
    %v4809 = vunpack.c.l.b16 %v4631
    %v4810 = vunpack.c.h.b16 %v4631
    %v4811 = vunpack.c.l.b16 %v4632
    %v4812 = vunpack.c.h.b16 %v4632
    %v4813 = vunpack.c.l.b16 %v4633
    %v4814 = vunpack.c.h.b16 %v4633
    %v4815 = vunpack.c.l.b16 %v4634
    %v4816 = vunpack.c.h.b16 %v4634
    %v4817 = vunpack.c.l.b16 %v4635
    %v4818 = vunpack.c.h.b16 %v4635
    %v4819 = vunpack.c.l.b16 %v4636
    %v4820 = vunpack.c.h.b16 %v4636
    %v4821 = vunpack.c.l.b16 %v4637
    %v4822 = vunpack.c.h.b16 %v4637
    %v4823 = vunpack.c.l.b16 %v4638
    %v4824 = vunpack.c.h.b16 %v4638
    %v4825 = vunpack.c.l.b16 %v4639
    %v4826 = vunpack.c.h.b16 %v4639
    %v4827 = vunpack.c.l.b16 %v4640
    %v4828 = vunpack.c.h.b16 %v4640
    %v4829 = vunpack.c.l.b16 %v4641
    %v4830 = vunpack.c.h.b16 %v4641
    %v4831 = vunpack.c.l.b16 %v4642
    %v4832 = vunpack.c.h.b16 %v4642
    %v4833 = vunpack.c.l.b16 %v4643
    %v4834 = vunpack.c.h.b16 %v4643
    %v4835 = vunpack.c.l.b16 %v4644
    %v4836 = vunpack.c.h.b16 %v4644
    %v4837 = vunpack.c.l.b16 %v4645
    %v4838 = vunpack.c.h.b16 %v4645
    %v4839 = vunpack.c.l.b16 %v4646
    %v4840 = vunpack.c.h.b16 %v4646
    %v4841 = vunpack.c.l.b16 %v4647
    %v4842 = vunpack.c.h.b16 %v4647
    %v4843 = vunpack.c.l.b16 %v4648
    %v4844 = vunpack.c.h.b16 %v4648
    %v4845 = vunpack.c.l.b16 %v4649
    %v4846 = vunpack.c.h.b16 %v4649
    %v4847 = vunpack.c.l.b16 %v4650
    %v4848 = vunpack.c.h.b16 %v4650
    %v4849 = vunpack.c.l.b16 %v4651
    %v4850 = vunpack.c.h.b16 %v4651
    %v4851 = vunpack.c.l.b16 %v4652
    %v4852 = vunpack.c.h.b16 %v4652
    %v4853 = vunpack.c.l.b16 %v4653
    %v4854 = vunpack.c.h.b16 %v4653
    %v4855 = vunpack.c.l.b16 %v4654
    %v4856 = vunpack.c.h.b16 %v4654
    %v4857 = vunpack.c.l.b16 %v4655
    %v4858 = vunpack.c.h.b16 %v4655
    %v4859 = vunpack.c.l.b16 %v4656
    %v4860 = vunpack.c.h.b16 %v4656
    %v4861 = vpack.c.b16 %v4735, %v4733
    %v4862 = vpack.c.b16 %v4736, %v4734
    %v4863 = vpack.c.b16 %v4739, %v4737
    %v4864 = vpack.c.b16 %v4740, %v4738
    %v4865 = vpack.c.b16 %v4743, %v4741
    %v4866 = vpack.c.b16 %v4744, %v4742
    %v4867 = vpack.c.b16 %v4747, %v4745
    %v4868 = vpack.c.b16 %v4748, %v4746
    %v4869 = vpack.c.b16 %v4751, %v4749
    %v4870 = vpack.c.b16 %v4752, %v4750
    %v4871 = vpack.c.b16 %v4755, %v4753
    %v4872 = vpack.c.b16 %v4756, %v4754
    %v4873 = vpack.c.b16 %v4759, %v4757
    %v4874 = vpack.c.b16 %v4760, %v4758
    %v4875 = vpack.c.b16 %v4763, %v4761
    %v4876 = vpack.c.b16 %v4764, %v4762
    %v4877 = vpack.c.b16 %v4767, %v4765
    %v4878 = vpack.c.b16 %v4768, %v4766
    %v4879 = vpack.c.b16 %v4771, %v4769
    %v4880 = vpack.c.b16 %v4772, %v4770
    %v4881 = vpack.c.b16 %v4775, %v4773
    %v4882 = vpack.c.b16 %v4776, %v4774
    %v4883 = vpack.c.b16 %v4779, %v4777
    %v4884 = vpack.c.b16 %v4780, %v4778
    %v4885 = vpack.c.b16 %v4783, %v4781
    %v4886 = vpack.c.b16 %v4784, %v4782
    %v4887 = vpack.c.b16 %v4787, %v4785
    %v4888 = vpack.c.b16 %v4788, %v4786
    %v4889 = vpack.c.b16 %v4791, %v4789
    %v4890 = vpack.c.b16 %v4792, %v4790
    %v4891 = vpack.c.b16 %v4795, %v4793
    %v4892 = vpack.c.b16 %v4796, %v4794
    %v4893 = vpack.c.b16 %v4799, %v4797
    %v4894 = vpack.c.b16 %v4800, %v4798
    %v4895 = vpack.c.b16 %v4803, %v4801
    %v4896 = vpack.c.b16 %v4804, %v4802
    %v4897 = vpack.c.b16 %v4807, %v4805
    %v4898 = vpack.c.b16 %v4808, %v4806
    %v4899 = vpack.c.b16 %v4811, %v4809
    %v4900 = vpack.c.b16 %v4812, %v4810
    %v4901 = vpack.c.b16 %v4815, %v4813
    %v4902 = vpack.c.b16 %v4816, %v4814
    %v4903 = vpack.c.b16 %v4819, %v4817
    %v4904 = vpack.c.b16 %v4820, %v4818
    %v4905 = vpack.c.b16 %v4823, %v4821
    %v4906 = vpack.c.b16 %v4824, %v4822
    %v4907 = vpack.c.b16 %v4827, %v4825
    %v4908 = vpack.c.b16 %v4828, %v4826
    %v4909 = vpack.c.b16 %v4831, %v4829
    %v4910 = vpack.c.b16 %v4832, %v4830
    %v4911 = vpack.c.b16 %v4835, %v4833
    %v4912 = vpack.c.b16 %v4836, %v4834
    %v4913 = vpack.c.b16 %v4839, %v4837
    %v4914 = vpack.c.b16 %v4840, %v4838
    %v4915 = vpack.c.b16 %v4843, %v4841
    %v4916 = vpack.c.b16 %v4844, %v4842
    %v4917 = vpack.c.b16 %v4847, %v4845
    %v4918 = vpack.c.b16 %v4848, %v4846
    %v4919 = vpack.c.b16 %v4851, %v4849
    %v4920 = vpack.c.b16 %v4852, %v4850
    %v4921 = vpack.c.b16 %v4855, %v4853
    %v4922 = vpack.c.b16 %v4856, %v4854
    %v4923 = vpack.c.b16 %v4859, %v4857
    %v4924 = vpack.c.b16 %v4860, %v4858
    %4989 = vmatprep.subr.bf16.mxu0 %v4876
    %4990 = vmatpush1.bf16.msra.mxu0 %v4875
    %4991 = vmatprep.subr.bf16.mxu0 %v4874
    %4992 = vmatpush1.bf16.msra.mxu0 %v4873
    %4993 = vmatprep.subr.bf16.mxu0 %v4872
    %4994 = vmatpush1.bf16.msra.mxu0 %v4871
    %4995 = vmatprep.subr.bf16.mxu0 %v4870
    %4996 = vmatpush1.bf16.msra.mxu0 %v4869
    %4997 = vmatprep.subr.bf16.mxu0 %v4868
    %4998 = vmatpush1.bf16.msra.mxu0 %v4867
    %4999 = vmatprep.subr.bf16.mxu0 %v4866
    %5000 = vmatpush1.bf16.msra.mxu0 %v4865
    %5001 = vmatprep.subr.bf16.mxu0 %v4864
    %5002 = vmatpush1.bf16.msra.mxu0 %v4863
    %5003 = vmatprep.subr.bf16.mxu0 %v4862
    %5004 = vmatpush1.bf16.msra.mxu0 %v4861
    %5005 = vmatprep.subr.bf16.mxu0 %v4892
    %5006 = vmatpush2.bf16.msra.mxu0 %v4891
    %5007 = vmatprep.subr.bf16.mxu0 %v4890
    %5008 = vmatpush2.bf16.msra.mxu0 %v4889
    %5009 = vmatprep.subr.bf16.mxu0 %v4888
    %5010 = vmatpush2.bf16.msra.mxu0 %v4887
    %5011 = vmatprep.subr.bf16.mxu0 %v4886
    %5012 = vmatpush2.bf16.msra.mxu0 %v4885
    %5013 = vmatprep.subr.bf16.mxu0 %v4884
    %5014 = vmatpush2.bf16.msra.mxu0 %v4883
    %5015 = vmatprep.subr.bf16.mxu0 %v4882
    %5016 = vmatpush2.bf16.msra.mxu0 %v4881
    %5017 = vmatprep.subr.bf16.mxu0 %v4880
    %5018 = vmatpush2.bf16.msra.mxu0 %v4879
    %5019 = vmatprep.subr.bf16.mxu0 %v4878
    %5020 = vmatpush2.bf16.msra.mxu0 %v4877
    %5021 = vmatprep.mubr.bf16.mxu0 %v4562
    %5022 = vmatmul.mubr.bf16.gmra.mxu0 %v4561
    %v5023 = vpop.f32.mrf.mxu0
    %v5024 = vadd.f32 %v4662, %v5023
    %v5025 = vpop.f32.mrf.mxu0
    %v5026 = vadd.f32 %v4666, %v5025
    %v5027 = vpop.f32.mrf.mxu0
    %v5028 = vadd.f32 %v4662, %v5027
    %v5029 = vpop.f32.mrf.mxu0
    %v5030 = vadd.f32 %v4666, %v5029
    %5031 = vmatprep.mubr.bf16.mxu0 %v4566
    %5032 = vmatmul.mubr.bf16.gmra.mxu0 %v4565
    %v5033 = vpop.f32.mrf.mxu0
    %v5034 = vadd.f32 %v4662, %v5033
    %v5035 = vpop.f32.mrf.mxu0
    %v5036 = vadd.f32 %v4666, %v5035
    %v5037 = vpop.f32.mrf.mxu0
    %v5038 = vadd.f32 %v4662, %v5037
    %v5039 = vpop.f32.mrf.mxu0
    %v5040 = vadd.f32 %v4666, %v5039
    %5041 = vmatprep.mubr.bf16.mxu0 %v4570
    %5042 = vmatmul.mubr.bf16.gmra.mxu0 %v4569
    %v5043 = vpop.f32.mrf.mxu0
    %v5044 = vadd.f32 %v4662, %v5043
    %v5045 = vpop.f32.mrf.mxu0
    %v5046 = vadd.f32 %v4666, %v5045
    %v5047 = vpop.f32.mrf.mxu0
    %v5048 = vadd.f32 %v4662, %v5047
    %v5049 = vpop.f32.mrf.mxu0
    %v5050 = vadd.f32 %v4666, %v5049
    %5051 = vmatprep.mubr.bf16.mxu0 %v4574
    %5052 = vmatmul.mubr.bf16.gmra.mxu0 %v4573
    %v5053 = vpop.f32.mrf.mxu0
    %v5054 = vadd.f32 %v4662, %v5053
    %v5055 = vpop.f32.mrf.mxu0
    %v5056 = vadd.f32 %v4666, %v5055
    %v5057 = vpop.f32.mrf.mxu0
    %v5058 = vadd.f32 %v4662, %v5057
    %v5059 = vpop.f32.mrf.mxu0
    %v5060 = vadd.f32 %v4666, %v5059
    %5061 = vmatprep.mubr.bf16.mxu0 %v4578
    %5062 = vmatmul.mubr.bf16.gmra.mxu0 %v4577
    %v5063 = vpop.f32.mrf.mxu0
    %v5064 = vadd.f32 %v4662, %v5063
    %v5065 = vpop.f32.mrf.mxu0
    %v5066 = vadd.f32 %v4666, %v5065
    %v5067 = vpop.f32.mrf.mxu0
    %v5068 = vadd.f32 %v4662, %v5067
    %v5069 = vpop.f32.mrf.mxu0
    %v5070 = vadd.f32 %v4666, %v5069
    %5071 = vmatprep.mubr.bf16.mxu0 %v4582
    %5072 = vmatmul.mubr.bf16.gmra.mxu0 %v4581
    %v5073 = vpop.f32.mrf.mxu0
    %v5074 = vadd.f32 %v4662, %v5073
    %v5075 = vpop.f32.mrf.mxu0
    %v5076 = vadd.f32 %v4666, %v5075
    %v5077 = vpop.f32.mrf.mxu0
    %v5078 = vadd.f32 %v4662, %v5077
    %v5079 = vpop.f32.mrf.mxu0
    %v5080 = vadd.f32 %v4666, %v5079
    %5081 = vmatprep.mubr.bf16.mxu0 %v4586
    %5082 = vmatmul.mubr.bf16.gmra.mxu0 %v4585
    %v5083 = vpop.f32.mrf.mxu0
    %v5084 = vadd.f32 %v4662, %v5083
    %v5085 = vpop.f32.mrf.mxu0
    %v5086 = vadd.f32 %v4666, %v5085
    %v5087 = vpop.f32.mrf.mxu0
    %v5088 = vadd.f32 %v4662, %v5087
    %v5089 = vpop.f32.mrf.mxu0
    %v5090 = vadd.f32 %v4666, %v5089
    %5091 = vmatprep.mubr.bf16.mxu0 %v4590
    %5092 = vmatmul.mubr.bf16.gmra.mxu0 %v4589
    %v5093 = vpop.f32.mrf.mxu0
    %v5094 = vadd.f32 %v4662, %v5093
    %v5095 = vpop.f32.mrf.mxu0
    %v5096 = vadd.f32 %v4666, %v5095
    %v5097 = vpop.f32.mrf.mxu0
    %v5098 = vadd.f32 %v4662, %v5097
    %v5099 = vpop.f32.mrf.mxu0
    %v5100 = vadd.f32 %v4666, %v5099
    %5101 = vdwg.mxu0
    %5102 = vmatprep.subr.bf16.mxu0 %v4908
    %5103 = vmatpush1.bf16.msra.mxu0 %v4907
    %5104 = vmatprep.subr.bf16.mxu0 %v4906
    %5105 = vmatpush1.bf16.msra.mxu0 %v4905
    %5106 = vmatprep.subr.bf16.mxu0 %v4904
    %5107 = vmatpush1.bf16.msra.mxu0 %v4903
    %5108 = vmatprep.subr.bf16.mxu0 %v4902
    %5109 = vmatpush1.bf16.msra.mxu0 %v4901
    %5110 = vmatprep.subr.bf16.mxu0 %v4900
    %5111 = vmatpush1.bf16.msra.mxu0 %v4899
    %5112 = vmatprep.subr.bf16.mxu0 %v4898
    %5113 = vmatpush1.bf16.msra.mxu0 %v4897
    %5114 = vmatprep.subr.bf16.mxu0 %v4896
    %5115 = vmatpush1.bf16.msra.mxu0 %v4895
    %5116 = vmatprep.subr.bf16.mxu0 %v4894
    %5117 = vmatpush1.bf16.msra.mxu0 %v4893
    %5118 = vmatprep.subr.bf16.mxu0 %v4924
    %5119 = vmatpush2.bf16.msra.mxu0 %v4923
    %5120 = vmatprep.subr.bf16.mxu0 %v4922
    %5121 = vmatpush2.bf16.msra.mxu0 %v4921
    %5122 = vmatprep.subr.bf16.mxu0 %v4920
    %5123 = vmatpush2.bf16.msra.mxu0 %v4919
    %5124 = vmatprep.subr.bf16.mxu0 %v4918
    %5125 = vmatpush2.bf16.msra.mxu0 %v4917
    %5126 = vmatprep.subr.bf16.mxu0 %v4916
    %5127 = vmatpush2.bf16.msra.mxu0 %v4915
    %5128 = vmatprep.subr.bf16.mxu0 %v4914
    %5129 = vmatpush2.bf16.msra.mxu0 %v4913
    %5130 = vmatprep.subr.bf16.mxu0 %v4912
    %5131 = vmatpush2.bf16.msra.mxu0 %v4911
    %5132 = vmatprep.subr.bf16.mxu0 %v4910
    %5133 = vmatpush2.bf16.msra.mxu0 %v4909
    %5134 = vmatprep.mubr.bf16.mxu0 %v4564
    %5135 = vmatmul.mubr.bf16.gmra.mxu0 %v4563
    %v5136 = vpop.f32.mrf.mxu0
    %v5137 = vadd.f32 %v5024, %v5136
    %v5138 = vpop.f32.mrf.mxu0
    %v5139 = vadd.f32 %v5026, %v5138
    %v5140 = vpop.f32.mrf.mxu0
    %v5141 = vadd.f32 %v5028, %v5140
    %v5142 = vpop.f32.mrf.mxu0
    %v5143 = vadd.f32 %v5030, %v5142
    %5144 = vmatprep.mubr.bf16.mxu0 %v4568
    %5145 = vmatmul.mubr.bf16.gmra.mxu0 %v4567
    %v5146 = vpop.f32.mrf.mxu0
    %v5147 = vadd.f32 %v5034, %v5146
    %v5148 = vpop.f32.mrf.mxu0
    %v5149 = vadd.f32 %v5036, %v5148
    %v5150 = vpop.f32.mrf.mxu0
    %v5151 = vadd.f32 %v5038, %v5150
    %v5152 = vpop.f32.mrf.mxu0
    %v5153 = vadd.f32 %v5040, %v5152
    %5154 = vmatprep.mubr.bf16.mxu0 %v4572
    %5155 = vmatmul.mubr.bf16.gmra.mxu0 %v4571
    %v5156 = vpop.f32.mrf.mxu0
    %v5157 = vadd.f32 %v5044, %v5156
    %v5158 = vpop.f32.mrf.mxu0
    %v5159 = vadd.f32 %v5046, %v5158
    %v5160 = vpop.f32.mrf.mxu0
    %v5161 = vadd.f32 %v5048, %v5160
    %v5162 = vpop.f32.mrf.mxu0
    %v5163 = vadd.f32 %v5050, %v5162
    %5164 = vmatprep.mubr.bf16.mxu0 %v4576
    %5165 = vmatmul.mubr.bf16.gmra.mxu0 %v4575
    %v5166 = vpop.f32.mrf.mxu0
    %v5167 = vadd.f32 %v5054, %v5166
    %v5168 = vpop.f32.mrf.mxu0
    %v5169 = vadd.f32 %v5056, %v5168
    %v5170 = vpop.f32.mrf.mxu0
    %v5171 = vadd.f32 %v5058, %v5170
    %v5172 = vpop.f32.mrf.mxu0
    %v5173 = vadd.f32 %v5060, %v5172
    %5174 = vmatprep.mubr.bf16.mxu0 %v4580
    %5175 = vmatmul.mubr.bf16.gmra.mxu0 %v4579
    %v5176 = vpop.f32.mrf.mxu0
    %v5177 = vadd.f32 %v5064, %v5176
    %v5178 = vpop.f32.mrf.mxu0
    %v5179 = vadd.f32 %v5066, %v5178
    %v5180 = vpop.f32.mrf.mxu0
    %v5181 = vadd.f32 %v5068, %v5180
    %v5182 = vpop.f32.mrf.mxu0
    %v5183 = vadd.f32 %v5070, %v5182
    %5184 = vmatprep.mubr.bf16.mxu0 %v4584
    %5185 = vmatmul.mubr.bf16.gmra.mxu0 %v4583
    %v5186 = vpop.f32.mrf.mxu0
    %v5187 = vadd.f32 %v5074, %v5186
    %v5188 = vpop.f32.mrf.mxu0
    %v5189 = vadd.f32 %v5076, %v5188
    %v5190 = vpop.f32.mrf.mxu0
    %v5191 = vadd.f32 %v5078, %v5190
    %v5192 = vpop.f32.mrf.mxu0
    %v5193 = vadd.f32 %v5080, %v5192
    %5194 = vmatprep.mubr.bf16.mxu0 %v4588
    %5195 = vmatmul.mubr.bf16.gmra.mxu0 %v4587
    %v5196 = vpop.f32.mrf.mxu0
    %v5197 = vadd.f32 %v5084, %v5196
    %v5198 = vpop.f32.mrf.mxu0
    %v5199 = vadd.f32 %v5086, %v5198
    %v5200 = vpop.f32.mrf.mxu0
    %v5201 = vadd.f32 %v5088, %v5200
    %v5202 = vpop.f32.mrf.mxu0
    %v5203 = vadd.f32 %v5090, %v5202
    %5204 = vmatprep.mubr.bf16.mxu0 %v4592
    %5205 = vmatmul.mubr.bf16.gmra.mxu0 %v4591
    %v5206 = vpop.f32.mrf.mxu0
    %v5207 = vadd.f32 %v5094, %v5206
    %v5208 = vpop.f32.mrf.mxu0
    %v5209 = vadd.f32 %v5096, %v5208
    %v5210 = vpop.f32.mrf.mxu0
    %v5211 = vadd.f32 %v5098, %v5210
    %v5212 = vpop.f32.mrf.mxu0
    %v5213 = vadd.f32 %v5100, %v5212
    %5214 = vdwg.mxu0
    %v5215 = vmax.f32 %v5137, 0.0
    %v5216 = vmax.f32 %v5139, 0.0
    %v5217 = vmax.f32 %v5141, 0.0
    %v5218 = vmax.f32 %v5143, 0.0
    %v5219 = vmax.f32 %v5147, 0.0
    %v5220 = vmax.f32 %v5149, 0.0
    %v5221 = vmax.f32 %v5151, 0.0
    %v5222 = vmax.f32 %v5153, 0.0
    %v5223 = vmax.f32 %v5157, 0.0
    %v5224 = vmax.f32 %v5159, 0.0
    %v5225 = vmax.f32 %v5161, 0.0
    %v5226 = vmax.f32 %v5163, 0.0
    %v5227 = vmax.f32 %v5167, 0.0
    %v5228 = vmax.f32 %v5169, 0.0
    %v5229 = vmax.f32 %v5171, 0.0
    %v5230 = vmax.f32 %v5173, 0.0
    %v5231 = vmax.f32 %v5177, 0.0
    %v5232 = vmax.f32 %v5179, 0.0
    %v5233 = vmax.f32 %v5181, 0.0
    %v5234 = vmax.f32 %v5183, 0.0
    %v5235 = vmax.f32 %v5187, 0.0
    %v5236 = vmax.f32 %v5189, 0.0
    %v5237 = vmax.f32 %v5191, 0.0
    %v5238 = vmax.f32 %v5193, 0.0
    %v5239 = vmax.f32 %v5197, 0.0
    %v5240 = vmax.f32 %v5199, 0.0
    %v5241 = vmax.f32 %v5201, 0.0
    %v5242 = vmax.f32 %v5203, 0.0
    %v5243 = vmax.f32 %v5207, 0.0
    %v5244 = vmax.f32 %v5209, 0.0
    %v5245 = vmax.f32 %v5211, 0.0
    %v5246 = vmax.f32 %v5213, 0.0
    %v5247 = vpack.c.bf16 %v5217, %v5215
    %v5248 = vpack.c.bf16 %v5218, %v5216
    %v5249 = vpack.c.bf16 %v5221, %v5219
    %v5250 = vpack.c.bf16 %v5222, %v5220
    %v5251 = vpack.c.bf16 %v5225, %v5223
    %v5252 = vpack.c.bf16 %v5226, %v5224
    %v5253 = vpack.c.bf16 %v5229, %v5227
    %v5254 = vpack.c.bf16 %v5230, %v5228
    %v5255 = vpack.c.bf16 %v5233, %v5231
    %v5256 = vpack.c.bf16 %v5234, %v5232
    %v5257 = vpack.c.bf16 %v5237, %v5235
    %v5258 = vpack.c.bf16 %v5238, %v5236
    %v5259 = vpack.c.bf16 %v5241, %v5239
    %v5260 = vpack.c.bf16 %v5242, %v5240
    %v5261 = vpack.c.bf16 %v5245, %v5243
    %v5262 = vpack.c.bf16 %v5246, %v5244
    %v5263 = vld [vmem:[%s9] sm:$0xf]
    %v5264 = vld [vmem:[%s9 + $0x4] sm:$0xf]
    %v5265 = vld [vmem:[%s9 + $0x8] sm:$0xf]
    %v5266 = vld [vmem:[%s9 + $0xc] sm:$0xf]
    %v5267 = vld [vmem:[%s9 + $0x10] sm:$0xf]
    %v5268 = vld [vmem:[%s9 + $0x14] sm:$0xf]
    %v5269 = vld [vmem:[%s9 + $0x18] sm:$0xf]
    %v5270 = vld [vmem:[%s9 + $0x1c] sm:$0xf]
    %v5271 = vld [vmem:[%s9 + $0x20] sm:$0xf]
    %v5272 = vld [vmem:[%s9 + $0x24] sm:$0xf]
    %v5273 = vld [vmem:[%s9 + $0x28] sm:$0xf]
    %v5274 = vld [vmem:[%s9 + $0x2c] sm:$0xf]
    %v5275 = vld [vmem:[%s9 + $0x30] sm:$0xf]
    %v5276 = vld [vmem:[%s9 + $0x34] sm:$0xf]
    %v5277 = vld [vmem:[%s9 + $0x38] sm:$0xf]
    %v5278 = vld [vmem:[%s9 + $0x3c] sm:$0xf]
    %v5279 = vld [vmem:[%s9 + $0x40] sm:$0xf]
    %v5280 = vld [vmem:[%s9 + $0x44] sm:$0xf]
    %v5281 = vld [vmem:[%s9 + $0x48] sm:$0xf]
    %v5282 = vld [vmem:[%s9 + $0x4c] sm:$0xf]
    %v5283 = vld [vmem:[%s9 + $0x50] sm:$0xf]
    %v5284 = vld [vmem:[%s9 + $0x54] sm:$0xf]
    %v5285 = vld [vmem:[%s9 + $0x58] sm:$0xf]
    %v5286 = vld [vmem:[%s9 + $0x5c] sm:$0xf]
    %v5287 = vld [vmem:[%s9 + $0x60] sm:$0xf]
    %v5288 = vld [vmem:[%s9 + $0x64] sm:$0xf]
    %v5289 = vld [vmem:[%s9 + $0x68] sm:$0xf]
    %v5290 = vld [vmem:[%s9 + $0x6c] sm:$0xf]
    %v5291 = vld [vmem:[%s9 + $0x70] sm:$0xf]
    %v5292 = vld [vmem:[%s9 + $0x74] sm:$0xf]
    %v5293 = vld [vmem:[%s9 + $0x78] sm:$0xf]
    %v5294 = vld [vmem:[%s9 + $0x7c] sm:$0xf]
    %v5295 = vld [vmem:[%s10] sm:$0x1]
    %v5297 = vlaneseq
    %v5298 = vshrl.u32 %v5297, 7
    %v5299 = vsub.s32 0, %v5298
    %v5300 = vrot.slane %v5295, %v5299
    %v5334 = vunpack.c.l.b16 %v5263
    %v5335 = vunpack.c.l.b16 %v5264
    %v5336 = vunpack.c.l.b16 %v5265
    %v5337 = vunpack.c.l.b16 %v5266
    %v5338 = vunpack.c.l.b16 %v5267
    %v5339 = vunpack.c.l.b16 %v5268
    %v5340 = vunpack.c.l.b16 %v5269
    %v5341 = vunpack.c.l.b16 %v5270
    %v5342 = vunpack.c.l.b16 %v5271
    %v5343 = vunpack.c.l.b16 %v5272
    %v5344 = vunpack.c.l.b16 %v5273
    %v5345 = vunpack.c.l.b16 %v5274
    %v5346 = vunpack.c.l.b16 %v5275
    %v5347 = vunpack.c.l.b16 %v5276
    %v5348 = vunpack.c.l.b16 %v5277
    %v5349 = vunpack.c.l.b16 %v5278
    %v5350 = vunpack.c.l.b16 %v5279
    %v5351 = vunpack.c.l.b16 %v5280
    %v5352 = vunpack.c.l.b16 %v5281
    %v5353 = vunpack.c.l.b16 %v5282
    %v5354 = vunpack.c.l.b16 %v5283
    %v5355 = vunpack.c.l.b16 %v5284
    %v5356 = vunpack.c.l.b16 %v5285
    %v5357 = vunpack.c.l.b16 %v5286
    %v5358 = vunpack.c.l.b16 %v5287
    %v5359 = vunpack.c.l.b16 %v5288
    %v5360 = vunpack.c.l.b16 %v5289
    %v5361 = vunpack.c.l.b16 %v5290
    %v5362 = vunpack.c.l.b16 %v5291
    %v5363 = vunpack.c.l.b16 %v5292
    %v5364 = vunpack.c.l.b16 %v5293
    %v5365 = vunpack.c.l.b16 %v5294
    %v5366 = vpack.c.b16 %v5335, %v5334
    %v5367 = vpack.c.b16 %v5337, %v5336
    %v5368 = vpack.c.b16 %v5339, %v5338
    %v5369 = vpack.c.b16 %v5341, %v5340
    %v5370 = vpack.c.b16 %v5343, %v5342
    %v5371 = vpack.c.b16 %v5345, %v5344
    %v5372 = vpack.c.b16 %v5347, %v5346
    %v5373 = vpack.c.b16 %v5349, %v5348
    %v5374 = vpack.c.b16 %v5351, %v5350
    %v5375 = vpack.c.b16 %v5353, %v5352
    %v5376 = vpack.c.b16 %v5355, %v5354
    %v5377 = vpack.c.b16 %v5357, %v5356
    %v5378 = vpack.c.b16 %v5359, %v5358
    %v5379 = vpack.c.b16 %v5361, %v5360
    %v5380 = vpack.c.b16 %v5363, %v5362
    %v5381 = vpack.c.b16 %v5365, %v5364
    %5398 = vmatprep.subr.bf16.mxu0 0
    %5399 = vmatpush1.bf16.msra.mxu0 %v5373
    %5400 = vmatprep.subr.bf16.mxu0 0
    %5401 = vmatpush1.bf16.msra.mxu0 %v5372
    %5402 = vmatprep.subr.bf16.mxu0 0
    %5403 = vmatpush1.bf16.msra.mxu0 %v5371
    %5404 = vmatprep.subr.bf16.mxu0 0
    %5405 = vmatpush1.bf16.msra.mxu0 %v5370
    %5406 = vmatprep.subr.bf16.mxu0 0
    %5407 = vmatpush1.bf16.msra.mxu0 %v5369
    %5408 = vmatprep.subr.bf16.mxu0 0
    %5409 = vmatpush1.bf16.msra.mxu0 %v5368
    %5410 = vmatprep.subr.bf16.mxu0 0
    %5411 = vmatpush1.bf16.msra.mxu0 %v5367
    %5412 = vmatprep.subr.bf16.mxu0 0
    %5413 = vmatpush1.bf16.msra.mxu0 %v5366
    %5414 = vmatprep.subr.bf16.mxu0 0
    %5415 = vmatpush2.bf16.msra.mxu0 %v5381
    %5416 = vmatprep.subr.bf16.mxu0 0
    %5417 = vmatpush2.bf16.msra.mxu0 %v5380
    %5418 = vmatprep.subr.bf16.mxu0 0
    %5419 = vmatpush2.bf16.msra.mxu0 %v5379
    %5420 = vmatprep.subr.bf16.mxu0 0
    %5421 = vmatpush2.bf16.msra.mxu0 %v5378
    %5422 = vmatprep.subr.bf16.mxu0 0
    %5423 = vmatpush2.bf16.msra.mxu0 %v5377
    %5424 = vmatprep.subr.bf16.mxu0 0
    %5425 = vmatpush2.bf16.msra.mxu0 %v5376
    %5426 = vmatprep.subr.bf16.mxu0 0
    %5427 = vmatpush2.bf16.msra.mxu0 %v5375
    %5428 = vmatprep.subr.bf16.mxu0 0
    %5429 = vmatpush2.bf16.msra.mxu0 %v5374
    %5430 = vmatprep.mubr.bf16.mxu0 %v5248
    %5431 = vmatmul.mubr.bf16.gmra.mxu0 %v5247
    %v5432 = vpop.f32.mrf.mxu0
    %v5433 = vadd.f32 %v5300, %v5432
    %v5434 = vpop.f32.mrf.mxu0
    %v5435 = vpop.f32.mrf.mxu0
    %v5436 = vadd.f32 %v5300, %v5435
    %v5437 = vpop.f32.mrf.mxu0
    %5438 = vmatprep.mubr.bf16.mxu0 %v5250
    %5439 = vmatmul.mubr.bf16.gmra.mxu0 %v5249
    %v5440 = vpop.f32.mrf.mxu0
    %v5441 = vadd.f32 %v5300, %v5440
    %v5442 = vpop.f32.mrf.mxu0
    %v5443 = vpop.f32.mrf.mxu0
    %v5444 = vadd.f32 %v5300, %v5443
    %v5445 = vpop.f32.mrf.mxu0
    %5446 = vmatprep.mubr.bf16.mxu0 %v5252
    %5447 = vmatmul.mubr.bf16.gmra.mxu0 %v5251
    %v5448 = vpop.f32.mrf.mxu0
    %v5449 = vadd.f32 %v5300, %v5448
    %v5450 = vpop.f32.mrf.mxu0
    %v5451 = vpop.f32.mrf.mxu0
    %v5452 = vadd.f32 %v5300, %v5451
    %v5453 = vpop.f32.mrf.mxu0
    %5454 = vmatprep.mubr.bf16.mxu0 %v5254
    %5455 = vmatmul.mubr.bf16.gmra.mxu0 %v5253
    %v5456 = vpop.f32.mrf.mxu0
    %v5457 = vadd.f32 %v5300, %v5456
    %v5458 = vpop.f32.mrf.mxu0
    %v5459 = vpop.f32.mrf.mxu0
    %v5460 = vadd.f32 %v5300, %v5459
    %v5461 = vpop.f32.mrf.mxu0
    %5462 = vmatprep.mubr.bf16.mxu0 %v5256
    %5463 = vmatmul.mubr.bf16.gmra.mxu0 %v5255
    %v5464 = vpop.f32.mrf.mxu0
    %v5465 = vadd.f32 %v5300, %v5464
    %v5466 = vpop.f32.mrf.mxu0
    %v5467 = vpop.f32.mrf.mxu0
    %v5468 = vadd.f32 %v5300, %v5467
    %v5469 = vpop.f32.mrf.mxu0
    %5470 = vmatprep.mubr.bf16.mxu0 %v5258
    %5471 = vmatmul.mubr.bf16.gmra.mxu0 %v5257
    %v5472 = vpop.f32.mrf.mxu0
    %v5473 = vadd.f32 %v5300, %v5472
    %v5474 = vpop.f32.mrf.mxu0
    %v5475 = vpop.f32.mrf.mxu0
    %v5476 = vadd.f32 %v5300, %v5475
    %v5477 = vpop.f32.mrf.mxu0
    %5478 = vmatprep.mubr.bf16.mxu0 %v5260
    %5479 = vmatmul.mubr.bf16.gmra.mxu0 %v5259
    %v5480 = vpop.f32.mrf.mxu0
    %v5481 = vadd.f32 %v5300, %v5480
    %v5482 = vpop.f32.mrf.mxu0
    %v5483 = vpop.f32.mrf.mxu0
    %v5484 = vadd.f32 %v5300, %v5483
    %v5485 = vpop.f32.mrf.mxu0
    %5486 = vmatprep.mubr.bf16.mxu0 %v5262
    %5487 = vmatmul.mubr.bf16.gmra.mxu0 %v5261
    %v5488 = vpop.f32.mrf.mxu0
    %v5489 = vadd.f32 %v5300, %v5488
    %v5490 = vpop.f32.mrf.mxu0
    %v5491 = vpop.f32.mrf.mxu0
    %v5492 = vadd.f32 %v5300, %v5491
    %v5493 = vpop.f32.mrf.mxu0
    %5494 = vdwg.mxu0
    %v5495 = vld [vmem:[#allocation7] sm:$0x1]
    %v5496 = vld [vmem:[#allocation9] sm:$0x1]
    %vm5497 = vcmask 523264
    %v5498 = vsel %vm5497, %v5433, 0.0
    %v5499 = vsel %vm5497, %v5436, 0.0
    %v5500 = vadd.f32 %v5498, %v5499
    %v5501 = vsel %vm5497, %v5441, 0.0
    %v5502 = vadd.f32 %v5500, %v5501
    %v5503 = vsel %vm5497, %v5444, 0.0
    %v5504 = vadd.f32 %v5502, %v5503
    %v5505 = vsel %vm5497, %v5449, 0.0
    %v5506 = vadd.f32 %v5504, %v5505
    %v5507 = vsel %vm5497, %v5452, 0.0
    %v5508 = vadd.f32 %v5506, %v5507
    %v5509 = vsel %vm5497, %v5457, 0.0
    %v5510 = vadd.f32 %v5508, %v5509
    %v5511 = vsel %vm5497, %v5460, 0.0
    %v5512 = vadd.f32 %v5510, %v5511
    %v5513 = vsel %vm5497, %v5465, 0.0
    %v5514 = vadd.f32 %v5512, %v5513
    %v5515 = vsel %vm5497, %v5468, 0.0
    %v5516 = vadd.f32 %v5514, %v5515
    %v5517 = vsel %vm5497, %v5473, 0.0
    %v5518 = vadd.f32 %v5516, %v5517
    %v5519 = vsel %vm5497, %v5476, 0.0
    %v5520 = vadd.f32 %v5518, %v5519
    %v5521 = vsel %vm5497, %v5481, 0.0
    %v5522 = vadd.f32 %v5520, %v5521
    %v5523 = vsel %vm5497, %v5484, 0.0
    %v5524 = vadd.f32 %v5522, %v5523
    %v5525 = vsel %vm5497, %v5489, 0.0
    %v5526 = vadd.f32 %v5524, %v5525
    %v5527 = vsel %vm5497, %v5492, 0.0
    %v5528 = vadd.f32 %v5526, %v5527
    %v5529 = vrot.slane %v5528, 4
    %v5530 = vadd.f32 %v5528, %v5529
    %v5531 = vrot.slane %v5530, 2
    %v5532 = vadd.f32 %v5530, %v5531
    %v5533 = vrot.slane %v5532, 1
    %v5534 = vadd.f32 %v5532, %v5533
    %v5535 = vmul.f32 %v5534, 0.0078125
    %v5536 = vsub.f32 %v5433, %v5535
    %v5537 = vsub.f32 %v5436, %v5535
    %v5538 = vsub.f32 %v5441, %v5535
    %v5539 = vsub.f32 %v5444, %v5535
    %v5540 = vsub.f32 %v5449, %v5535
    %v5541 = vsub.f32 %v5452, %v5535
    %v5542 = vsub.f32 %v5457, %v5535
    %v5543 = vsub.f32 %v5460, %v5535
    %v5544 = vsub.f32 %v5465, %v5535
    %v5545 = vsub.f32 %v5468, %v5535
    %v5546 = vsub.f32 %v5473, %v5535
    %v5547 = vsub.f32 %v5476, %v5535
    %v5548 = vsub.f32 %v5481, %v5535
    %v5549 = vsub.f32 %v5484, %v5535
    %v5550 = vsub.f32 %v5489, %v5535
    %v5551 = vsub.f32 %v5492, %v5535
    %v5552 = vmul.f32 %v5536, %v5536
    %v5553 = vmul.f32 %v5537, %v5537
    %v5554 = vmul.f32 %v5538, %v5538
    %v5555 = vmul.f32 %v5539, %v5539
    %v5556 = vmul.f32 %v5540, %v5540
    %v5557 = vmul.f32 %v5541, %v5541
    %v5558 = vmul.f32 %v5542, %v5542
    %v5559 = vmul.f32 %v5543, %v5543
    %v5560 = vmul.f32 %v5544, %v5544
    %v5561 = vmul.f32 %v5545, %v5545
    %v5562 = vmul.f32 %v5546, %v5546
    %v5563 = vmul.f32 %v5547, %v5547
    %v5564 = vmul.f32 %v5548, %v5548
    %v5565 = vmul.f32 %v5549, %v5549
    %v5566 = vmul.f32 %v5550, %v5550
    %v5567 = vmul.f32 %v5551, %v5551
    %v5568 = vsel %vm5497, %v5552, 0.0
    %v5569 = vsel %vm5497, %v5553, 0.0
    %v5570 = vadd.f32 %v5568, %v5569
    %v5571 = vsel %vm5497, %v5554, 0.0
    %v5572 = vadd.f32 %v5570, %v5571
    %v5573 = vsel %vm5497, %v5555, 0.0
    %v5574 = vadd.f32 %v5572, %v5573
    %v5575 = vsel %vm5497, %v5556, 0.0
    %v5576 = vadd.f32 %v5574, %v5575
    %v5577 = vsel %vm5497, %v5557, 0.0
    %v5578 = vadd.f32 %v5576, %v5577
    %v5579 = vsel %vm5497, %v5558, 0.0
    %v5580 = vadd.f32 %v5578, %v5579
    %v5581 = vsel %vm5497, %v5559, 0.0
    %v5582 = vadd.f32 %v5580, %v5581
    %v5583 = vsel %vm5497, %v5560, 0.0
    %v5584 = vadd.f32 %v5582, %v5583
    %v5585 = vsel %vm5497, %v5561, 0.0
    %v5586 = vadd.f32 %v5584, %v5585
    %v5587 = vsel %vm5497, %v5562, 0.0
    %v5588 = vadd.f32 %v5586, %v5587
    %v5589 = vsel %vm5497, %v5563, 0.0
    %v5590 = vadd.f32 %v5588, %v5589
    %v5591 = vsel %vm5497, %v5564, 0.0
    %v5592 = vadd.f32 %v5590, %v5591
    %v5593 = vsel %vm5497, %v5565, 0.0
    %v5594 = vadd.f32 %v5592, %v5593
    %v5595 = vsel %vm5497, %v5566, 0.0
    %v5596 = vadd.f32 %v5594, %v5595
    %v5597 = vsel %vm5497, %v5567, 0.0
    %v5598 = vadd.f32 %v5596, %v5597
    %v5599 = vrot.slane %v5598, 4
    %v5600 = vadd.f32 %v5598, %v5599
    %v5601 = vrot.slane %v5600, 2
    %v5602 = vadd.f32 %v5600, %v5601
    %v5603 = vrot.slane %v5602, 1
    %v5604 = vadd.f32 %v5602, %v5603
    %v5605 = vmul.f32 %v5604, 0.0078125
    %v5606 = vadd.f32 %v5605, 1e-05
    %v5607 = vrsqrt.pop %v5606
    %v5608 = vmul.f32 %v5495, %v5607
    %v5609 = vmul.f32 %v5535, %v5608
    %v5610 = vsub.f32 %v5496, %v5609
    %v5612 = vlaneseq
    %v5613 = vshrl.u32 %v5612, 7
    %v5614 = vsub.s32 0, %v5613
    %v5615 = vrot.slane %v5608, %v5614
    %v5617 = vmul.f32 %v5433, %v5615
    %v5618 = vmul.f32 %v5436, %v5615
    %v5619 = vmul.f32 %v5441, %v5615
    %v5620 = vmul.f32 %v5444, %v5615
    %v5621 = vmul.f32 %v5449, %v5615
    %v5622 = vmul.f32 %v5452, %v5615
    %v5623 = vmul.f32 %v5457, %v5615
    %v5624 = vmul.f32 %v5460, %v5615
    %v5625 = vmul.f32 %v5465, %v5615
    %v5626 = vmul.f32 %v5468, %v5615
    %v5627 = vmul.f32 %v5473, %v5615
    %v5628 = vmul.f32 %v5476, %v5615
    %v5629 = vmul.f32 %v5481, %v5615
    %v5630 = vmul.f32 %v5484, %v5615
    %v5631 = vmul.f32 %v5489, %v5615
    %v5632 = vmul.f32 %v5492, %v5615
    %v5634 = vlaneseq
    %v5635 = vshrl.u32 %v5634, 7
    %v5636 = vsub.s32 0, %v5635
    %v5637 = vrot.slane %v5610, %v5636
    %v5639 = vadd.f32 %v5617, %v5637
    %v5640 = vadd.f32 %v5618, %v5637
    %v5641 = vadd.f32 %v5619, %v5637
    %v5642 = vadd.f32 %v5620, %v5637
    %v5643 = vadd.f32 %v5621, %v5637
    %v5644 = vadd.f32 %v5622, %v5637
    %v5645 = vadd.f32 %v5623, %v5637
    %v5646 = vadd.f32 %v5624, %v5637
    %v5647 = vadd.f32 %v5625, %v5637
    %v5648 = vadd.f32 %v5626, %v5637
    %v5649 = vadd.f32 %v5627, %v5637
    %v5650 = vadd.f32 %v5628, %v5637
    %v5651 = vadd.f32 %v5629, %v5637
    %v5652 = vadd.f32 %v5630, %v5637
    %v5653 = vadd.f32 %v5631, %v5637
    %v5654 = vadd.f32 %v5632, %v5637
    %v5655 = vmax.f32 %v5639, 0.0
    %v5656 = vmax.f32 %v5640, 0.0
    %v5657 = vmax.f32 %v5641, 0.0
    %v5658 = vmax.f32 %v5642, 0.0
    %v5659 = vmax.f32 %v5643, 0.0
    %v5660 = vmax.f32 %v5644, 0.0
    %v5661 = vmax.f32 %v5645, 0.0
    %v5662 = vmax.f32 %v5646, 0.0
    %v5663 = vmax.f32 %v5647, 0.0
    %v5664 = vmax.f32 %v5648, 0.0
    %v5665 = vmax.f32 %v5649, 0.0
    %v5666 = vmax.f32 %v5650, 0.0
    %v5667 = vmax.f32 %v5651, 0.0
    %v5668 = vmax.f32 %v5652, 0.0
    %v5669 = vmax.f32 %v5653, 0.0
    %v5670 = vmax.f32 %v5654, 0.0
    %v5671 = vpack.c.bf16 %v5656, %v5655
    %v5672 = vpack.c.bf16 %v5658, %v5657
    %v5673 = vpack.c.bf16 %v5660, %v5659
    %v5674 = vpack.c.bf16 %v5662, %v5661
    %v5675 = vpack.c.bf16 %v5664, %v5663
    %v5676 = vpack.c.bf16 %v5666, %v5665
    %v5677 = vpack.c.bf16 %v5668, %v5667
    %v5678 = vpack.c.bf16 %v5670, %v5669
    %v5679 = vld [vmem:[%s13] sm:$0xf]
    %v5680 = vld [vmem:[%s13 + $0x4] sm:$0xf]
    %v5681 = vld [vmem:[%s13 + $0x8] sm:$0xf]
    %v5682 = vld [vmem:[%s13 + $0xc] sm:$0xf]
    %v5683 = vld [vmem:[%s13 + $0x10] sm:$0xf]
    %v5684 = vld [vmem:[%s13 + $0x14] sm:$0xf]
    %v5685 = vld [vmem:[%s13 + $0x18] sm:$0xf]
    %v5686 = vld [vmem:[%s13 + $0x1c] sm:$0xf]
    %v5687 = vld [vmem:[#allocation10] sm:$0x1]
    %v5689 = vlaneseq
    %v5690 = vshrl.u32 %v5689, 7
    %v5691 = vsub.s32 0, %v5690
    %v5692 = vrot.slane %v5687, %v5691
    %v5702 = vunpack.c.l.b16 %v5679
    %v5703 = vunpack.c.l.b16 %v5680
    %v5704 = vunpack.c.l.b16 %v5681
    %v5705 = vunpack.c.l.b16 %v5682
    %v5706 = vunpack.c.l.b16 %v5683
    %v5707 = vunpack.c.l.b16 %v5684
    %v5708 = vunpack.c.l.b16 %v5685
    %v5709 = vunpack.c.l.b16 %v5686
    %v5710 = vpack.c.b16 %v5703, %v5702
    %v5711 = vpack.c.b16 %v5705, %v5704
    %v5712 = vpack.c.b16 %v5707, %v5706
    %v5713 = vpack.c.b16 %v5709, %v5708
    %v5719 = vsel %vm5497, %v5671, 0
    %v5722 = vsel %vm5497, %v5672, 0
    %v5725 = vsel %vm5497, %v5673, 0
    %v5728 = vsel %vm5497, %v5674, 0
    %v5731 = vsel %vm5497, %v5675, 0
    %v5734 = vsel %vm5497, %v5676, 0
    %v5737 = vsel %vm5497, %v5677, 0
    %v5740 = vsel %vm5497, %v5678, 0
    %5742 = vmatprep.subr.bf16.mxu0 0
    %5743 = vmatpush1.bf16.msra.mxu0 0
    %5744 = vmatprep.subr.bf16.mxu0 0
    %5745 = vmatpush1.bf16.msra.mxu0 0
    %5746 = vmatprep.subr.bf16.mxu0 0
    %5747 = vmatpush1.bf16.msra.mxu0 0
    %5748 = vmatprep.subr.bf16.mxu0 0
    %5749 = vmatpush1.bf16.msra.mxu0 0
    %5750 = vmatprep.subr.bf16.mxu0 0
    %5751 = vmatpush1.bf16.msra.mxu0 %v5713
    %5752 = vmatprep.subr.bf16.mxu0 0
    %5753 = vmatpush1.bf16.msra.mxu0 %v5712
    %5754 = vmatprep.subr.bf16.mxu0 0
    %5755 = vmatpush1.bf16.msra.mxu0 %v5711
    %5756 = vmatprep.subr.bf16.mxu0 0
    %5757 = vmatpush1.bf16.msra.mxu0 %v5710
    %5758 = vmatprep.subr.bf16.mxu0 0
    %5759 = vmatpush2.bf16.msra.mxu0 0
    %5760 = vmatprep.subr.bf16.mxu0 0
    %5761 = vmatpush2.bf16.msra.mxu0 0
    %5762 = vmatprep.subr.bf16.mxu0 0
    %5763 = vmatpush2.bf16.msra.mxu0 0
    %5764 = vmatprep.subr.bf16.mxu0 0
    %5765 = vmatpush2.bf16.msra.mxu0 0
    %5766 = vmatprep.subr.bf16.mxu0 0
    %5767 = vmatpush2.bf16.msra.mxu0 0
    %5768 = vmatprep.subr.bf16.mxu0 0
    %5769 = vmatpush2.bf16.msra.mxu0 0
    %5770 = vmatprep.subr.bf16.mxu0 0
    %5771 = vmatpush2.bf16.msra.mxu0 0
    %5772 = vmatprep.subr.bf16.mxu0 0
    %5773 = vmatpush2.bf16.msra.mxu0 0
    %5774 = vmatprep.mubr.bf16.mxu0 0
    %5775 = vmatmul.mubr.bf16.gmra.mxu0 %v5719
    %v5776 = vpop.f32.mrf.mxu0
    %v5777 = vadd.f32 %v5692, %v5776
    %v5778 = vpop.f32.mrf.mxu0
    %v5779 = vpop.f32.mrf.mxu0
    %v5780 = vadd.f32 %v5692, %v5779
    %v5781 = vpop.f32.mrf.mxu0
    %5782 = vmatprep.mubr.bf16.mxu0 0
    %5783 = vmatmul.mubr.bf16.gmra.mxu0 %v5722
    %v5784 = vpop.f32.mrf.mxu0
    %v5785 = vadd.f32 %v5692, %v5784
    %v5786 = vpop.f32.mrf.mxu0
    %v5787 = vpop.f32.mrf.mxu0
    %v5788 = vadd.f32 %v5692, %v5787
    %v5789 = vpop.f32.mrf.mxu0
    %5790 = vmatprep.mubr.bf16.mxu0 0
    %5791 = vmatmul.mubr.bf16.gmra.mxu0 %v5725
    %v5792 = vpop.f32.mrf.mxu0
    %v5793 = vadd.f32 %v5692, %v5792
    %v5794 = vpop.f32.mrf.mxu0
    %v5795 = vpop.f32.mrf.mxu0
    %v5796 = vadd.f32 %v5692, %v5795
    %v5797 = vpop.f32.mrf.mxu0
    %5798 = vmatprep.mubr.bf16.mxu0 0
    %5799 = vmatmul.mubr.bf16.gmra.mxu0 %v5728
    %v5800 = vpop.f32.mrf.mxu0
    %v5801 = vadd.f32 %v5692, %v5800
    %v5802 = vpop.f32.mrf.mxu0
    %v5803 = vpop.f32.mrf.mxu0
    %v5804 = vadd.f32 %v5692, %v5803
    %v5805 = vpop.f32.mrf.mxu0
    %5806 = vmatprep.mubr.bf16.mxu0 0
    %5807 = vmatmul.mubr.bf16.gmra.mxu0 %v5731
    %v5808 = vpop.f32.mrf.mxu0
    %v5809 = vadd.f32 %v5692, %v5808
    %v5810 = vpop.f32.mrf.mxu0
    %v5811 = vpop.f32.mrf.mxu0
    %v5812 = vadd.f32 %v5692, %v5811
    %v5813 = vpop.f32.mrf.mxu0
    %5814 = vmatprep.mubr.bf16.mxu0 0
    %5815 = vmatmul.mubr.bf16.gmra.mxu0 %v5734
    %v5816 = vpop.f32.mrf.mxu0
    %v5817 = vadd.f32 %v5692, %v5816
    %v5818 = vpop.f32.mrf.mxu0
    %v5819 = vpop.f32.mrf.mxu0
    %v5820 = vadd.f32 %v5692, %v5819
    %v5821 = vpop.f32.mrf.mxu0
    %5822 = vmatprep.mubr.bf16.mxu0 0
    %5823 = vmatmul.mubr.bf16.gmra.mxu0 %v5737
    %v5824 = vpop.f32.mrf.mxu0
    %v5825 = vadd.f32 %v5692, %v5824
    %v5826 = vpop.f32.mrf.mxu0
    %v5827 = vpop.f32.mrf.mxu0
    %v5828 = vadd.f32 %v5692, %v5827
    %v5829 = vpop.f32.mrf.mxu0
    %5830 = vmatprep.mubr.bf16.mxu0 0
    %5831 = vmatmul.mubr.bf16.gmra.mxu0 %v5740
    %v5832 = vpop.f32.mrf.mxu0
    %v5833 = vadd.f32 %v5692, %v5832
    %v5834 = vpop.f32.mrf.mxu0
    %v5835 = vpop.f32.mrf.mxu0
    %v5836 = vadd.f32 %v5692, %v5835
    %v5837 = vpop.f32.mrf.mxu0
    %5838 = vdwg.mxu0
    %v5839 = vmax.f32 %v5777, 0.0
    %v5840 = vmax.f32 %v5780, 0.0
    %v5841 = vmax.f32 %v5785, 0.0
    %v5842 = vmax.f32 %v5788, 0.0
    %v5843 = vmax.f32 %v5793, 0.0
    %v5844 = vmax.f32 %v5796, 0.0
    %v5845 = vmax.f32 %v5801, 0.0
    %v5846 = vmax.f32 %v5804, 0.0
    %v5847 = vmax.f32 %v5809, 0.0
    %v5848 = vmax.f32 %v5812, 0.0
    %v5849 = vmax.f32 %v5817, 0.0
    %v5850 = vmax.f32 %v5820, 0.0
    %v5851 = vmax.f32 %v5825, 0.0
    %v5852 = vmax.f32 %v5828, 0.0
    %v5853 = vmax.f32 %v5833, 0.0
    %v5854 = vmax.f32 %v5836, 0.0
    %v5855 = vpack.c.bf16 %v5840, %v5839
    %v5856 = vpack.c.bf16 %v5842, %v5841
    %v5857 = vpack.c.bf16 %v5844, %v5843
    %v5858 = vpack.c.bf16 %v5846, %v5845
    %v5859 = vpack.c.bf16 %v5848, %v5847
    %v5860 = vpack.c.bf16 %v5850, %v5849
    %v5861 = vpack.c.bf16 %v5852, %v5851
    %v5862 = vpack.c.bf16 %v5854, %v5853
    %v5863 = vld [vmem:[%s15] sm:$0xf]
    %v5864 = vld [vmem:[%s15 + $0x4] sm:$0xf]
    %v5865 = vld [vmem:[%s15 + $0x8] sm:$0xf]
    %v5866 = vld [vmem:[%s15 + $0xc] sm:$0xf]
    %v5867 = vld [vmem:[%s15 + $0x10] sm:$0xf]
    %v5868 = vld [vmem:[%s15 + $0x14] sm:$0xf]
    %v5869 = vld [vmem:[%s15 + $0x18] sm:$0xf]
    %v5870 = vld [vmem:[%s15 + $0x1c] sm:$0xf]
    %v5871 = vld [vmem:[#allocation12] sm:$0x1]
    %v5873 = vlaneseq
    %v5874 = vshrl.u32 %v5873, 7
    %v5875 = vsub.s32 0, %v5874
    %v5876 = vrot.slane %v5871, %v5875
    %v5886 = vunpack.c.l.b16 %v5863
    %v5887 = vunpack.c.l.b16 %v5864
    %v5888 = vunpack.c.l.b16 %v5865
    %v5889 = vunpack.c.l.b16 %v5866
    %v5890 = vunpack.c.l.b16 %v5867
    %v5891 = vunpack.c.l.b16 %v5868
    %v5892 = vunpack.c.l.b16 %v5869
    %v5893 = vunpack.c.l.b16 %v5870
    %v5894 = vpack.c.b16 %v5887, %v5886
    %v5895 = vpack.c.b16 %v5889, %v5888
    %v5896 = vpack.c.b16 %v5891, %v5890
    %v5897 = vpack.c.b16 %v5893, %v5892
    %v5903 = vsel %vm5497, %v5855, 0
    %v5906 = vsel %vm5497, %v5856, 0
    %v5909 = vsel %vm5497, %v5857, 0
    %v5912 = vsel %vm5497, %v5858, 0
    %v5915 = vsel %vm5497, %v5859, 0
    %v5918 = vsel %vm5497, %v5860, 0
    %v5921 = vsel %vm5497, %v5861, 0
    %v5924 = vsel %vm5497, %v5862, 0
    %5926 = vmatprep.subr.bf16.mxu0 0
    %5927 = vmatpush1.bf16.msra.mxu0 0
    %5928 = vmatprep.subr.bf16.mxu0 0
    %5929 = vmatpush1.bf16.msra.mxu0 0
    %5930 = vmatprep.subr.bf16.mxu0 0
    %5931 = vmatpush1.bf16.msra.mxu0 0
    %5932 = vmatprep.subr.bf16.mxu0 0
    %5933 = vmatpush1.bf16.msra.mxu0 0
    %5934 = vmatprep.subr.bf16.mxu0 0
    %5935 = vmatpush1.bf16.msra.mxu0 %v5897
    %5936 = vmatprep.subr.bf16.mxu0 0
    %5937 = vmatpush1.bf16.msra.mxu0 %v5896
    %5938 = vmatprep.subr.bf16.mxu0 0
    %5939 = vmatpush1.bf16.msra.mxu0 %v5895
    %5940 = vmatprep.subr.bf16.mxu0 0
    %5941 = vmatpush1.bf16.msra.mxu0 %v5894
    %5942 = vmatprep.subr.bf16.mxu0 0
    %5943 = vmatpush2.bf16.msra.mxu0 0
    %5944 = vmatprep.subr.bf16.mxu0 0
    %5945 = vmatpush2.bf16.msra.mxu0 0
    %5946 = vmatprep.subr.bf16.mxu0 0
    %5947 = vmatpush2.bf16.msra.mxu0 0
    %5948 = vmatprep.subr.bf16.mxu0 0
    %5949 = vmatpush2.bf16.msra.mxu0 0
    %5950 = vmatprep.subr.bf16.mxu0 0
    %5951 = vmatpush2.bf16.msra.mxu0 0
    %5952 = vmatprep.subr.bf16.mxu0 0
    %5953 = vmatpush2.bf16.msra.mxu0 0
    %5954 = vmatprep.subr.bf16.mxu0 0
    %5955 = vmatpush2.bf16.msra.mxu0 0
    %5956 = vmatprep.subr.bf16.mxu0 0
    %5957 = vmatpush2.bf16.msra.mxu0 0
    %5958 = vmatprep.mubr.bf16.mxu0 0
    %5959 = vmatmul.mubr.bf16.gmra.mxu0 %v5903
    %v5960 = vpop.f32.mrf.mxu0
    %v5961 = vadd.f32 %v5876, %v5960
    %v5962 = vpop.f32.mrf.mxu0
    %v5963 = vpop.f32.mrf.mxu0
    %v5964 = vadd.f32 %v5876, %v5963
    %v5965 = vpop.f32.mrf.mxu0
    %5966 = vmatprep.mubr.bf16.mxu0 0
    %5967 = vmatmul.mubr.bf16.gmra.mxu0 %v5906
    %v5968 = vpop.f32.mrf.mxu0
    %v5969 = vadd.f32 %v5876, %v5968
    %v5970 = vpop.f32.mrf.mxu0
    %v5971 = vpop.f32.mrf.mxu0
    %v5972 = vadd.f32 %v5876, %v5971
    %v5973 = vpop.f32.mrf.mxu0
    %5974 = vmatprep.mubr.bf16.mxu0 0
    %5975 = vmatmul.mubr.bf16.gmra.mxu0 %v5909
    %v5976 = vpop.f32.mrf.mxu0
    %v5977 = vadd.f32 %v5876, %v5976
    %v5978 = vpop.f32.mrf.mxu0
    %v5979 = vpop.f32.mrf.mxu0
    %v5980 = vadd.f32 %v5876, %v5979
    %v5981 = vpop.f32.mrf.mxu0
    %5982 = vmatprep.mubr.bf16.mxu0 0
    %5983 = vmatmul.mubr.bf16.gmra.mxu0 %v5912
    %v5984 = vpop.f32.mrf.mxu0
    %v5985 = vadd.f32 %v5876, %v5984
    %v5986 = vpop.f32.mrf.mxu0
    %v5987 = vpop.f32.mrf.mxu0
    %v5988 = vadd.f32 %v5876, %v5987
    %v5989 = vpop.f32.mrf.mxu0
    %5990 = vmatprep.mubr.bf16.mxu0 0
    %5991 = vmatmul.mubr.bf16.gmra.mxu0 %v5915
    %v5992 = vpop.f32.mrf.mxu0
    %v5993 = vadd.f32 %v5876, %v5992
    %v5994 = vpop.f32.mrf.mxu0
    %v5995 = vpop.f32.mrf.mxu0
    %v5996 = vadd.f32 %v5876, %v5995
    %v5997 = vpop.f32.mrf.mxu0
    %5998 = vmatprep.mubr.bf16.mxu0 0
    %5999 = vmatmul.mubr.bf16.gmra.mxu0 %v5918
    %v6000 = vpop.f32.mrf.mxu0
    %v6001 = vadd.f32 %v5876, %v6000
    %v6002 = vpop.f32.mrf.mxu0
    %v6003 = vpop.f32.mrf.mxu0
    %v6004 = vadd.f32 %v5876, %v6003
    %v6005 = vpop.f32.mrf.mxu0
    %6006 = vmatprep.mubr.bf16.mxu0 0
    %6007 = vmatmul.mubr.bf16.gmra.mxu0 %v5921
    %v6008 = vpop.f32.mrf.mxu0
    %v6009 = vadd.f32 %v5876, %v6008
    %v6010 = vpop.f32.mrf.mxu0
    %v6011 = vpop.f32.mrf.mxu0
    %v6012 = vadd.f32 %v5876, %v6011
    %v6013 = vpop.f32.mrf.mxu0
    %6014 = vmatprep.mubr.bf16.mxu0 0
    %6015 = vmatmul.mubr.bf16.gmra.mxu0 %v5924
    %v6016 = vpop.f32.mrf.mxu0
    %v6017 = vadd.f32 %v5876, %v6016
    %v6018 = vpop.f32.mrf.mxu0
    %v6019 = vpop.f32.mrf.mxu0
    %v6020 = vadd.f32 %v5876, %v6019
    %v6021 = vpop.f32.mrf.mxu0
    %6022 = vdwg.mxu0
    %6023 = vmax.xlane.f32.xlu0 %v5961
    %v6024 = vpop.xlane.xlu0 %6023
    %6025 = vmax.xlane.f32.xlu0 %v5964
    %v6026 = vpop.xlane.xlu0 %6025
    %6027 = vmax.xlane.f32.xlu0 %v5969
    %v6028 = vpop.xlane.xlu0 %6027
    %6029 = vmax.xlane.f32.xlu0 %v5972
    %v6030 = vpop.xlane.xlu0 %6029
    %6031 = vmax.xlane.f32.xlu0 %v5977
    %v6032 = vpop.xlane.xlu0 %6031
    %6033 = vmax.xlane.f32.xlu0 %v5980
    %v6034 = vpop.xlane.xlu0 %6033
    %6035 = vmax.xlane.f32.xlu0 %v5985
    %v6036 = vpop.xlane.xlu0 %6035
    %6037 = vmax.xlane.f32.xlu0 %v5988
    %v6038 = vpop.xlane.xlu0 %6037
    %6039 = vmax.xlane.f32.xlu0 %v5993
    %v6040 = vpop.xlane.xlu0 %6039
    %6041 = vmax.xlane.f32.xlu0 %v5996
    %v6042 = vpop.xlane.xlu0 %6041
    %6043 = vmax.xlane.f32.xlu0 %v6001
    %v6044 = vpop.xlane.xlu0 %6043
    %6045 = vmax.xlane.f32.xlu0 %v6004
    %v6046 = vpop.xlane.xlu0 %6045
    %6047 = vmax.xlane.f32.xlu0 %v6009
    %v6048 = vpop.xlane.xlu0 %6047
    %6049 = vmax.xlane.f32.xlu0 %v6012
    %v6050 = vpop.xlane.xlu0 %6049
    %6051 = vmax.xlane.f32.xlu0 %v6017
    %v6052 = vpop.xlane.xlu0 %6051
    %6053 = vmax.xlane.f32.xlu0 %v6020
    %v6054 = vpop.xlane.xlu0 %6053
    %v6055 = vsub.f32 %v5961, %v6024
    %v6056 = vsub.f32 %v5964, %v6026
    %v6057 = vsub.f32 %v5969, %v6028
    %v6058 = vsub.f32 %v5972, %v6030
    %v6059 = vsub.f32 %v5977, %v6032
    %v6060 = vsub.f32 %v5980, %v6034
    %v6061 = vsub.f32 %v5985, %v6036
    %v6062 = vsub.f32 %v5988, %v6038
    %v6063 = vsub.f32 %v5993, %v6040
    %v6064 = vsub.f32 %v5996, %v6042
    %v6065 = vsub.f32 %v6001, %v6044
    %v6066 = vsub.f32 %v6004, %v6046
    %v6067 = vsub.f32 %v6009, %v6048
    %v6068 = vsub.f32 %v6012, %v6050
    %v6069 = vsub.f32 %v6017, %v6052
    %v6070 = vsub.f32 %v6020, %v6054
    %v6071 = vmul.f32 %v6055, 1.442695
    %v6072 = vpow.pop %v6071
    %v6073 = vmul.f32 %v6056, 1.442695
    %v6074 = vpow.pop %v6073
    %v6075 = vmul.f32 %v6057, 1.442695
    %v6076 = vpow.pop %v6075
    %v6077 = vmul.f32 %v6058, 1.442695
    %v6078 = vpow.pop %v6077
    %v6079 = vmul.f32 %v6059, 1.442695
    %v6080 = vpow.pop %v6079
    %v6081 = vmul.f32 %v6060, 1.442695
    %v6082 = vpow.pop %v6081
    %v6083 = vmul.f32 %v6061, 1.442695
    %v6084 = vpow.pop %v6083
    %v6085 = vmul.f32 %v6062, 1.442695
    %v6086 = vpow.pop %v6085
    %v6087 = vmul.f32 %v6063, 1.442695
    %v6088 = vpow.pop %v6087
    %v6089 = vmul.f32 %v6064, 1.442695
    %v6090 = vpow.pop %v6089
    %v6091 = vmul.f32 %v6065, 1.442695
    %v6092 = vpow.pop %v6091
    %v6093 = vmul.f32 %v6066, 1.442695
    %v6094 = vpow.pop %v6093
    %v6095 = vmul.f32 %v6067, 1.442695
    %v6096 = vpow.pop %v6095
    %v6097 = vmul.f32 %v6068, 1.442695
    %v6098 = vpow.pop %v6097
    %v6099 = vmul.f32 %v6069, 1.442695
    %v6100 = vpow.pop %v6099
    %v6101 = vmul.f32 %v6070, 1.442695
    %v6102 = vpow.pop %v6101
    %6103 = vadd.xlane.f32.xlu0 %v6072
    %v6104 = vpop.xlane.xlu0 %6103
    %6105 = vadd.xlane.f32.xlu0 %v6074
    %v6106 = vpop.xlane.xlu0 %6105
    %6107 = vadd.xlane.f32.xlu0 %v6076
    %v6108 = vpop.xlane.xlu0 %6107
    %6109 = vadd.xlane.f32.xlu0 %v6078
    %v6110 = vpop.xlane.xlu0 %6109
    %6111 = vadd.xlane.f32.xlu0 %v6080
    %v6112 = vpop.xlane.xlu0 %6111
    %6113 = vadd.xlane.f32.xlu0 %v6082
    %v6114 = vpop.xlane.xlu0 %6113
    %6115 = vadd.xlane.f32.xlu0 %v6084
    %v6116 = vpop.xlane.xlu0 %6115
    %6117 = vadd.xlane.f32.xlu0 %v6086
    %v6118 = vpop.xlane.xlu0 %6117
    %6119 = vadd.xlane.f32.xlu0 %v6088
    %v6120 = vpop.xlane.xlu0 %6119
    %6121 = vadd.xlane.f32.xlu0 %v6090
    %v6122 = vpop.xlane.xlu0 %6121
    %6123 = vadd.xlane.f32.xlu0 %v6092
    %v6124 = vpop.xlane.xlu0 %6123
    %6125 = vadd.xlane.f32.xlu0 %v6094
    %v6126 = vpop.xlane.xlu0 %6125
    %6127 = vadd.xlane.f32.xlu0 %v6096
    %v6128 = vpop.xlane.xlu0 %6127
    %6129 = vadd.xlane.f32.xlu0 %v6098
    %v6130 = vpop.xlane.xlu0 %6129
    %6131 = vadd.xlane.f32.xlu0 %v6100
    %v6132 = vpop.xlane.xlu0 %6131
    %6133 = vadd.xlane.f32.xlu0 %v6102
    %v6134 = vpop.xlane.xlu0 %6133
    %v6135 = vlog2.pop %v6104
    %v6136 = vmul.f32 %v6135, 0.6931472
    %v6137 = vlog2.pop %v6106
    %v6138 = vmul.f32 %v6137, 0.6931472
    %v6139 = vlog2.pop %v6108
    %v6140 = vmul.f32 %v6139, 0.6931472
    %v6141 = vlog2.pop %v6110
    %v6142 = vmul.f32 %v6141, 0.6931472
    %v6143 = vlog2.pop %v6112
    %v6144 = vmul.f32 %v6143, 0.6931472
    %v6145 = vlog2.pop %v6114
    %v6146 = vmul.f32 %v6145, 0.6931472
    %v6147 = vlog2.pop %v6116
    %v6148 = vmul.f32 %v6147, 0.6931472
    %v6149 = vlog2.pop %v6118
    %v6150 = vmul.f32 %v6149, 0.6931472
    %v6151 = vlog2.pop %v6120
    %v6152 = vmul.f32 %v6151, 0.6931472
    %v6153 = vlog2.pop %v6122
    %v6154 = vmul.f32 %v6153, 0.6931472
    %v6155 = vlog2.pop %v6124
    %v6156 = vmul.f32 %v6155, 0.6931472
    %v6157 = vlog2.pop %v6126
    %v6158 = vmul.f32 %v6157, 0.6931472
    %v6159 = vlog2.pop %v6128
    %v6160 = vmul.f32 %v6159, 0.6931472
    %v6161 = vlog2.pop %v6130
    %v6162 = vmul.f32 %v6161, 0.6931472
    %v6163 = vlog2.pop %v6132
    %v6164 = vmul.f32 %v6163, 0.6931472
    %v6165 = vlog2.pop %v6134
    %v6166 = vmul.f32 %v6165, 0.6931472
    %v6167 = vsub.f32 %v6055, %v6136
    %v6168 = vsub.f32 %v6056, %v6138
    %v6169 = vsub.f32 %v6057, %v6140
    %v6170 = vsub.f32 %v6058, %v6142
    %v6171 = vsub.f32 %v6059, %v6144
    %v6172 = vsub.f32 %v6060, %v6146
    %v6173 = vsub.f32 %v6061, %v6148
    %v6174 = vsub.f32 %v6062, %v6150
    %v6175 = vsub.f32 %v6063, %v6152
    %v6176 = vsub.f32 %v6064, %v6154
    %v6177 = vsub.f32 %v6065, %v6156
    %v6178 = vsub.f32 %v6066, %v6158
    %v6179 = vsub.f32 %v6067, %v6160
    %v6180 = vsub.f32 %v6068, %v6162
    %v6181 = vsub.f32 %v6069, %v6164
    %v6182 = vsub.f32 %v6070, %v6166
    %6183 = vst [vmem:[%s17] sm:$0xff] %v6167
    %6184 = vst [vmem:[%s17 + $0x8] sm:$0xff] %v6168
    %6185 = vst [vmem:[%s17 + $0x10] sm:$0xff] %v6169
    %6186 = vst [vmem:[%s17 + $0x18] sm:$0xff] %v6170
    %6187 = vst [vmem:[%s17 + $0x20] sm:$0xff] %v6171
    %6188 = vst [vmem:[%s17 + $0x28] sm:$0xff] %v6172
    %6189 = vst [vmem:[%s17 + $0x30] sm:$0xff] %v6173
    %6190 = vst [vmem:[%s17 + $0x38] sm:$0xff] %v6174
    %6191 = vst [vmem:[%s17 + $0x40] sm:$0xff] %v6175
    %6192 = vst [vmem:[%s17 + $0x48] sm:$0xff] %v6176
    %6193 = vst [vmem:[%s17 + $0x50] sm:$0xff] %v6177
    %6194 = vst [vmem:[%s17 + $0x58] sm:$0xff] %v6178
    %6195 = vst [vmem:[%s17 + $0x60] sm:$0xff] %v6179
    %6196 = vst [vmem:[%s17 + $0x68] sm:$0xff] %v6180
    %6197 = vst [vmem:[%s17 + $0x70] sm:$0xff] %v6181
    %6198 = vst [vmem:[%s17 + $0x78] sm:$0xff] %v6182
    // Predicated region
    $region98: #{net_forward.1} parent=1 // pred_check
      _
    $region99: #{net_forward.1} parent=1 // pred_check_branch
      %6200 = sbr.rel (0) target = $region101
    $region100: #{net_forward.1} parent=1 // pred_region
      _
    $region101: #{net_forward.1} parent=1 // pred_fallthru
      _
    // Predicated region
    $region102: #{net_forward.1} parent=1 // pred_check
      _
    $region103: #{net_forward.1} parent=1 // pred_check_branch
      %6202 = sbr.rel (0) target = $region105
    $region104: #{net_forward.1} parent=1 // pred_region
      _
    $region105: #{net_forward.1} parent=1 // pred_fallthru
      _
    %6203 = vsyncpa [#allocation3], 1
    %6204 = vsyncpa [#allocation5], 1
    %6205 = vsyncpa [#allocation8], 1
    %6206 = vsyncpa [#allocation11], 1

</llo_original>
